<compile_context>
chip_gen: v7x
topology: tpu7x:2x2x1
jax: 0.10.0
libtpu: 0.0.40
codegen_flags: <defaults>
</compile_context>

<pallas_src>
import functools

import jax
import jax.numpy as jnp
from jax.experimental import pallas as pl
from jax.experimental.pallas import tpu as pltpu


LANE = 128  # pad every layer's output channels to a full lane width


# ----------------------------------------------------------------------------
# Pallas kernel: fused  Y = act(X @ W + b)   (bf16 operands, f32 accumulate)
# ----------------------------------------------------------------------------
def _matmul_bias_act_kernel(x_ref, w_ref, b_ref, o_ref, *, apply_relu):
    acc = jnp.dot(x_ref[...], w_ref[...], preferred_element_type=jnp.float32)
    acc = acc + b_ref[...]              # (1, N) broadcasts over rows, f32
    if apply_relu:
        acc = jnp.maximum(acc, 0.0)
    o_ref[...] = acc.astype(o_ref.dtype)


# Pallas kernel: fused FC head  q = (relu(X @ W1 + b1)) @ W2 + b2
def _fc_head_kernel(x_ref, w1_ref, b1_ref, w2_ref, b2_ref, o_ref):
    h = jnp.dot(x_ref[...], w1_ref[...], preferred_element_type=jnp.float32)
    h = jnp.maximum(h + b1_ref[...], 0.0)
    q = jnp.dot(h.astype(jnp.bfloat16), w2_ref[...],
                preferred_element_type=jnp.float32)
    o_ref[...] = (q + b2_ref[...]).astype(o_ref.dtype)


def _pick_tm(m):
    """Largest row tile that evenly divides M (else a single full block)."""
    for tm in (512, 256, 128, 64, 32, 16, 8):
        if m % tm == 0:
            return tm
    return m


def _vmem_limit(per_step_bytes):
    # double-buffered blocks + headroom, bounded for v7x's 64 MiB VMEM.
    return int(min(48 * 1024 * 1024, max(8 * 1024 * 1024, 3 * per_step_bytes)))


def fused_matmul_bias(x, w, b, *, relu, out_dtype):
    """x: (M, K) bf16, w: (K, N) bf16, b: (1, N) f32 -> (M, N) out_dtype."""
    M, K = x.shape
    Kw, N = w.shape
    assert K == Kw, (K, Kw)
    tm = _pick_tm(M)
    out_itm = jnp.dtype(out_dtype).itemsize
    per_step = (tm * K * x.dtype.itemsize + K * N * w.dtype.itemsize
                + N * b.dtype.itemsize + tm * N * out_itm)
    cost = pl.CostEstimate(
        flops=2 * M * K * N,
        transcendentals=0,
        bytes_accessed=(M * K * x.dtype.itemsize + K * N * w.dtype.itemsize
                        + N * b.dtype.itemsize + M * N * out_itm))
    kernel = functools.partial(_matmul_bias_act_kernel, apply_relu=relu)
    return pl.pallas_call(
        kernel,
        out_shape=jax.ShapeDtypeStruct((M, N), out_dtype),
        grid_spec=pltpu.PrefetchScalarGridSpec(
            num_scalar_prefetch=0,
            grid=(M // tm,),
            in_specs=[pl.BlockSpec((tm, K), lambda i: (i, 0)),
                      pl.BlockSpec((K, N), lambda i: (0, 0)),
                      pl.BlockSpec((1, N), lambda i: (0, 0))],
            out_specs=pl.BlockSpec((tm, N), lambda i: (i, 0))),
        compiler_params=pltpu.CompilerParams(
            dimension_semantics=("parallel",),
            vmem_limit_bytes=_vmem_limit(per_step)),
        cost_estimate=cost,
    )(x, w, b)


def fc_head(x, w1, b1, w2, b2):
    """Fused flatten->fc1(ReLU)->fc2. x: (M, K1) bf16 -> (M, 128) f32."""
    M, K1 = x.shape
    _, H1 = w1.shape
    _, N2 = w2.shape
    tm = _pick_tm(M)
    per_step = (tm * K1 * 2 + K1 * H1 * 2 + H1 * 4
                + H1 * N2 * 2 + N2 * 4 + tm * N2 * 4)
    cost = pl.CostEstimate(
        flops=2 * M * K1 * H1 + 2 * M * H1 * N2,
        transcendentals=0,
        bytes_accessed=(M * K1 * 2 + K1 * H1 * 2 + H1 * 4
                        + H1 * N2 * 2 + N2 * 4 + M * N2 * 4))
    return pl.pallas_call(
        _fc_head_kernel,
        out_shape=jax.ShapeDtypeStruct((M, N2), jnp.float32),
        grid_spec=pltpu.PrefetchScalarGridSpec(
            num_scalar_prefetch=0,
            grid=(M // tm,),
            in_specs=[pl.BlockSpec((tm, K1), lambda i: (i, 0)),
                      pl.BlockSpec((K1, H1), lambda i: (0, 0)),
                      pl.BlockSpec((1, H1), lambda i: (0, 0)),
                      pl.BlockSpec((H1, N2), lambda i: (0, 0)),
                      pl.BlockSpec((1, N2), lambda i: (0, 0))],
            out_specs=pl.BlockSpec((tm, N2), lambda i: (i, 0))),
        compiler_params=pltpu.CompilerParams(
            dimension_semantics=("parallel",),
            vmem_limit_bytes=_vmem_limit(per_step)),
        cost_estimate=cost,
    )(x, w1, b1, w2, b2)


# ----------------------------------------------------------------------------
# Conv2d (valid padding) via channels-last im2col + fused Pallas matmul
# ----------------------------------------------------------------------------
def _im2col_nhwc(x, k, s):
    """x: (N, H, W, C) -> patches (N*Ho*Wo, k*k*C); flat idx = (i*k+j)*C + c.
    Strided slices + lane-axis concat only (no transposes)."""
    N, H, W, C = x.shape
    Ho = (H - k) // s + 1
    Wo = (W - k) // s + 1
    cols = []
    for i in range(k):
        for j in range(k):
            cols.append(x[:, i:i + s * Ho:s, j:j + s * Wo:s, :])  # (N,Ho,Wo,C)
    patches = jnp.concatenate(cols, axis=-1)                      # (N,Ho,Wo,k*k*C)
    return patches.reshape(N * Ho * Wo, k * k * C), Ho, Wo


def conv2d_relu(x, w_mat, b_row, *, k, stride):
    """x: (N, H, W, Cin[_pad]) bf16; w_mat: (k*k*Cin_pad, 128) bf16."""
    n = x.shape[0]
    patches, ho, wo = _im2col_nhwc(x, k, stride)
    y = fused_matmul_bias(patches, w_mat, b_row, relu=True,
                          out_dtype=jnp.bfloat16)          # (N*Ho*Wo, 128)
    return y.reshape(n, ho, wo, LANE)                       # NHWC, no transpose


# ----------------------------------------------------------------------------
# Parameter construction & packing (deterministic, synthetic)
# ----------------------------------------------------------------------------
def _conv_out_hw(h, k, s):
    return (h - k) // s + 1


def _pack_conv(w, b, *, in_ch_pad):
    """torch (out, in, k, k) -> ((k*k*in_ch_pad, 128) bf16, (1, 128) f32)."""
    out_ch, in_ch, k, _ = w.shape
    w = jnp.transpose(w, (2, 3, 1, 0))                       # (k, k, in, out)
    w = jnp.pad(w, ((0, 0), (0, 0),
                    (0, in_ch_pad - in_ch), (0, LANE - out_ch)))
    w_mat = w.reshape(k * k * in_ch_pad, LANE).astype(jnp.bfloat16)
    b_row = jnp.pad(b, (0, LANE - out_ch)).reshape(1, LANE).astype(jnp.float32)
    return w_mat, b_row


def _pack_fc1(w, b, hc, wc, c_real):
    """torch fc1 weight (conv_out_size, 512) with torch NCHW-flatten row order
    (c*hc*wc + y*wc + x) -> rows permuted/zero-padded to match our
    NHWC-with-padded-channels flatten ((y*wc + x)*LANE + c)."""
    conv_out_size, n_out = w.shape
    assert conv_out_size == c_real * hc * wc
    w4 = w.reshape(c_real, hc, wc, n_out)
    w4 = jnp.transpose(w4, (1, 2, 0, 3))                     # (y, x, c, 512)
    w4 = jnp.pad(w4, ((0, 0), (0, 0), (0, LANE - c_real), (0, 0)))
    w_mat = w4.reshape(hc * wc * LANE, n_out).astype(jnp.bfloat16)
    return w_mat, b.reshape(1, n_out).astype(jnp.float32)


def _pack_fc2(w, b):
    n_in, n_out = w.shape
    assert n_out <= LANE
    w_mat = jnp.pad(w, ((0, 0), (0, LANE - n_out))).astype(jnp.bfloat16)
    b_row = jnp.pad(b, (0, LANE - n_out)).reshape(1, LANE).astype(jnp.float32)
    return w_mat, b_row


def init_params(key, in_ch, n_actions, H, W):
    ks = jax.random.split(key, 10)
    scale = 0.05

    def rnd(k, shape):
        return (scale * jax.random.normal(k, shape)).astype(jnp.float32)

    # Raw torch-layout parameters (synthetic stand-ins for the nn.Module's).
    conv1_w, conv1_b = rnd(ks[0], (32, in_ch, 8, 8)), rnd(ks[1], (32,))
    conv2_w, conv2_b = rnd(ks[2], (64, 32, 4, 4)), rnd(ks[3], (64,))
    conv3_w, conv3_b = rnd(ks[4], (64, 64, 3, 3)), rnd(ks[5], (64,))

    hc = _conv_out_hw(_conv_out_hw(_conv_out_hw(H, 8, 4), 4, 2), 3, 1)
    wc = _conv_out_hw(_conv_out_hw(_conv_out_hw(W, 8, 4), 4, 2), 3, 1)
    conv_out_size = 64 * hc * wc                       # == _get_conv_out(...)
    fc1_w, fc1_b = rnd(ks[6], (conv_out_size, 512)), rnd(ks[7], (512,))
    fc2_w, fc2_b = rnd(ks[8], (512, n_actions)), rnd(ks[9], (n_actions,))

    p = {}
    p["conv1_w"], p["conv1_b"] = _pack_conv(conv1_w, conv1_b, in_ch_pad=in_ch)
    p["conv2_w"], p["conv2_b"] = _pack_conv(conv2_w, conv2_b, in_ch_pad=LANE)
    p["conv3_w"], p["conv3_b"] = _pack_conv(conv3_w, conv3_b, in_ch_pad=LANE)
    p["fc1_w"], p["fc1_b"] = _pack_fc1(fc1_w, fc1_b, hc, wc, c_real=64)
    p["fc2_w"], p["fc2_b"] = _pack_fc2(fc2_w, fc2_b)
    return p


# ----------------------------------------------------------------------------
# Forward pass (== QNetwork.forward)
# ----------------------------------------------------------------------------
@functools.partial(jax.jit, static_argnames=("n_actions",))
def qnetwork_forward(params, x, *, n_actions):
    # NCHW (torch convention) -> NHWC + bf16, once at the boundary.
    x = jnp.transpose(x, (0, 2, 3, 1)).astype(jnp.bfloat16)
    h = conv2d_relu(x, params["conv1_w"], params["conv1_b"], k=8, stride=4)
    h = conv2d_relu(h, params["conv2_w"], params["conv2_b"], k=4, stride=2)
    h = conv2d_relu(h, params["conv3_w"], params["conv3_b"], k=3, stride=1)
    flat = h.reshape(h.shape[0], -1)      # NHWC(-padded) flatten, matches fc1 packing
    q_pad = fc_head(flat, params["fc1_w"], params["fc1_b"],
                    params["fc2_w"], params["fc2_b"])
    return q_pad[:, :n_actions]


def _reference_forward(params, x, n_actions):
    """Pure-jnp f32 reference using the same packed parameters."""
    x = jnp.transpose(x, (0, 2, 3, 1)).astype(jnp.float32)
    for w_key, b_key, k, s in (("conv1_w", "conv1_b", 8, 4),
                               ("conv2_w", "conv2_b", 4, 2),
                               ("conv3_w", "conv3_b", 3, 1)):
        patches, ho, wo = _im2col_nhwc(x, k, s)
        y = jnp.maximum(
            patches @ params[w_key].astype(jnp.float32) + params[b_key], 0.0)
        x = y.reshape(x.shape[0], ho, wo, LANE)
    flat = x.reshape(x.shape[0], -1)
    h = jnp.maximum(
        flat @ params["fc1_w"].astype(jnp.float32) + params["fc1_b"], 0.0)
    q = h @ params["fc2_w"].astype(jnp.float32) + params["fc2_b"]
    return q[:, :n_actions]


if __name__ == "__main__":
    # 36x36 input -> 8x8 -> 3x3 -> 1x1 spatial; conv_out_size = 64.
    batch, in_ch, H, W = 2, 4, 36, 36
    n_actions = 6

    key = jax.random.PRNGKey(0)
    k_x, k_p = jax.random.split(key)
    x = jax.random.normal(k_x, (batch, in_ch, H, W), dtype=jnp.float32)
    params = init_params(k_p, in_ch, n_actions, H, W)

    q_values = qnetwork_forward(params, x, n_actions=n_actions)
    q_values = jax.block_until_ready(q_values)
    assert q_values.shape == (batch, n_actions), q_values.shape
    assert q_values.dtype == jnp.float32
    assert bool(jnp.all(jnp.isfinite(q_values)))

    # Numerical sanity vs. f32 reference (difference is only bf16 rounding).
    q_ref = _reference_forward(params, x, n_actions)
    max_err = float(jnp.max(jnp.abs(q_values - q_ref)))
    assert max_err < 0.1, f"max abs err vs reference = {max_err}"

    print("KERNEL_OK")
</pallas_src>

<mosaic_0001>
module attributes {stable_mosaic.version = 11 : i64} {
  func.func @_matmul_bias_act_kernel(%arg0: i32, %arg1: memref<128x256xbf16, #tpu.memory_space<vmem>>, %arg2: memref<256x128xbf16, #tpu.memory_space<vmem>>, %arg3: memref<1x128xf32, #tpu.memory_space<vmem>>, %arg4: memref<128x128xbf16, #tpu.memory_space<vmem>>) attributes {dimension_semantics = [#tpu.dimension_semantics<parallel>], iteration_bounds = array<i64: 1>, scalar_prefetch = 0 : i64, scratch_operands = 0 : i64, tpu.core_type = #tpu.core_type<tc>, window_params = [{transform_indices = @transform_0, window_bounds = array<i64: 128, 256>}, {pipeline_mode = #tpu.pipeline_mode<synchronous>, transform_indices = @transform_1, window_bounds = array<i64: 256, 128>}, {pipeline_mode = #tpu.pipeline_mode<synchronous>, transform_indices = @transform_2, window_bounds = array<i64: 1, 128>}, {transform_indices = @transform_3, window_bounds = array<i64: 128, 128>}]} {
    %c0 = arith.constant 0 : index
    %c0_0 = arith.constant 0 : index
    %0 = vector.load %arg1[%c0, %c0_0] : memref<128x256xbf16, #tpu.memory_space<vmem>>, vector<128x256xbf16>
    %c0_1 = arith.constant 0 : index
    %c0_2 = arith.constant 0 : index
    %1 = vector.load %arg2[%c0_1, %c0_2] : memref<256x128xbf16, #tpu.memory_space<vmem>>, vector<256x128xbf16>
    %cst = arith.constant dense<0.000000e+00> : vector<128x128xf32>
    %2 = tpu.matmul %0, %1, %cst {dimension_numbers = #tpu.dot_dimension_numbers<[1], [0], [0], [1], [0, 0, 1, 1], [], []>} : vector<128x256xbf16>, vector<256x128xbf16>, vector<128x128xf32> -> vector<128x128xf32>
    %c0_3 = arith.constant 0 : index
    %c0_4 = arith.constant 0 : index
    %3 = vector.load %arg3[%c0_3, %c0_4] : memref<1x128xf32, #tpu.memory_space<vmem>>, vector<1x128xf32>
    %4 = vector.broadcast %3 : vector<1x128xf32> to vector<128x128xf32>
    %5 = arith.addf %2, %4 : vector<128x128xf32>
    %cst_5 = arith.constant 0.000000e+00 : f32
    %6 = vector.broadcast %cst_5 : f32 to vector<128x128xf32>
    %7 = arith.maximumf %5, %6 : vector<128x128xf32>
    %8 = arith.truncf %7 : vector<128x128xf32> to vector<128x128xbf16>
    %c0_6 = arith.constant 0 : index
    %c0_7 = arith.constant 0 : index
    %9 = vector.load %arg4[%c0_6, %c0_7] : memref<128x128xbf16, #tpu.memory_space<vmem>>, vector<128x128xbf16>
    tpu.vector_store %arg4[%c0_6, %c0_7], %8 {strides = array<i32>} : memref<128x128xbf16, #tpu.memory_space<vmem>>, vector<128x128xbf16>,
    return
  }
  func.func @transform_0(%arg0: i32) -> (i32, i32) {
    %c0_i32 = arith.constant 0 : i32
    %c0_i32_0 = arith.constant 0 : i32
    return %arg0, %c0_i32 : i32, i32
  }
  func.func @transform_1(%arg0: i32) -> (i32, i32) {
    %c0_i32 = arith.constant 0 : i32
    %c0_i32_0 = arith.constant 0 : i32
    %c0_i32_1 = arith.constant 0 : i32
    return %c0_i32, %c0_i32_0 : i32, i32
  }
  func.func @transform_2(%arg0: i32) -> (i32, i32) {
    %c0_i32 = arith.constant 0 : i32
    %c0_i32_0 = arith.constant 0 : i32
    %c0_i32_1 = arith.constant 0 : i32
    return %c0_i32, %c0_i32_0 : i32, i32
  }
  func.func @transform_3(%arg0: i32) -> (i32, i32) {
    %c0_i32 = arith.constant 0 : i32
    %c0_i32_0 = arith.constant 0 : i32
    return %arg0, %c0_i32 : i32, i32
  }
}

module attributes {stable_mosaic.version = 11 : i64} {
  func.func @_matmul_bias_act_kernel(%arg0: i32, %arg1: memref<18x2048xbf16, #tpu.memory_space<vmem>>, %arg2: memref<2048x128xbf16, #tpu.memory_space<vmem>>, %arg3: memref<1x128xf32, #tpu.memory_space<vmem>>, %arg4: memref<18x128xbf16, #tpu.memory_space<vmem>>) attributes {dimension_semantics = [#tpu.dimension_semantics<parallel>], iteration_bounds = array<i64: 1>, scalar_prefetch = 0 : i64, scratch_operands = 0 : i64, tpu.core_type = #tpu.core_type<tc>, window_params = [{transform_indices = @transform_0, window_bounds = array<i64: 18, 2048>}, {pipeline_mode = #tpu.pipeline_mode<synchronous>, transform_indices = @transform_1, window_bounds = array<i64: 2048, 128>}, {pipeline_mode = #tpu.pipeline_mode<synchronous>, transform_indices = @transform_2, window_bounds = array<i64: 1, 128>}, {transform_indices = @transform_3, window_bounds = array<i64: 18, 128>}]} {
    %c0 = arith.constant 0 : index
    %c0_0 = arith.constant 0 : index
    %0 = vector.load %arg1[%c0, %c0_0] : memref<18x2048xbf16, #tpu.memory_space<vmem>>, vector<18x2048xbf16>
    %c0_1 = arith.constant 0 : index
    %c0_2 = arith.constant 0 : index
    %1 = vector.load %arg2[%c0_1, %c0_2] : memref<2048x128xbf16, #tpu.memory_space<vmem>>, vector<2048x128xbf16>
    %cst = arith.constant dense<0.000000e+00> : vector<18x128xf32>
    %2 = tpu.matmul %0, %1, %cst {dimension_numbers = #tpu.dot_dimension_numbers<[1], [0], [0], [1], [0, 0, 1, 1], [], []>} : vector<18x2048xbf16>, vector<2048x128xbf16>, vector<18x128xf32> -> vector<18x128xf32>
    %c0_3 = arith.constant 0 : index
    %c0_4 = arith.constant 0 : index
    %3 = vector.load %arg3[%c0_3, %c0_4] : memref<1x128xf32, #tpu.memory_space<vmem>>, vector<1x128xf32>
    %4 = vector.broadcast %3 : vector<1x128xf32> to vector<18x128xf32>
    %5 = arith.addf %2, %4 : vector<18x128xf32>
    %cst_5 = arith.constant 0.000000e+00 : f32
    %6 = vector.broadcast %cst_5 : f32 to vector<18x128xf32>
    %7 = arith.maximumf %5, %6 : vector<18x128xf32>
    %8 = arith.truncf %7 : vector<18x128xf32> to vector<18x128xbf16>
    %c0_6 = arith.constant 0 : index
    %c0_7 = arith.constant 0 : index
    %9 = vector.load %arg4[%c0_6, %c0_7] : memref<18x128xbf16, #tpu.memory_space<vmem>>, vector<18x128xbf16>
    tpu.vector_store %arg4[%c0_6, %c0_7], %8 {strides = array<i32>} : memref<18x128xbf16, #tpu.memory_space<vmem>>, vector<18x128xbf16>,
    return
  }
  func.func @transform_0(%arg0: i32) -> (i32, i32) {
    %c0_i32 = arith.constant 0 : i32
    %c0_i32_0 = arith.constant 0 : i32
    return %arg0, %c0_i32 : i32, i32
  }
  func.func @transform_1(%arg0: i32) -> (i32, i32) {
    %c0_i32 = arith.constant 0 : i32
    %c0_i32_0 = arith.constant 0 : i32
    %c0_i32_1 = arith.constant 0 : i32
    return %c0_i32, %c0_i32_0 : i32, i32
  }
  func.func @transform_2(%arg0: i32) -> (i32, i32) {
    %c0_i32 = arith.constant 0 : i32
    %c0_i32_0 = arith.constant 0 : i32
    %c0_i32_1 = arith.constant 0 : i32
    return %c0_i32, %c0_i32_0 : i32, i32
  }
  func.func @transform_3(%arg0: i32) -> (i32, i32) {
    %c0_i32 = arith.constant 0 : i32
    %c0_i32_0 = arith.constant 0 : i32
    return %arg0, %c0_i32 : i32, i32
  }
}

module attributes {stable_mosaic.version = 11 : i64} {
  func.func @_fc_head_kernel(%arg0: i32, %arg1: memref<2x128xbf16, #tpu.memory_space<vmem>>, %arg2: memref<128x512xbf16, #tpu.memory_space<vmem>>, %arg3: memref<1x512xf32, #tpu.memory_space<vmem>>, %arg4: memref<512x128xbf16, #tpu.memory_space<vmem>>, %arg5: memref<1x128xf32, #tpu.memory_space<vmem>>, %arg6: memref<2x128xf32, #tpu.memory_space<vmem>>) attributes {dimension_semantics = [#tpu.dimension_semantics<parallel>], iteration_bounds = array<i64: 1>, scalar_prefetch = 0 : i64, scratch_operands = 0 : i64, tpu.core_type = #tpu.core_type<tc>, window_params = [{transform_indices = @transform_0, window_bounds = array<i64: 2, 128>}, {pipeline_mode = #tpu.pipeline_mode<synchronous>, transform_indices = @transform_1, window_bounds = array<i64: 128, 512>}, {pipeline_mode = #tpu.pipeline_mode<synchronous>, transform_indices = @transform_2, window_bounds = array<i64: 1, 512>}, {pipeline_mode = #tpu.pipeline_mode<synchronous>, transform_indices = @transform_3, window_bounds = array<i64: 512, 128>}, {pipeline_mode = #tpu.pipeline_mode<synchronous>, transform_indices = @transform_4, window_bounds = array<i64: 1, 128>}, {transform_indices = @transform_5, window_bounds = array<i64: 2, 128>}]} {
    %c0 = arith.constant 0 : index
    %c0_0 = arith.constant 0 : index
    %0 = vector.load %arg1[%c0, %c0_0] : memref<2x128xbf16, #tpu.memory_space<vmem>>, vector<2x128xbf16>
    %c0_1 = arith.constant 0 : index
    %c0_2 = arith.constant 0 : index
    %1 = vector.load %arg2[%c0_1, %c0_2] : memref<128x512xbf16, #tpu.memory_space<vmem>>, vector<128x512xbf16>
    %cst = arith.constant dense<0.000000e+00> : vector<2x512xf32>
    %2 = tpu.matmul %0, %1, %cst {dimension_numbers = #tpu.dot_dimension_numbers<[1], [0], [0], [1], [0, 0, 1, 1], [], []>} : vector<2x128xbf16>, vector<128x512xbf16>, vector<2x512xf32> -> vector<2x512xf32>
    %c0_3 = arith.constant 0 : index
    %c0_4 = arith.constant 0 : index
    %3 = vector.load %arg3[%c0_3, %c0_4] : memref<1x512xf32, #tpu.memory_space<vmem>>, vector<1x512xf32>
    %4 = vector.broadcast %3 : vector<1x512xf32> to vector<2x512xf32>
    %5 = arith.addf %2, %4 : vector<2x512xf32>
    %cst_5 = arith.constant 0.000000e+00 : f32
    %6 = vector.broadcast %cst_5 : f32 to vector<2x512xf32>
    %7 = arith.maximumf %5, %6 : vector<2x512xf32>
    %8 = arith.truncf %7 : vector<2x512xf32> to vector<2x512xbf16>
    %c0_6 = arith.constant 0 : index
    %c0_7 = arith.constant 0 : index
    %9 = vector.load %arg4[%c0_6, %c0_7] : memref<512x128xbf16, #tpu.memory_space<vmem>>, vector<512x128xbf16>
    %cst_8 = arith.constant dense<0.000000e+00> : vector<2x128xf32>
    %10 = tpu.matmul %8, %9, %cst_8 {dimension_numbers = #tpu.dot_dimension_numbers<[1], [0], [0], [1], [0, 0, 1, 1], [], []>} : vector<2x512xbf16>, vector<512x128xbf16>, vector<2x128xf32> -> vector<2x128xf32>
    %c0_9 = arith.constant 0 : index
    %c0_10 = arith.constant 0 : index
    %11 = vector.load %arg5[%c0_9, %c0_10] : memref<1x128xf32, #tpu.memory_space<vmem>>, vector<1x128xf32>
    %12 = vector.broadcast %11 : vector<1x128xf32> to vector<2x128xf32>
    %13 = arith.addf %10, %12 : vector<2x128xf32>
    %c0_11 = arith.constant 0 : index
    %c0_12 = arith.constant 0 : index
    %14 = vector.load %arg6[%c0_11, %c0_12] : memref<2x128xf32, #tpu.memory_space<vmem>>, vector<2x128xf32>
    tpu.vector_store %arg6[%c0_11, %c0_12], %13 {strides = array<i32>} : memref<2x128xf32, #tpu.memory_space<vmem>>, vector<2x128xf32>,
    return
  }
  func.func @transform_0(%arg0: i32) -> (i32, i32) {
    %c0_i32 = arith.constant 0 : i32
    %c0_i32_0 = arith.constant 0 : i32
    return %arg0, %c0_i32 : i32, i32
  }
  func.func @transform_1(%arg0: i32) -> (i32, i32) {
    %c0_i32 = arith.constant 0 : i32
    %c0_i32_0 = arith.constant 0 : i32
    %c0_i32_1 = arith.constant 0 : i32
    return %c0_i32, %c0_i32_0 : i32, i32
  }
  func.func @transform_2(%arg0: i32) -> (i32, i32) {
    %c0_i32 = arith.constant 0 : i32
    %c0_i32_0 = arith.constant 0 : i32
    %c0_i32_1 = arith.constant 0 : i32
    return %c0_i32, %c0_i32_0 : i32, i32
  }
  func.func @transform_3(%arg0: i32) -> (i32, i32) {
    %c0_i32 = arith.constant 0 : i32
    %c0_i32_0 = arith.constant 0 : i32
    %c0_i32_1 = arith.constant 0 : i32
    return %c0_i32, %c0_i32_0 : i32, i32
  }
  func.func @transform_4(%arg0: i32) -> (i32, i32) {
    %c0_i32 = arith.constant 0 : i32
    %c0_i32_0 = arith.constant 0 : i32
    %c0_i32_1 = arith.constant 0 : i32
    return %c0_i32, %c0_i32_0 : i32, i32
  }
  func.func @transform_5(%arg0: i32) -> (i32, i32) {
    %c0_i32 = arith.constant 0 : i32
    %c0_i32_0 = arith.constant 0 : i32
    return %arg0, %c0_i32 : i32, i32
  }
}

module attributes {stable_mosaic.version = 11 : i64} {
  func.func @_matmul_bias_act_kernel(%arg0: i32, %arg1: memref<2x1152xbf16, #tpu.memory_space<vmem>>, %arg2: memref<1152x128xbf16, #tpu.memory_space<vmem>>, %arg3: memref<1x128xf32, #tpu.memory_space<vmem>>, %arg4: memref<2x128xbf16, #tpu.memory_space<vmem>>) attributes {dimension_semantics = [#tpu.dimension_semantics<parallel>], iteration_bounds = array<i64: 1>, scalar_prefetch = 0 : i64, scratch_operands = 0 : i64, tpu.core_type = #tpu.core_type<tc>, window_params = [{transform_indices = @transform_0, window_bounds = array<i64: 2, 1152>}, {pipeline_mode = #tpu.pipeline_mode<synchronous>, transform_indices = @transform_1, window_bounds = array<i64: 1152, 128>}, {pipeline_mode = #tpu.pipeline_mode<synchronous>, transform_indices = @transform_2, window_bounds = array<i64: 1, 128>}, {transform_indices = @transform_3, window_bounds = array<i64: 2, 128>}]} {
    %c0 = arith.constant 0 : index
    %c0_0 = arith.constant 0 : index
    %0 = vector.load %arg1[%c0, %c0_0] : memref<2x1152xbf16, #tpu.memory_space<vmem>>, vector<2x1152xbf16>
    %c0_1 = arith.constant 0 : index
    %c0_2 = arith.constant 0 : index
    %1 = vector.load %arg2[%c0_1, %c0_2] : memref<1152x128xbf16, #tpu.memory_space<vmem>>, vector<1152x128xbf16>
    %cst = arith.constant dense<0.000000e+00> : vector<2x128xf32>
    %2 = tpu.matmul %0, %1, %cst {dimension_numbers = #tpu.dot_dimension_numbers<[1], [0], [0], [1], [0, 0, 1, 1], [], []>} : vector<2x1152xbf16>, vector<1152x128xbf16>, vector<2x128xf32> -> vector<2x128xf32>
    %c0_3 = arith.constant 0 : index
    %c0_4 = arith.constant 0 : index
    %3 = vector.load %arg3[%c0_3, %c0_4] : memref<1x128xf32, #tpu.memory_space<vmem>>, vector<1x128xf32>
    %4 = vector.broadcast %3 : vector<1x128xf32> to vector<2x128xf32>
    %5 = arith.addf %2, %4 : vector<2x128xf32>
    %cst_5 = arith.constant 0.000000e+00 : f32
    %6 = vector.broadcast %cst_5 : f32 to vector<2x128xf32>
    %7 = arith.maximumf %5, %6 : vector<2x128xf32>
    %8 = arith.truncf %7 : vector<2x128xf32> to vector<2x128xbf16>
    %c0_6 = arith.constant 0 : index
    %c0_7 = arith.constant 0 : index
    %9 = vector.load %arg4[%c0_6, %c0_7] : memref<2x128xbf16, #tpu.memory_space<vmem>>, vector<2x128xbf16>
    tpu.vector_store %arg4[%c0_6, %c0_7], %8 {strides = array<i32>} : memref<2x128xbf16, #tpu.memory_space<vmem>>, vector<2x128xbf16>,
    return
  }
  func.func @transform_0(%arg0: i32) -> (i32, i32) {
    %c0_i32 = arith.constant 0 : i32
    %c0_i32_0 = arith.constant 0 : i32
    return %arg0, %c0_i32 : i32, i32
  }
  func.func @transform_1(%arg0: i32) -> (i32, i32) {
    %c0_i32 = arith.constant 0 : i32
    %c0_i32_0 = arith.constant 0 : i32
    %c0_i32_1 = arith.constant 0 : i32
    return %c0_i32, %c0_i32_0 : i32, i32
  }
  func.func @transform_2(%arg0: i32) -> (i32, i32) {
    %c0_i32 = arith.constant 0 : i32
    %c0_i32_0 = arith.constant 0 : i32
    %c0_i32_1 = arith.constant 0 : i32
    return %c0_i32, %c0_i32_0 : i32, i32
  }
  func.func @transform_3(%arg0: i32) -> (i32, i32) {
    %c0_i32 = arith.constant 0 : i32
    %c0_i32_0 = arith.constant 0 : i32
    return %arg0, %c0_i32 : i32, i32
  }
}

</mosaic_0001>

<llo_original>
// kernel: qnetwork_forward.4
$region0: #{qnetwork_forward.4}
  #allocation0 [shape = 'u32[]', space=smem, size = 0x4, offset = 0x4, fixed_abs, tag = 'smem constant byte address 0x4 - core index']
  #allocation1 [shape = 'u32[144,128]{1,0:T(1,128)}', space=vmem, size = 0x12000, scoped, tag = 'internal scratch']
  %s0 = inlined_call_operand.vmem [shape: bf16[128,256], index: 0, kind: input, shape index: {}]
  %s1 = inlined_call_operand.vmem [shape: bf16[256,128], index: 1, kind: input, shape index: {}]
  %s2 = inlined_call_operand.vmem [shape: f32[1,128], index: 2, kind: input, shape index: {}]
  %s3 = inlined_call_operand.vmem [shape: bf16[128,128], index: 3, kind: output, shape index: {}]
  %s4 = sld [smem:[#allocation0]]
  $region22: #{qnetwork_forward.4} parent=0
    _
  %s6 = ssub.s32 1, %s4
  %s7 = scalar_select 0, %s6, %s4
  // Predicated region
  $region2: #{qnetwork_forward.4} parent=0 // pred_check
    _
  $region3: #{qnetwork_forward.4} parent=0 // pred_check_branch
    %9 = sbr.rel (0) target = $region5
  $region4: #{qnetwork_forward.4} parent=0 // pred_region
    _
  $region5: #{qnetwork_forward.4} parent=0 // pred_fallthru
    _
  // Predicated region
  $region6: #{qnetwork_forward.4} parent=0 // pred_check
    _
  $region7: #{qnetwork_forward.4} parent=0 // pred_check_branch
    %11 = sbr.rel (0) target = $region9
  $region8: #{qnetwork_forward.4} parent=0 // pred_region
    _
  $region9: #{qnetwork_forward.4} parent=0 // pred_fallthru
    _
  // Predicated region
  $region10: #{qnetwork_forward.4} parent=0 // pred_check
    _
  $region11: #{qnetwork_forward.4} parent=0 // pred_check_branch
    %13 = sbr.rel (0) target = $region13
  $region12: #{qnetwork_forward.4} parent=0 // pred_region
    _
  $region13: #{qnetwork_forward.4} parent=0 // pred_fallthru
    _
  %v15 = vld [vmem:[%s0] sm:$0xff]
  %v16 = vld [vmem:[%s0 + $0x8] sm:$0xff]
  %v17 = vld [vmem:[%s0 + $0x10] sm:$0xff]
  %v18 = vld [vmem:[%s0 + $0x18] sm:$0xff]
  %v19 = vld [vmem:[%s0 + $0x20] sm:$0xff]
  %v20 = vld [vmem:[%s0 + $0x28] sm:$0xff]
  %v21 = vld [vmem:[%s0 + $0x30] sm:$0xff]
  %v22 = vld [vmem:[%s0 + $0x38] sm:$0xff]
  %v23 = vld [vmem:[%s0 + $0x40] sm:$0xff]
  %v24 = vld [vmem:[%s0 + $0x48] sm:$0xff]
  %v25 = vld [vmem:[%s0 + $0x50] sm:$0xff]
  %v26 = vld [vmem:[%s0 + $0x58] sm:$0xff]
  %v27 = vld [vmem:[%s0 + $0x60] sm:$0xff]
  %v28 = vld [vmem:[%s0 + $0x68] sm:$0xff]
  %v29 = vld [vmem:[%s0 + $0x70] sm:$0xff]
  %v30 = vld [vmem:[%s0 + $0x78] sm:$0xff]
  %v31 = vld [vmem:[%s1] sm:$0xf]
  %v32 = vld [vmem:[%s1 + $0x4] sm:$0xf]
  %v33 = vld [vmem:[%s1 + $0x8] sm:$0xf]
  %v34 = vld [vmem:[%s1 + $0xc] sm:$0xf]
  %v35 = vld [vmem:[%s1 + $0x10] sm:$0xf]
  %v36 = vld [vmem:[%s1 + $0x14] sm:$0xf]
  %v37 = vld [vmem:[%s1 + $0x18] sm:$0xf]
  %v38 = vld [vmem:[%s1 + $0x1c] sm:$0xf]
  %v39 = vld [vmem:[%s1 + $0x20] sm:$0xf]
  %v40 = vld [vmem:[%s1 + $0x24] sm:$0xf]
  %v41 = vld [vmem:[%s1 + $0x28] sm:$0xf]
  %v42 = vld [vmem:[%s1 + $0x2c] sm:$0xf]
  %v43 = vld [vmem:[%s1 + $0x30] sm:$0xf]
  %v44 = vld [vmem:[%s1 + $0x34] sm:$0xf]
  %v45 = vld [vmem:[%s1 + $0x38] sm:$0xf]
  %v46 = vld [vmem:[%s1 + $0x3c] sm:$0xf]
  %v47 = vld [vmem:[%s1 + $0x40] sm:$0xf]
  %v48 = vld [vmem:[%s1 + $0x44] sm:$0xf]
  %v49 = vld [vmem:[%s1 + $0x48] sm:$0xf]
  %v50 = vld [vmem:[%s1 + $0x4c] sm:$0xf]
  %v51 = vld [vmem:[%s1 + $0x50] sm:$0xf]
  %v52 = vld [vmem:[%s1 + $0x54] sm:$0xf]
  %v53 = vld [vmem:[%s1 + $0x58] sm:$0xf]
  %v54 = vld [vmem:[%s1 + $0x5c] sm:$0xf]
  %v55 = vld [vmem:[%s1 + $0x60] sm:$0xf]
  %v56 = vld [vmem:[%s1 + $0x64] sm:$0xf]
  %v57 = vld [vmem:[%s1 + $0x68] sm:$0xf]
  %v58 = vld [vmem:[%s1 + $0x6c] sm:$0xf]
  %v59 = vld [vmem:[%s1 + $0x70] sm:$0xf]
  %v60 = vld [vmem:[%s1 + $0x74] sm:$0xf]
  %v61 = vld [vmem:[%s1 + $0x78] sm:$0xf]
  %v62 = vld [vmem:[%s1 + $0x7c] sm:$0xf]
  %v63 = vld [vmem:[%s2] sm:$0x1]
  %v65 = vlaneseq
  %v66 = vshrl.u32 %v65, 7
  %v67 = vsub.s32 0, %v66
  %v68 = vrot.slane %v63, %v67
  %v86 = vunpack.c.l.b16 %v15
  %v87 = vunpack.c.h.b16 %v15
  %v88 = vunpack.c.l.b16 %v16
  %v89 = vunpack.c.h.b16 %v16
  %v90 = vunpack.c.l.b16 %v17
  %v91 = vunpack.c.h.b16 %v17
  %v92 = vunpack.c.l.b16 %v18
  %v93 = vunpack.c.h.b16 %v18
  %v94 = vunpack.c.l.b16 %v19
  %v95 = vunpack.c.h.b16 %v19
  %v96 = vunpack.c.l.b16 %v20
  %v97 = vunpack.c.h.b16 %v20
  %v98 = vunpack.c.l.b16 %v21
  %v99 = vunpack.c.h.b16 %v21
  %v100 = vunpack.c.l.b16 %v22
  %v101 = vunpack.c.h.b16 %v22
  %v102 = vunpack.c.l.b16 %v23
  %v103 = vunpack.c.h.b16 %v23
  %v104 = vunpack.c.l.b16 %v24
  %v105 = vunpack.c.h.b16 %v24
  %v106 = vunpack.c.l.b16 %v25
  %v107 = vunpack.c.h.b16 %v25
  %v108 = vunpack.c.l.b16 %v26
  %v109 = vunpack.c.h.b16 %v26
  %v110 = vunpack.c.l.b16 %v27
  %v111 = vunpack.c.h.b16 %v27
  %v112 = vunpack.c.l.b16 %v28
  %v113 = vunpack.c.h.b16 %v28
  %v114 = vunpack.c.l.b16 %v29
  %v115 = vunpack.c.h.b16 %v29
  %v116 = vunpack.c.l.b16 %v30
  %v117 = vunpack.c.h.b16 %v30
  %v118 = vpack.c.b16 %v88, %v86
  %v119 = vpack.c.b16 %v89, %v87
  %v120 = vpack.c.b16 %v92, %v90
  %v121 = vpack.c.b16 %v93, %v91
  %v122 = vpack.c.b16 %v96, %v94
  %v123 = vpack.c.b16 %v97, %v95
  %v124 = vpack.c.b16 %v100, %v98
  %v125 = vpack.c.b16 %v101, %v99
  %v126 = vpack.c.b16 %v104, %v102
  %v127 = vpack.c.b16 %v105, %v103
  %v128 = vpack.c.b16 %v108, %v106
  %v129 = vpack.c.b16 %v109, %v107
  %v130 = vpack.c.b16 %v112, %v110
  %v131 = vpack.c.b16 %v113, %v111
  %v132 = vpack.c.b16 %v116, %v114
  %v133 = vpack.c.b16 %v117, %v115
  %v182 = vunpack.c.l.b16 %v31
  %v183 = vunpack.c.l.b16 %v32
  %v184 = vunpack.c.l.b16 %v33
  %v185 = vunpack.c.l.b16 %v34
  %v186 = vunpack.c.l.b16 %v35
  %v187 = vunpack.c.l.b16 %v36
  %v188 = vunpack.c.l.b16 %v37
  %v189 = vunpack.c.l.b16 %v38
  %v190 = vunpack.c.l.b16 %v39
  %v191 = vunpack.c.l.b16 %v40
  %v192 = vunpack.c.l.b16 %v41
  %v193 = vunpack.c.l.b16 %v42
  %v194 = vunpack.c.l.b16 %v43
  %v195 = vunpack.c.l.b16 %v44
  %v196 = vunpack.c.l.b16 %v45
  %v197 = vunpack.c.l.b16 %v46
  %v198 = vunpack.c.l.b16 %v47
  %v199 = vunpack.c.l.b16 %v48
  %v200 = vunpack.c.l.b16 %v49
  %v201 = vunpack.c.l.b16 %v50
  %v202 = vunpack.c.l.b16 %v51
  %v203 = vunpack.c.l.b16 %v52
  %v204 = vunpack.c.l.b16 %v53
  %v205 = vunpack.c.l.b16 %v54
  %v206 = vunpack.c.l.b16 %v55
  %v207 = vunpack.c.l.b16 %v56
  %v208 = vunpack.c.l.b16 %v57
  %v209 = vunpack.c.l.b16 %v58
  %v210 = vunpack.c.l.b16 %v59
  %v211 = vunpack.c.l.b16 %v60
  %v212 = vunpack.c.l.b16 %v61
  %v213 = vunpack.c.l.b16 %v62
  %v214 = vpack.c.b16 %v183, %v182
  %v215 = vpack.c.b16 %v185, %v184
  %v216 = vpack.c.b16 %v187, %v186
  %v217 = vpack.c.b16 %v189, %v188
  %v218 = vpack.c.b16 %v191, %v190
  %v219 = vpack.c.b16 %v193, %v192
  %v220 = vpack.c.b16 %v195, %v194
  %v221 = vpack.c.b16 %v197, %v196
  %v222 = vpack.c.b16 %v199, %v198
  %v223 = vpack.c.b16 %v201, %v200
  %v224 = vpack.c.b16 %v203, %v202
  %v225 = vpack.c.b16 %v205, %v204
  %v226 = vpack.c.b16 %v207, %v206
  %v227 = vpack.c.b16 %v209, %v208
  %v228 = vpack.c.b16 %v211, %v210
  %v229 = vpack.c.b16 %v213, %v212
  %246 = vmatprep.subr.bf16.mxu0 0
  %247 = vmatpush1.bf16.msra.mxu0 %v214
  %248 = vmatprep.subr.bf16.mxu0 0
  %249 = vmatpush1.bf16.msra.mxu0 %v215
  %250 = vmatprep.subr.bf16.mxu0 0
  %251 = vmatpush1.bf16.msra.mxu0 %v216
  %252 = vmatprep.subr.bf16.mxu0 0
  %253 = vmatpush1.bf16.msra.mxu0 %v217
  %254 = vmatprep.subr.bf16.mxu0 0
  %255 = vmatpush1.bf16.msra.mxu0 %v218
  %256 = vmatprep.subr.bf16.mxu0 0
  %257 = vmatpush1.bf16.msra.mxu0 %v219
  %258 = vmatprep.subr.bf16.mxu0 0
  %259 = vmatpush1.bf16.msra.mxu0 %v220
  %260 = vmatprep.subr.bf16.mxu0 0
  %261 = vmatpush1.bf16.msra.mxu0 %v221
  %262 = vmatprep.subr.bf16.mxu0 0
  %263 = vmatpush1.bf16.msra.mxu0 %v222
  %264 = vmatprep.subr.bf16.mxu0 0
  %265 = vmatpush1.bf16.msra.mxu0 %v223
  %266 = vmatprep.subr.bf16.mxu0 0
  %267 = vmatpush1.bf16.msra.mxu0 %v224
  %268 = vmatprep.subr.bf16.mxu0 0
  %269 = vmatpush1.bf16.msra.mxu0 %v225
  %270 = vmatprep.subr.bf16.mxu0 0
  %271 = vmatpush1.bf16.msra.mxu0 %v226
  %272 = vmatprep.subr.bf16.mxu0 0
  %273 = vmatpush1.bf16.msra.mxu0 %v227
  %274 = vmatprep.subr.bf16.mxu0 0
  %275 = vmatpush1.bf16.msra.mxu0 %v228
  %276 = vmatprep.subr.bf16.mxu0 0
  %277 = vmatpush1.bf16.msra.mxu0 %v229
  %278 = vmatprep.mubr.bf16.mxu0 %v119
  %279 = vmatmul.mubr.bf16.gmra.mrb[0].mxu0 %v118
  %v280 = vpop.f32.mrb[0].mxu0
  %v281 = vadd.f32 %v68, %v280
  %v282 = vpop.f32.mrb[0].mxu0
  %v283 = vpop.f32.mrb[0].mxu0
  %v284 = vadd.f32 %v68, %v283
  %v285 = vpop.f32.mrb[0].mxu0
  %286 = vmatprep.mubr.bf16.mxu0 %v121
  %287 = vmatmul.mubr.bf16.gmra.mrb[0].mxu0 %v120
  %v288 = vpop.f32.mrb[0].mxu0
  %v289 = vadd.f32 %v68, %v288
  %v290 = vpop.f32.mrb[0].mxu0
  %v291 = vpop.f32.mrb[0].mxu0
  %v292 = vadd.f32 %v68, %v291
  %v293 = vpop.f32.mrb[0].mxu0
  %294 = vmatprep.mubr.bf16.mxu0 %v123
  %295 = vmatmul.mubr.bf16.gmra.mrb[0].mxu0 %v122
  %v296 = vpop.f32.mrb[0].mxu0
  %v297 = vadd.f32 %v68, %v296
  %v298 = vpop.f32.mrb[0].mxu0
  %v299 = vpop.f32.mrb[0].mxu0
  %v300 = vadd.f32 %v68, %v299
  %v301 = vpop.f32.mrb[0].mxu0
  %302 = vmatprep.mubr.bf16.mxu0 %v125
  %303 = vmatmul.mubr.bf16.gmra.mrb[0].mxu0 %v124
  %v304 = vpop.f32.mrb[0].mxu0
  %v305 = vadd.f32 %v68, %v304
  %v306 = vpop.f32.mrb[0].mxu0
  %v307 = vpop.f32.mrb[0].mxu0
  %v308 = vadd.f32 %v68, %v307
  %v309 = vpop.f32.mrb[0].mxu0
  %310 = vmatprep.mubr.bf16.mxu0 %v127
  %311 = vmatmul.mubr.bf16.gmra.mrb[0].mxu0 %v126
  %v312 = vpop.f32.mrb[0].mxu0
  %v313 = vadd.f32 %v68, %v312
  %v314 = vpop.f32.mrb[0].mxu0
  %v315 = vpop.f32.mrb[0].mxu0
  %v316 = vadd.f32 %v68, %v315
  %v317 = vpop.f32.mrb[0].mxu0
  %318 = vmatprep.mubr.bf16.mxu0 %v129
  %319 = vmatmul.mubr.bf16.gmra.mrb[0].mxu0 %v128
  %v320 = vpop.f32.mrb[0].mxu0
  %v321 = vadd.f32 %v68, %v320
  %v322 = vpop.f32.mrb[0].mxu0
  %v323 = vpop.f32.mrb[0].mxu0
  %v324 = vadd.f32 %v68, %v323
  %v325 = vpop.f32.mrb[0].mxu0
  %326 = vmatprep.mubr.bf16.mxu0 %v131
  %327 = vmatmul.mubr.bf16.gmra.mrb[0].mxu0 %v130
  %v328 = vpop.f32.mrb[0].mxu0
  %v329 = vadd.f32 %v68, %v328
  %v330 = vpop.f32.mrb[0].mxu0
  %v331 = vpop.f32.mrb[0].mxu0
  %v332 = vadd.f32 %v68, %v331
  %v333 = vpop.f32.mrb[0].mxu0
  %334 = vmatprep.mubr.bf16.mxu0 %v133
  %335 = vmatmul.mubr.bf16.gmra.mrb[0].mxu0 %v132
  %v336 = vpop.f32.mrb[0].mxu0
  %v337 = vadd.f32 %v68, %v336
  %v338 = vpop.f32.mrb[0].mxu0
  %v339 = vpop.f32.mrb[0].mxu0
  %v340 = vadd.f32 %v68, %v339
  %v341 = vpop.f32.mrb[0].mxu0
  %342 = vdwg.mxu0
  %v343 = vmax.f32 %v281, 0.0
  %v344 = vmax.f32 %v284, 0.0
  %v345 = vmax.f32 %v289, 0.0
  %v346 = vmax.f32 %v292, 0.0
  %v347 = vmax.f32 %v297, 0.0
  %v348 = vmax.f32 %v300, 0.0
  %v349 = vmax.f32 %v305, 0.0
  %v350 = vmax.f32 %v308, 0.0
  %v351 = vmax.f32 %v313, 0.0
  %v352 = vmax.f32 %v316, 0.0
  %v353 = vmax.f32 %v321, 0.0
  %v354 = vmax.f32 %v324, 0.0
  %v355 = vmax.f32 %v329, 0.0
  %v356 = vmax.f32 %v332, 0.0
  %v357 = vmax.f32 %v337, 0.0
  %v358 = vmax.f32 %v340, 0.0
  %v359 = vpack.c.bf16 %v344, %v343
  %v360 = vpack.c.bf16 %v346, %v345
  %v361 = vpack.c.bf16 %v348, %v347
  %v362 = vpack.c.bf16 %v350, %v349
  %v363 = vpack.c.bf16 %v352, %v351
  %v364 = vpack.c.bf16 %v354, %v353
  %v365 = vpack.c.bf16 %v356, %v355
  %v366 = vpack.c.bf16 %v358, %v357
  %v375 = vunpack.c.l.b16 %v359
  %v376 = vunpack.c.h.b16 %v359
  %v377 = vunpack.c.l.b16 %v360
  %v378 = vunpack.c.h.b16 %v360
  %v379 = vunpack.c.l.b16 %v361
  %v380 = vunpack.c.h.b16 %v361
  %v381 = vunpack.c.l.b16 %v362
  %v382 = vunpack.c.h.b16 %v362
  %v383 = vunpack.c.l.b16 %v363
  %v384 = vunpack.c.h.b16 %v363
  %v385 = vunpack.c.l.b16 %v364
  %v386 = vunpack.c.h.b16 %v364
  %v387 = vunpack.c.l.b16 %v365
  %v388 = vunpack.c.h.b16 %v365
  %v389 = vunpack.c.l.b16 %v366
  %v390 = vunpack.c.h.b16 %v366
  %v391 = vpack.c.b16 %v375, %v375
  %v392 = vpack.c.b16 %v376, %v376
  %v393 = vpack.c.b16 %v377, %v377
  %v394 = vpack.c.b16 %v378, %v378
  %v395 = vpack.c.b16 %v379, %v379
  %v396 = vpack.c.b16 %v380, %v380
  %v397 = vpack.c.b16 %v381, %v381
  %v398 = vpack.c.b16 %v382, %v382
  %v399 = vpack.c.b16 %v383, %v383
  %v400 = vpack.c.b16 %v384, %v384
  %v401 = vpack.c.b16 %v385, %v385
  %v402 = vpack.c.b16 %v386, %v386
  %v403 = vpack.c.b16 %v387, %v387
  %v404 = vpack.c.b16 %v388, %v388
  %v405 = vpack.c.b16 %v389, %v389
  %v406 = vpack.c.b16 %v390, %v390
  %423 = vst [vmem:[%s3] sm:$0xf] %v391
  %424 = vst [vmem:[%s3 + $0x4] sm:$0xf] %v392
  %425 = vst [vmem:[%s3 + $0x8] sm:$0xf] %v393
  %426 = vst [vmem:[%s3 + $0xc] sm:$0xf] %v394
  %427 = vst [vmem:[%s3 + $0x10] sm:$0xf] %v395
  %428 = vst [vmem:[%s3 + $0x14] sm:$0xf] %v396
  %429 = vst [vmem:[%s3 + $0x18] sm:$0xf] %v397
  %430 = vst [vmem:[%s3 + $0x1c] sm:$0xf] %v398
  %431 = vst [vmem:[%s3 + $0x20] sm:$0xf] %v399
  %432 = vst [vmem:[%s3 + $0x24] sm:$0xf] %v400
  %433 = vst [vmem:[%s3 + $0x28] sm:$0xf] %v401
  %434 = vst [vmem:[%s3 + $0x2c] sm:$0xf] %v402
  %435 = vst [vmem:[%s3 + $0x30] sm:$0xf] %v403
  %436 = vst [vmem:[%s3 + $0x34] sm:$0xf] %v404
  %437 = vst [vmem:[%s3 + $0x38] sm:$0xf] %v405
  %438 = vst [vmem:[%s3 + $0x3c] sm:$0xf] %v406
  // Predicated region
  $region14: #{qnetwork_forward.4} parent=0 // pred_check
    _
  $region15: #{qnetwork_forward.4} parent=0 // pred_check_branch
    %440 = sbr.rel (0) target = $region17
  $region16: #{qnetwork_forward.4} parent=0 // pred_region
    _
  $region17: #{qnetwork_forward.4} parent=0 // pred_fallthru
    _
  // Predicated region
  $region18: #{qnetwork_forward.4} parent=0 // pred_check
    _
  $region19: #{qnetwork_forward.4} parent=0 // pred_check_branch
    %442 = sbr.rel (0) target = $region21
  $region20: #{qnetwork_forward.4} parent=0 // pred_region
    _
  $region21: #{qnetwork_forward.4} parent=0 // pred_fallthru
    _

// kernel: qnetwork_forward.7
$region0: #{qnetwork_forward.7}
  #allocation0 [shape = 'u32[]', space=smem, size = 0x4, offset = 0x4, fixed_abs, tag = 'smem constant byte address 0x4 - core index']
  #allocation1 [shape = 'u32[144,128]{1,0:T(1,128)}', space=vmem, size = 0x12000, scoped, tag = 'internal scratch']
  %s0 = inlined_call_operand.vmem [shape: bf16[2,128], index: 0, kind: input, shape index: {}]
  %s1 = inlined_call_operand.vmem [shape: bf16[128,512], index: 1, kind: input, shape index: {}]
  %s2 = inlined_call_operand.vmem [shape: f32[1,512], index: 2, kind: input, shape index: {}]
  %s3 = inlined_call_operand.vmem [shape: bf16[512,128], index: 3, kind: input, shape index: {}]
  %s4 = inlined_call_operand.vmem [shape: f32[1,128], index: 4, kind: input, shape index: {}]
  %s5 = inlined_call_operand.hbm [shape: f32[2,128], index: 5, kind: output, shape index: {}]
  %s6 = sld [smem:[#allocation0]]
  $region30: #{qnetwork_forward.7} parent=0
    _
  %s8 = ssub.s32 1, %s6
  %s9 = scalar_select 0, %s8, %s6
  $region1: #{qnetwork_forward.7} parent=0
    #allocation2 [shape = 'u8[1024]{0}', space=vmem, size = 0x400, scoped, tag = 'output window, operand 0, single buffered']
    #allocation3 [shape = 's32[1]{0}', space=sflag, size = 0x4, scoped, tag = 'scoped memory for qnetwork_forward.7']
    %10 = vsyncpa [#allocation3], 0
    // Predicated region
    $region2: #{qnetwork_forward.7} parent=1 // pred_check
      _
    $region3: #{qnetwork_forward.7} parent=1 // pred_check_branch
      %12 = sbr.rel (0) target = $region5
    $region4: #{qnetwork_forward.7} parent=1 // pred_region
      _
    $region5: #{qnetwork_forward.7} parent=1 // pred_fallthru
      _
    // Predicated region
    $region6: #{qnetwork_forward.7} parent=1 // pred_check
      _
    $region7: #{qnetwork_forward.7} parent=1 // pred_check_branch
      %14 = sbr.rel (0) target = $region9
    $region8: #{qnetwork_forward.7} parent=1 // pred_region
      _
    $region9: #{qnetwork_forward.7} parent=1 // pred_fallthru
      _
    // Predicated region
    $region10: #{qnetwork_forward.7} parent=1 // pred_check
      _
    $region11: #{qnetwork_forward.7} parent=1 // pred_check_branch
      %16 = sbr.rel (0) target = $region13
    $region12: #{qnetwork_forward.7} parent=1 // pred_region
      _
    $region13: #{qnetwork_forward.7} parent=1 // pred_fallthru
      _
    // Predicated region
    $region14: #{qnetwork_forward.7} parent=1 // pred_check
      _
    $region15: #{qnetwork_forward.7} parent=1 // pred_check_branch
      %18 = sbr.rel (0) target = $region17
    $region16: #{qnetwork_forward.7} parent=1 // pred_region
      _
    $region17: #{qnetwork_forward.7} parent=1 // pred_fallthru
      _
    // Predicated region
    $region18: #{qnetwork_forward.7} parent=1 // pred_check
      _
    $region19: #{qnetwork_forward.7} parent=1 // pred_check_branch
      %20 = sbr.rel (0) target = $region21
    $region20: #{qnetwork_forward.7} parent=1 // pred_region
      _
    $region21: #{qnetwork_forward.7} parent=1 // pred_fallthru
      _
    %v22 = vld [vmem:[%s0] sm:$0x1]
    %v23 = vld [vmem:[%s1] sm:$0xff]
    %v24 = vld [vmem:[%s1 + $0x8] sm:$0xff]
    %v25 = vld [vmem:[%s1 + $0x10] sm:$0xff]
    %v26 = vld [vmem:[%s1 + $0x18] sm:$0xff]
    %v27 = vld [vmem:[%s1 + $0x20] sm:$0xff]
    %v28 = vld [vmem:[%s1 + $0x28] sm:$0xff]
    %v29 = vld [vmem:[%s1 + $0x30] sm:$0xff]
    %v30 = vld [vmem:[%s1 + $0x38] sm:$0xff]
    %v31 = vld [vmem:[%s1 + $0x40] sm:$0xff]
    %v32 = vld [vmem:[%s1 + $0x48] sm:$0xff]
    %v33 = vld [vmem:[%s1 + $0x50] sm:$0xff]
    %v34 = vld [vmem:[%s1 + $0x58] sm:$0xff]
    %v35 = vld [vmem:[%s1 + $0x60] sm:$0xff]
    %v36 = vld [vmem:[%s1 + $0x68] sm:$0xff]
    %v37 = vld [vmem:[%s1 + $0x70] sm:$0xff]
    %v38 = vld [vmem:[%s1 + $0x78] sm:$0xff]
    %v39 = vld [vmem:[%s1 + $0x80] sm:$0xff]
    %v40 = vld [vmem:[%s1 + $0x88] sm:$0xff]
    %v41 = vld [vmem:[%s1 + $0x90] sm:$0xff]
    %v42 = vld [vmem:[%s1 + $0x98] sm:$0xff]
    %v43 = vld [vmem:[%s1 + $0xa0] sm:$0xff]
    %v44 = vld [vmem:[%s1 + $0xa8] sm:$0xff]
    %v45 = vld [vmem:[%s1 + $0xb0] sm:$0xff]
    %v46 = vld [vmem:[%s1 + $0xb8] sm:$0xff]
    %v47 = vld [vmem:[%s1 + $0xc0] sm:$0xff]
    %v48 = vld [vmem:[%s1 + $0xc8] sm:$0xff]
    %v49 = vld [vmem:[%s1 + $0xd0] sm:$0xff]
    %v50 = vld [vmem:[%s1 + $0xd8] sm:$0xff]
    %v51 = vld [vmem:[%s1 + $0xe0] sm:$0xff]
    %v52 = vld [vmem:[%s1 + $0xe8] sm:$0xff]
    %v53 = vld [vmem:[%s1 + $0xf0] sm:$0xff]
    %v54 = vld [vmem:[%s1 + $0xf8] sm:$0xff]
    %v55 = vld [vmem:[%s2] sm:$0xf]
    %v57 = vlaneseq
    %v58 = vshrl.u32 %v57, 7
    %v59 = vsub.s32 0, %v58
    %v60 = vrot.slane %v55, %v59
    %v61 = vlaneseq
    %v62 = vshrl.u32 %v61, 7
    %v63 = vsub.s32 1, %v62
    %v64 = vrot.slane %v55, %v63
    %v65 = vlaneseq
    %v66 = vshrl.u32 %v65, 7
    %v67 = vsub.s32 2, %v66
    %v68 = vrot.slane %v55, %v67
    %v69 = vlaneseq
    %v70 = vshrl.u32 %v69, 7
    %v71 = vsub.s32 3, %v70
    %v72 = vrot.slane %v55, %v71
    %v109 = vunpack.c.l.b16 %v23
    %v110 = vunpack.c.h.b16 %v23
    %v111 = vunpack.c.l.b16 %v24
    %v112 = vunpack.c.h.b16 %v24
    %v113 = vunpack.c.l.b16 %v25
    %v114 = vunpack.c.h.b16 %v25
    %v115 = vunpack.c.l.b16 %v26
    %v116 = vunpack.c.h.b16 %v26
    %v117 = vunpack.c.l.b16 %v27
    %v118 = vunpack.c.h.b16 %v27
    %v119 = vunpack.c.l.b16 %v28
    %v120 = vunpack.c.h.b16 %v28
    %v121 = vunpack.c.l.b16 %v29
    %v122 = vunpack.c.h.b16 %v29
    %v123 = vunpack.c.l.b16 %v30
    %v124 = vunpack.c.h.b16 %v30
    %v125 = vunpack.c.l.b16 %v31
    %v126 = vunpack.c.h.b16 %v31
    %v127 = vunpack.c.l.b16 %v32
    %v128 = vunpack.c.h.b16 %v32
    %v129 = vunpack.c.l.b16 %v33
    %v130 = vunpack.c.h.b16 %v33
    %v131 = vunpack.c.l.b16 %v34
    %v132 = vunpack.c.h.b16 %v34
    %v133 = vunpack.c.l.b16 %v35
    %v134 = vunpack.c.h.b16 %v35
    %v135 = vunpack.c.l.b16 %v36
    %v136 = vunpack.c.h.b16 %v36
    %v137 = vunpack.c.l.b16 %v37
    %v138 = vunpack.c.h.b16 %v37
    %v139 = vunpack.c.l.b16 %v38
    %v140 = vunpack.c.h.b16 %v38
    %v141 = vunpack.c.l.b16 %v39
    %v142 = vunpack.c.h.b16 %v39
    %v143 = vunpack.c.l.b16 %v40
    %v144 = vunpack.c.h.b16 %v40
    %v145 = vunpack.c.l.b16 %v41
    %v146 = vunpack.c.h.b16 %v41
    %v147 = vunpack.c.l.b16 %v42
    %v148 = vunpack.c.h.b16 %v42
    %v149 = vunpack.c.l.b16 %v43
    %v150 = vunpack.c.h.b16 %v43
    %v151 = vunpack.c.l.b16 %v44
    %v152 = vunpack.c.h.b16 %v44
    %v153 = vunpack.c.l.b16 %v45
    %v154 = vunpack.c.h.b16 %v45
    %v155 = vunpack.c.l.b16 %v46
    %v156 = vunpack.c.h.b16 %v46
    %v157 = vunpack.c.l.b16 %v47
    %v158 = vunpack.c.h.b16 %v47
    %v159 = vunpack.c.l.b16 %v48
    %v160 = vunpack.c.h.b16 %v48
    %v161 = vunpack.c.l.b16 %v49
    %v162 = vunpack.c.h.b16 %v49
    %v163 = vunpack.c.l.b16 %v50
    %v164 = vunpack.c.h.b16 %v50
    %v165 = vunpack.c.l.b16 %v51
    %v166 = vunpack.c.h.b16 %v51
    %v167 = vunpack.c.l.b16 %v52
    %v168 = vunpack.c.h.b16 %v52
    %v169 = vunpack.c.l.b16 %v53
    %v170 = vunpack.c.h.b16 %v53
    %v171 = vunpack.c.l.b16 %v54
    %v172 = vunpack.c.h.b16 %v54
    %v173 = vpack.c.b16 %v113, %v109
    %v174 = vpack.c.b16 %v114, %v110
    %v175 = vpack.c.b16 %v115, %v111
    %v176 = vpack.c.b16 %v116, %v112
    %v177 = vpack.c.b16 %v121, %v117
    %v178 = vpack.c.b16 %v122, %v118
    %v179 = vpack.c.b16 %v123, %v119
    %v180 = vpack.c.b16 %v124, %v120
    %v181 = vpack.c.b16 %v129, %v125
    %v182 = vpack.c.b16 %v130, %v126
    %v183 = vpack.c.b16 %v131, %v127
    %v184 = vpack.c.b16 %v132, %v128
    %v185 = vpack.c.b16 %v137, %v133
    %v186 = vpack.c.b16 %v138, %v134
    %v187 = vpack.c.b16 %v139, %v135
    %v188 = vpack.c.b16 %v140, %v136
    %v189 = vpack.c.b16 %v145, %v141
    %v190 = vpack.c.b16 %v146, %v142
    %v191 = vpack.c.b16 %v147, %v143
    %v192 = vpack.c.b16 %v148, %v144
    %v193 = vpack.c.b16 %v153, %v149
    %v194 = vpack.c.b16 %v154, %v150
    %v195 = vpack.c.b16 %v155, %v151
    %v196 = vpack.c.b16 %v156, %v152
    %v197 = vpack.c.b16 %v161, %v157
    %v198 = vpack.c.b16 %v162, %v158
    %v199 = vpack.c.b16 %v163, %v159
    %v200 = vpack.c.b16 %v164, %v160
    %v201 = vpack.c.b16 %v169, %v165
    %v202 = vpack.c.b16 %v170, %v166
    %v203 = vpack.c.b16 %v171, %v167
    %v204 = vpack.c.b16 %v172, %v168
    %237 = vmatprep.subr.bf16.mxu0 %v174
    %238 = vmatpush1.bf16.msra.mxu0 %v173
    %239 = vmatprep.subr.bf16.mxu0 %v178
    %240 = vmatpush1.bf16.msra.mxu0 %v177
    %241 = vmatprep.subr.bf16.mxu0 %v182
    %242 = vmatpush1.bf16.msra.mxu0 %v181
    %243 = vmatprep.subr.bf16.mxu0 %v186
    %244 = vmatpush1.bf16.msra.mxu0 %v185
    %245 = vmatprep.subr.bf16.mxu0 %v190
    %246 = vmatpush1.bf16.msra.mxu0 %v189
    %247 = vmatprep.subr.bf16.mxu0 %v194
    %248 = vmatpush1.bf16.msra.mxu0 %v193
    %249 = vmatprep.subr.bf16.mxu0 %v198
    %250 = vmatpush1.bf16.msra.mxu0 %v197
    %251 = vmatprep.subr.bf16.mxu0 %v202
    %252 = vmatpush1.bf16.msra.mxu0 %v201
    %253 = vmatprep.subr.bf16.mxu0 0
    %254 = vmatpush1.bf16.msra.mxu0 0
    %255 = vmatprep.subr.bf16.mxu0 0
    %256 = vmatpush1.bf16.msra.mxu0 0
    %257 = vmatprep.subr.bf16.mxu0 0
    %258 = vmatpush1.bf16.msra.mxu0 0
    %259 = vmatprep.subr.bf16.mxu0 0
    %260 = vmatpush1.bf16.msra.mxu0 0
    %261 = vmatprep.subr.bf16.mxu0 0
    %262 = vmatpush1.bf16.msra.mxu0 0
    %263 = vmatprep.subr.bf16.mxu0 0
    %264 = vmatpush1.bf16.msra.mxu0 0
    %265 = vmatprep.subr.bf16.mxu0 0
    %266 = vmatpush1.bf16.msra.mxu0 0
    %267 = vmatprep.subr.bf16.mxu0 0
    %268 = vmatpush1.bf16.msra.mxu0 0
    %269 = vmatprep.mubr.bf16.mxu0 0
    %270 = vmatmul.mubr.bf16.gmra.mrb[0].mxu0 %v22
    %v271 = vpop.f32.mrb[0].mxu0
    %v272 = vadd.f32 %v60, %v271
    %v273 = vpop.f32.mrb[0].mxu0
    %v274 = vadd.f32 %v64, %v273
    %v275 = vpop.f32.mrb[0].mxu0
    %v276 = vpop.f32.mrb[0].mxu0
    %277 = vdwg.mxu0
    %278 = vmatprep.subr.bf16.mxu0 %v176
    %279 = vmatpush1.bf16.msra.mxu0 %v175
    %280 = vmatprep.subr.bf16.mxu0 %v180
    %281 = vmatpush1.bf16.msra.mxu0 %v179
    %282 = vmatprep.subr.bf16.mxu0 %v184
    %283 = vmatpush1.bf16.msra.mxu0 %v183
    %284 = vmatprep.subr.bf16.mxu0 %v188
    %285 = vmatpush1.bf16.msra.mxu0 %v187
    %286 = vmatprep.subr.bf16.mxu0 %v192
    %287 = vmatpush1.bf16.msra.mxu0 %v191
    %288 = vmatprep.subr.bf16.mxu0 %v196
    %289 = vmatpush1.bf16.msra.mxu0 %v195
    %290 = vmatprep.subr.bf16.mxu0 %v200
    %291 = vmatpush1.bf16.msra.mxu0 %v199
    %292 = vmatprep.subr.bf16.mxu0 %v204
    %293 = vmatpush1.bf16.msra.mxu0 %v203
    %294 = vmatprep.subr.bf16.mxu0 0
    %295 = vmatpush1.bf16.msra.mxu0 0
    %296 = vmatprep.subr.bf16.mxu0 0
    %297 = vmatpush1.bf16.msra.mxu0 0
    %298 = vmatprep.subr.bf16.mxu0 0
    %299 = vmatpush1.bf16.msra.mxu0 0
    %300 = vmatprep.subr.bf16.mxu0 0
    %301 = vmatpush1.bf16.msra.mxu0 0
    %302 = vmatprep.subr.bf16.mxu0 0
    %303 = vmatpush1.bf16.msra.mxu0 0
    %304 = vmatprep.subr.bf16.mxu0 0
    %305 = vmatpush1.bf16.msra.mxu0 0
    %306 = vmatprep.subr.bf16.mxu0 0
    %307 = vmatpush1.bf16.msra.mxu0 0
    %308 = vmatprep.subr.bf16.mxu0 0
    %309 = vmatpush1.bf16.msra.mxu0 0
    %310 = vmatprep.mubr.bf16.mxu0 0
    %311 = vmatmul.mubr.bf16.gmra.mrb[0].mxu0 %v22
    %v312 = vpop.f32.mrb[0].mxu0
    %v313 = vadd.f32 %v68, %v312
    %v314 = vpop.f32.mrb[0].mxu0
    %v315 = vadd.f32 %v72, %v314
    %v316 = vpop.f32.mrb[0].mxu0
    %v317 = vpop.f32.mrb[0].mxu0
    %318 = vdwg.mxu0
    %v319 = vmax.f32 %v272, 0.0
    %v320 = vmax.f32 %v274, 0.0
    %v321 = vmax.f32 %v313, 0.0
    %v322 = vmax.f32 %v315, 0.0
    %v323 = vpack.c.bf16 %v319, %v319
    %v324 = vpack.c.bf16 %v320, %v320
    %v325 = vpack.c.bf16 %v321, %v321
    %v326 = vpack.c.bf16 %v322, %v322
    %v327 = vld [vmem:[%s3] sm:$0xf]
    %v328 = vld [vmem:[%s3 + $0x4] sm:$0xf]
    %v329 = vld [vmem:[%s3 + $0x8] sm:$0xf]
    %v330 = vld [vmem:[%s3 + $0xc] sm:$0xf]
    %v331 = vld [vmem:[%s3 + $0x10] sm:$0xf]
    %v332 = vld [vmem:[%s3 + $0x14] sm:$0xf]
    %v333 = vld [vmem:[%s3 + $0x18] sm:$0xf]
    %v334 = vld [vmem:[%s3 + $0x1c] sm:$0xf]
    %v335 = vld [vmem:[%s3 + $0x20] sm:$0xf]
    %v336 = vld [vmem:[%s3 + $0x24] sm:$0xf]
    %v337 = vld [vmem:[%s3 + $0x28] sm:$0xf]
    %v338 = vld [vmem:[%s3 + $0x2c] sm:$0xf]
    %v339 = vld [vmem:[%s3 + $0x30] sm:$0xf]
    %v340 = vld [vmem:[%s3 + $0x34] sm:$0xf]
    %v341 = vld [vmem:[%s3 + $0x38] sm:$0xf]
    %v342 = vld [vmem:[%s3 + $0x3c] sm:$0xf]
    %v343 = vld [vmem:[%s3 + $0x40] sm:$0xf]
    %v344 = vld [vmem:[%s3 + $0x44] sm:$0xf]
    %v345 = vld [vmem:[%s3 + $0x48] sm:$0xf]
    %v346 = vld [vmem:[%s3 + $0x4c] sm:$0xf]
    %v347 = vld [vmem:[%s3 + $0x50] sm:$0xf]
    %v348 = vld [vmem:[%s3 + $0x54] sm:$0xf]
    %v349 = vld [vmem:[%s3 + $0x58] sm:$0xf]
    %v350 = vld [vmem:[%s3 + $0x5c] sm:$0xf]
    %v351 = vld [vmem:[%s3 + $0x60] sm:$0xf]
    %v352 = vld [vmem:[%s3 + $0x64] sm:$0xf]
    %v353 = vld [vmem:[%s3 + $0x68] sm:$0xf]
    %v354 = vld [vmem:[%s3 + $0x6c] sm:$0xf]
    %v355 = vld [vmem:[%s3 + $0x70] sm:$0xf]
    %v356 = vld [vmem:[%s3 + $0x74] sm:$0xf]
    %v357 = vld [vmem:[%s3 + $0x78] sm:$0xf]
    %v358 = vld [vmem:[%s3 + $0x7c] sm:$0xf]
    %v359 = vld [vmem:[%s3 + $0x80] sm:$0xf]
    %v360 = vld [vmem:[%s3 + $0x84] sm:$0xf]
    %v361 = vld [vmem:[%s3 + $0x88] sm:$0xf]
    %v362 = vld [vmem:[%s3 + $0x8c] sm:$0xf]
    %v363 = vld [vmem:[%s3 + $0x90] sm:$0xf]
    %v364 = vld [vmem:[%s3 + $0x94] sm:$0xf]
    %v365 = vld [vmem:[%s3 + $0x98] sm:$0xf]
    %v366 = vld [vmem:[%s3 + $0x9c] sm:$0xf]
    %v367 = vld [vmem:[%s3 + $0xa0] sm:$0xf]
    %v368 = vld [vmem:[%s3 + $0xa4] sm:$0xf]
    %v369 = vld [vmem:[%s3 + $0xa8] sm:$0xf]
    %v370 = vld [vmem:[%s3 + $0xac] sm:$0xf]
    %v371 = vld [vmem:[%s3 + $0xb0] sm:$0xf]
    %v372 = vld [vmem:[%s3 + $0xb4] sm:$0xf]
    %v373 = vld [vmem:[%s3 + $0xb8] sm:$0xf]
    %v374 = vld [vmem:[%s3 + $0xbc] sm:$0xf]
    %v375 = vld [vmem:[%s3 + $0xc0] sm:$0xf]
    %v376 = vld [vmem:[%s3 + $0xc4] sm:$0xf]
    %v377 = vld [vmem:[%s3 + $0xc8] sm:$0xf]
    %v378 = vld [vmem:[%s3 + $0xcc] sm:$0xf]
    %v379 = vld [vmem:[%s3 + $0xd0] sm:$0xf]
    %v380 = vld [vmem:[%s3 + $0xd4] sm:$0xf]
    %v381 = vld [vmem:[%s3 + $0xd8] sm:$0xf]
    %v382 = vld [vmem:[%s3 + $0xdc] sm:$0xf]
    %v383 = vld [vmem:[%s3 + $0xe0] sm:$0xf]
    %v384 = vld [vmem:[%s3 + $0xe4] sm:$0xf]
    %v385 = vld [vmem:[%s3 + $0xe8] sm:$0xf]
    %v386 = vld [vmem:[%s3 + $0xec] sm:$0xf]
    %v387 = vld [vmem:[%s3 + $0xf0] sm:$0xf]
    %v388 = vld [vmem:[%s3 + $0xf4] sm:$0xf]
    %v389 = vld [vmem:[%s3 + $0xf8] sm:$0xf]
    %v390 = vld [vmem:[%s3 + $0xfc] sm:$0xf]
    %v391 = vld [vmem:[%s4] sm:$0x1]
    %v393 = vlaneseq
    %v394 = vshrl.u32 %v393, 7
    %v395 = vsub.s32 0, %v394
    %v396 = vrot.slane %v391, %v395
    %v462 = vunpack.c.l.b16 %v327
    %v463 = vunpack.c.l.b16 %v328
    %v464 = vunpack.c.l.b16 %v329
    %v465 = vunpack.c.l.b16 %v330
    %v466 = vunpack.c.l.b16 %v331
    %v467 = vunpack.c.l.b16 %v332
    %v468 = vunpack.c.l.b16 %v333
    %v469 = vunpack.c.l.b16 %v334
    %v470 = vunpack.c.l.b16 %v335
    %v471 = vunpack.c.l.b16 %v336
    %v472 = vunpack.c.l.b16 %v337
    %v473 = vunpack.c.l.b16 %v338
    %v474 = vunpack.c.l.b16 %v339
    %v475 = vunpack.c.l.b16 %v340
    %v476 = vunpack.c.l.b16 %v341
    %v477 = vunpack.c.l.b16 %v342
    %v478 = vunpack.c.l.b16 %v343
    %v479 = vunpack.c.l.b16 %v344
    %v480 = vunpack.c.l.b16 %v345
    %v481 = vunpack.c.l.b16 %v346
    %v482 = vunpack.c.l.b16 %v347
    %v483 = vunpack.c.l.b16 %v348
    %v484 = vunpack.c.l.b16 %v349
    %v485 = vunpack.c.l.b16 %v350
    %v486 = vunpack.c.l.b16 %v351
    %v487 = vunpack.c.l.b16 %v352
    %v488 = vunpack.c.l.b16 %v353
    %v489 = vunpack.c.l.b16 %v354
    %v490 = vunpack.c.l.b16 %v355
    %v491 = vunpack.c.l.b16 %v356
    %v492 = vunpack.c.l.b16 %v357
    %v493 = vunpack.c.l.b16 %v358
    %v494 = vunpack.c.l.b16 %v359
    %v495 = vunpack.c.l.b16 %v360
    %v496 = vunpack.c.l.b16 %v361
    %v497 = vunpack.c.l.b16 %v362
    %v498 = vunpack.c.l.b16 %v363
    %v499 = vunpack.c.l.b16 %v364
    %v500 = vunpack.c.l.b16 %v365
    %v501 = vunpack.c.l.b16 %v366
    %v502 = vunpack.c.l.b16 %v367
    %v503 = vunpack.c.l.b16 %v368
    %v504 = vunpack.c.l.b16 %v369
    %v505 = vunpack.c.l.b16 %v370
    %v506 = vunpack.c.l.b16 %v371
    %v507 = vunpack.c.l.b16 %v372
    %v508 = vunpack.c.l.b16 %v373
    %v509 = vunpack.c.l.b16 %v374
    %v510 = vunpack.c.l.b16 %v375
    %v511 = vunpack.c.l.b16 %v376
    %v512 = vunpack.c.l.b16 %v377
    %v513 = vunpack.c.l.b16 %v378
    %v514 = vunpack.c.l.b16 %v379
    %v515 = vunpack.c.l.b16 %v380
    %v516 = vunpack.c.l.b16 %v381
    %v517 = vunpack.c.l.b16 %v382
    %v518 = vunpack.c.l.b16 %v383
    %v519 = vunpack.c.l.b16 %v384
    %v520 = vunpack.c.l.b16 %v385
    %v521 = vunpack.c.l.b16 %v386
    %v522 = vunpack.c.l.b16 %v387
    %v523 = vunpack.c.l.b16 %v388
    %v524 = vunpack.c.l.b16 %v389
    %v525 = vunpack.c.l.b16 %v390
    %v526 = vpack.c.b16 %v463, %v462
    %v527 = vpack.c.b16 %v465, %v464
    %v528 = vpack.c.b16 %v467, %v466
    %v529 = vpack.c.b16 %v469, %v468
    %v530 = vpack.c.b16 %v471, %v470
    %v531 = vpack.c.b16 %v473, %v472
    %v532 = vpack.c.b16 %v475, %v474
    %v533 = vpack.c.b16 %v477, %v476
    %v534 = vpack.c.b16 %v479, %v478
    %v535 = vpack.c.b16 %v481, %v480
    %v536 = vpack.c.b16 %v483, %v482
    %v537 = vpack.c.b16 %v485, %v484
    %v538 = vpack.c.b16 %v487, %v486
    %v539 = vpack.c.b16 %v489, %v488
    %v540 = vpack.c.b16 %v491, %v490
    %v541 = vpack.c.b16 %v493, %v492
    %v542 = vpack.c.b16 %v495, %v494
    %v543 = vpack.c.b16 %v497, %v496
    %v544 = vpack.c.b16 %v499, %v498
    %v545 = vpack.c.b16 %v501, %v500
    %v546 = vpack.c.b16 %v503, %v502
    %v547 = vpack.c.b16 %v505, %v504
    %v548 = vpack.c.b16 %v507, %v506
    %v549 = vpack.c.b16 %v509, %v508
    %v550 = vpack.c.b16 %v511, %v510
    %v551 = vpack.c.b16 %v513, %v512
    %v552 = vpack.c.b16 %v515, %v514
    %v553 = vpack.c.b16 %v517, %v516
    %v554 = vpack.c.b16 %v519, %v518
    %v555 = vpack.c.b16 %v521, %v520
    %v556 = vpack.c.b16 %v523, %v522
    %v557 = vpack.c.b16 %v525, %v524
    %590 = vmatprep.subr.bf16.mxu0 0
    %591 = vmatpush1.bf16.msra.mxu0 %v526
    %592 = vmatprep.subr.bf16.mxu0 0
    %593 = vmatpush1.bf16.msra.mxu0 %v527
    %594 = vmatprep.subr.bf16.mxu0 0
    %595 = vmatpush1.bf16.msra.mxu0 %v528
    %596 = vmatprep.subr.bf16.mxu0 0
    %597 = vmatpush1.bf16.msra.mxu0 %v529
    %598 = vmatprep.subr.bf16.mxu0 0
    %599 = vmatpush1.bf16.msra.mxu0 %v530
    %600 = vmatprep.subr.bf16.mxu0 0
    %601 = vmatpush1.bf16.msra.mxu0 %v531
    %602 = vmatprep.subr.bf16.mxu0 0
    %603 = vmatpush1.bf16.msra.mxu0 %v532
    %604 = vmatprep.subr.bf16.mxu0 0
    %605 = vmatpush1.bf16.msra.mxu0 %v533
    %606 = vmatprep.subr.bf16.mxu0 0
    %607 = vmatpush1.bf16.msra.mxu0 %v534
    %608 = vmatprep.subr.bf16.mxu0 0
    %609 = vmatpush1.bf16.msra.mxu0 %v535
    %610 = vmatprep.subr.bf16.mxu0 0
    %611 = vmatpush1.bf16.msra.mxu0 %v536
    %612 = vmatprep.subr.bf16.mxu0 0
    %613 = vmatpush1.bf16.msra.mxu0 %v537
    %614 = vmatprep.subr.bf16.mxu0 0
    %615 = vmatpush1.bf16.msra.mxu0 %v538
    %616 = vmatprep.subr.bf16.mxu0 0
    %617 = vmatpush1.bf16.msra.mxu0 %v539
    %618 = vmatprep.subr.bf16.mxu0 0
    %619 = vmatpush1.bf16.msra.mxu0 %v540
    %620 = vmatprep.subr.bf16.mxu0 0
    %621 = vmatpush1.bf16.msra.mxu0 %v541
    %622 = vmatprep.mubr.bf16.mxu0 %v324
    %623 = vmatmul.mubr.bf16.gmra.mrb[0].mxu0 %v323
    %v624 = vpop.f32.mrb[0].mxu0
    %v625 = vadd.f32 %v396, %v624
    %v626 = vpop.f32.mrb[0].mxu0
    %v627 = vpop.f32.mrb[0].mxu0
    %v628 = vpop.f32.mrb[0].mxu0
    %629 = vdwg.mxu0
    %630 = vmatprep.subr.bf16.mxu0 0
    %631 = vmatpush1.bf16.msra.mxu0 %v542
    %632 = vmatprep.subr.bf16.mxu0 0
    %633 = vmatpush1.bf16.msra.mxu0 %v543
    %634 = vmatprep.subr.bf16.mxu0 0
    %635 = vmatpush1.bf16.msra.mxu0 %v544
    %636 = vmatprep.subr.bf16.mxu0 0
    %637 = vmatpush1.bf16.msra.mxu0 %v545
    %638 = vmatprep.subr.bf16.mxu0 0
    %639 = vmatpush1.bf16.msra.mxu0 %v546
    %640 = vmatprep.subr.bf16.mxu0 0
    %641 = vmatpush1.bf16.msra.mxu0 %v547
    %642 = vmatprep.subr.bf16.mxu0 0
    %643 = vmatpush1.bf16.msra.mxu0 %v548
    %644 = vmatprep.subr.bf16.mxu0 0
    %645 = vmatpush1.bf16.msra.mxu0 %v549
    %646 = vmatprep.subr.bf16.mxu0 0
    %647 = vmatpush1.bf16.msra.mxu0 %v550
    %648 = vmatprep.subr.bf16.mxu0 0
    %649 = vmatpush1.bf16.msra.mxu0 %v551
    %650 = vmatprep.subr.bf16.mxu0 0
    %651 = vmatpush1.bf16.msra.mxu0 %v552
    %652 = vmatprep.subr.bf16.mxu0 0
    %653 = vmatpush1.bf16.msra.mxu0 %v553
    %654 = vmatprep.subr.bf16.mxu0 0
    %655 = vmatpush1.bf16.msra.mxu0 %v554
    %656 = vmatprep.subr.bf16.mxu0 0
    %657 = vmatpush1.bf16.msra.mxu0 %v555
    %658 = vmatprep.subr.bf16.mxu0 0
    %659 = vmatpush1.bf16.msra.mxu0 %v556
    %660 = vmatprep.subr.bf16.mxu0 0
    %661 = vmatpush1.bf16.msra.mxu0 %v557
    %662 = vmatprep.mubr.bf16.mxu0 %v326
    %663 = vmatmul.mubr.bf16.gmra.mrb[0].mxu0 %v325
    %v664 = vpop.f32.mrb[0].mxu0
    %v665 = vadd.f32 %v625, %v664
    %v666 = vpop.f32.mrb[0].mxu0
    %v667 = vpop.f32.mrb[0].mxu0
    %v668 = vpop.f32.mrb[0].mxu0
    %669 = vdwg.mxu0
    %670 = vst [vmem:[#allocation2] sm:$0x3] %v665
    // Predicated region
    $region22: #{qnetwork_forward.7} parent=1 // pred_check
      _
    $region23: #{qnetwork_forward.7} parent=1 // pred_check_branch
      %672 = sbr.rel (0) target = $region25
    $region24: #{qnetwork_forward.7} parent=1 // pred_region
      %s674 = ssub.s32 32, 32
      %675 = vsyncadd [#allocation3], %s674
      %s677 = sshll.u32 [#allocation2], 4
      %s678 = int_to_ptr.vmem [resolvable:$true] %s677
      %680 = dma.vmem_to_hbm [thread:$0]  %s678, 32, %s5, [#allocation3]
    $region25: #{qnetwork_forward.7} parent=1 // pred_fallthru
      _
    // Predicated region
    $region26: #{qnetwork_forward.7} parent=1 // pred_check
      _
    $region27: #{qnetwork_forward.7} parent=1 // pred_check_branch
      %682 = sbr.rel (0) target = $region29
    $region28: #{qnetwork_forward.7} parent=1 // pred_region
      %683 = dma.done [#allocation3], 32
    $region29: #{qnetwork_forward.7} parent=1 // pred_fallthru
      _
    %684 = vsyncpa [#allocation3], 1

// kernel: qnetwork_forward.5
$region0: #{qnetwork_forward.5}
  #allocation0 [shape = 'u32[]', space=smem, size = 0x4, offset = 0x4, fixed_abs, tag = 'smem constant byte address 0x4 - core index']
  #allocation1 [shape = 'u32[144,128]{1,0:T(1,128)}', space=vmem, size = 0x12000, scoped, tag = 'internal scratch']
  %s0 = inlined_call_operand.vmem [shape: bf16[18,2048], index: 0, kind: input, shape index: {}]
  %s1 = inlined_call_operand.vmem [shape: bf16[2048,128], index: 1, kind: input, shape index: {}]
  %s2 = inlined_call_operand.vmem [shape: f32[1,128], index: 2, kind: input, shape index: {}]
  %s3 = inlined_call_operand.vmem [shape: bf16[18,128], index: 3, kind: output, shape index: {}]
  %s4 = sld [smem:[#allocation0]]
  $region22: #{qnetwork_forward.5} parent=0
    _
  %s6 = ssub.s32 1, %s4
  %s7 = scalar_select 0, %s6, %s4
  // Predicated region
  $region2: #{qnetwork_forward.5} parent=0 // pred_check
    _
  $region3: #{qnetwork_forward.5} parent=0 // pred_check_branch
    %9 = sbr.rel (0) target = $region5
  $region4: #{qnetwork_forward.5} parent=0 // pred_region
    _
  $region5: #{qnetwork_forward.5} parent=0 // pred_fallthru
    _
  // Predicated region
  $region6: #{qnetwork_forward.5} parent=0 // pred_check
    _
  $region7: #{qnetwork_forward.5} parent=0 // pred_check_branch
    %11 = sbr.rel (0) target = $region9
  $region8: #{qnetwork_forward.5} parent=0 // pred_region
    _
  $region9: #{qnetwork_forward.5} parent=0 // pred_fallthru
    _
  // Predicated region
  $region10: #{qnetwork_forward.5} parent=0 // pred_check
    _
  $region11: #{qnetwork_forward.5} parent=0 // pred_check_branch
    %13 = sbr.rel (0) target = $region13
  $region12: #{qnetwork_forward.5} parent=0 // pred_region
    _
  $region13: #{qnetwork_forward.5} parent=0 // pred_fallthru
    _
  %v15 = vld [vmem:[%s0] sm:$0xff]
  %v16 = vld [vmem:[%s0 + $0x8] sm:$0xff]
  %v17 = vld [vmem:[%s0 + $0x10] sm:$0xff]
  %v18 = vld [vmem:[%s0 + $0x18] sm:$0xff]
  %v19 = vld [vmem:[%s0 + $0x20] sm:$0xff]
  %v20 = vld [vmem:[%s0 + $0x28] sm:$0xff]
  %v21 = vld [vmem:[%s0 + $0x30] sm:$0xff]
  %v22 = vld [vmem:[%s0 + $0x38] sm:$0xff]
  %v23 = vld [vmem:[%s0 + $0x40] sm:$0xff]
  %v24 = vld [vmem:[%s0 + $0x48] sm:$0xff]
  %v25 = vld [vmem:[%s0 + $0x50] sm:$0xff]
  %v26 = vld [vmem:[%s0 + $0x58] sm:$0xff]
  %v27 = vld [vmem:[%s0 + $0x60] sm:$0xff]
  %v28 = vld [vmem:[%s0 + $0x68] sm:$0xff]
  %v29 = vld [vmem:[%s0 + $0x70] sm:$0xff]
  %v30 = vld [vmem:[%s0 + $0x78] sm:$0xff]
  %v31 = vld [vmem:[%s0 + $0x80] sm:$0x11]
  %v32 = vld [vmem:[%s0 + $0x88] sm:$0x11]
  %v33 = vld [vmem:[%s0 + $0x90] sm:$0x11]
  %v34 = vld [vmem:[%s0 + $0x98] sm:$0x11]
  %v35 = vld [vmem:[%s0 + $0xa0] sm:$0x11]
  %v36 = vld [vmem:[%s0 + $0xa8] sm:$0x11]
  %v37 = vld [vmem:[%s0 + $0xb0] sm:$0x11]
  %v38 = vld [vmem:[%s0 + $0xb8] sm:$0x11]
  %v39 = vld [vmem:[%s1] sm:$0xf]
  %v40 = vld [vmem:[%s1 + $0x4] sm:$0xf]
  %v41 = vld [vmem:[%s1 + $0x8] sm:$0xf]
  %v42 = vld [vmem:[%s1 + $0xc] sm:$0xf]
  %v43 = vld [vmem:[%s1 + $0x10] sm:$0xf]
  %v44 = vld [vmem:[%s1 + $0x14] sm:$0xf]
  %v45 = vld [vmem:[%s1 + $0x18] sm:$0xf]
  %v46 = vld [vmem:[%s1 + $0x1c] sm:$0xf]
  %v47 = vld [vmem:[%s1 + $0x20] sm:$0xf]
  %v48 = vld [vmem:[%s1 + $0x24] sm:$0xf]
  %v49 = vld [vmem:[%s1 + $0x28] sm:$0xf]
  %v50 = vld [vmem:[%s1 + $0x2c] sm:$0xf]
  %v51 = vld [vmem:[%s1 + $0x30] sm:$0xf]
  %v52 = vld [vmem:[%s1 + $0x34] sm:$0xf]
  %v53 = vld [vmem:[%s1 + $0x38] sm:$0xf]
  %v54 = vld [vmem:[%s1 + $0x3c] sm:$0xf]
  %v55 = vld [vmem:[%s1 + $0x40] sm:$0xf]
  %v56 = vld [vmem:[%s1 + $0x44] sm:$0xf]
  %v57 = vld [vmem:[%s1 + $0x48] sm:$0xf]
  %v58 = vld [vmem:[%s1 + $0x4c] sm:$0xf]
  %v59 = vld [vmem:[%s1 + $0x50] sm:$0xf]
  %v60 = vld [vmem:[%s1 + $0x54] sm:$0xf]
  %v61 = vld [vmem:[%s1 + $0x58] sm:$0xf]
  %v62 = vld [vmem:[%s1 + $0x5c] sm:$0xf]
  %v63 = vld [vmem:[%s1 + $0x60] sm:$0xf]
  %v64 = vld [vmem:[%s1 + $0x64] sm:$0xf]
  %v65 = vld [vmem:[%s1 + $0x68] sm:$0xf]
  %v66 = vld [vmem:[%s1 + $0x6c] sm:$0xf]
  %v67 = vld [vmem:[%s1 + $0x70] sm:$0xf]
  %v68 = vld [vmem:[%s1 + $0x74] sm:$0xf]
  %v69 = vld [vmem:[%s1 + $0x78] sm:$0xf]
  %v70 = vld [vmem:[%s1 + $0x7c] sm:$0xf]
  %v71 = vld [vmem:[%s1 + $0x80] sm:$0xf]
  %v72 = vld [vmem:[%s1 + $0x84] sm:$0xf]
  %v73 = vld [vmem:[%s1 + $0x88] sm:$0xf]
  %v74 = vld [vmem:[%s1 + $0x8c] sm:$0xf]
  %v75 = vld [vmem:[%s1 + $0x90] sm:$0xf]
  %v76 = vld [vmem:[%s1 + $0x94] sm:$0xf]
  %v77 = vld [vmem:[%s1 + $0x98] sm:$0xf]
  %v78 = vld [vmem:[%s1 + $0x9c] sm:$0xf]
  %v79 = vld [vmem:[%s1 + $0xa0] sm:$0xf]
  %v80 = vld [vmem:[%s1 + $0xa4] sm:$0xf]
  %v81 = vld [vmem:[%s1 + $0xa8] sm:$0xf]
  %v82 = vld [vmem:[%s1 + $0xac] sm:$0xf]
  %v83 = vld [vmem:[%s1 + $0xb0] sm:$0xf]
  %v84 = vld [vmem:[%s1 + $0xb4] sm:$0xf]
  %v85 = vld [vmem:[%s1 + $0xb8] sm:$0xf]
  %v86 = vld [vmem:[%s1 + $0xbc] sm:$0xf]
  %v87 = vld [vmem:[%s1 + $0xc0] sm:$0xf]
  %v88 = vld [vmem:[%s1 + $0xc4] sm:$0xf]
  %v89 = vld [vmem:[%s1 + $0xc8] sm:$0xf]
  %v90 = vld [vmem:[%s1 + $0xcc] sm:$0xf]
  %v91 = vld [vmem:[%s1 + $0xd0] sm:$0xf]
  %v92 = vld [vmem:[%s1 + $0xd4] sm:$0xf]
  %v93 = vld [vmem:[%s1 + $0xd8] sm:$0xf]
  %v94 = vld [vmem:[%s1 + $0xdc] sm:$0xf]
  %v95 = vld [vmem:[%s1 + $0xe0] sm:$0xf]
  %v96 = vld [vmem:[%s1 + $0xe4] sm:$0xf]
  %v97 = vld [vmem:[%s1 + $0xe8] sm:$0xf]
  %v98 = vld [vmem:[%s1 + $0xec] sm:$0xf]
  %v99 = vld [vmem:[%s1 + $0xf0] sm:$0xf]
  %v100 = vld [vmem:[%s1 + $0xf4] sm:$0xf]
  %v101 = vld [vmem:[%s1 + $0xf8] sm:$0xf]
  %v102 = vld [vmem:[%s1 + $0xfc] sm:$0xf]
  %v103 = vld [vmem:[%s1 + $0x100] sm:$0xf]
  %v104 = vld [vmem:[%s1 + $0x104] sm:$0xf]
  %v105 = vld [vmem:[%s1 + $0x108] sm:$0xf]
  %v106 = vld [vmem:[%s1 + $0x10c] sm:$0xf]
  %v107 = vld [vmem:[%s1 + $0x110] sm:$0xf]
  %v108 = vld [vmem:[%s1 + $0x114] sm:$0xf]
  %v109 = vld [vmem:[%s1 + $0x118] sm:$0xf]
  %v110 = vld [vmem:[%s1 + $0x11c] sm:$0xf]
  %v111 = vld [vmem:[%s1 + $0x120] sm:$0xf]
  %v112 = vld [vmem:[%s1 + $0x124] sm:$0xf]
  %v113 = vld [vmem:[%s1 + $0x128] sm:$0xf]
  %v114 = vld [vmem:[%s1 + $0x12c] sm:$0xf]
  %v115 = vld [vmem:[%s1 + $0x130] sm:$0xf]
  %v116 = vld [vmem:[%s1 + $0x134] sm:$0xf]
  %v117 = vld [vmem:[%s1 + $0x138] sm:$0xf]
  %v118 = vld [vmem:[%s1 + $0x13c] sm:$0xf]
  %v119 = vld [vmem:[%s1 + $0x140] sm:$0xf]
  %v120 = vld [vmem:[%s1 + $0x144] sm:$0xf]
  %v121 = vld [vmem:[%s1 + $0x148] sm:$0xf]
  %v122 = vld [vmem:[%s1 + $0x14c] sm:$0xf]
  %v123 = vld [vmem:[%s1 + $0x150] sm:$0xf]
  %v124 = vld [vmem:[%s1 + $0x154] sm:$0xf]
  %v125 = vld [vmem:[%s1 + $0x158] sm:$0xf]
  %v126 = vld [vmem:[%s1 + $0x15c] sm:$0xf]
  %v127 = vld [vmem:[%s1 + $0x160] sm:$0xf]
  %v128 = vld [vmem:[%s1 + $0x164] sm:$0xf]
  %v129 = vld [vmem:[%s1 + $0x168] sm:$0xf]
  %v130 = vld [vmem:[%s1 + $0x16c] sm:$0xf]
  %v131 = vld [vmem:[%s1 + $0x170] sm:$0xf]
  %v132 = vld [vmem:[%s1 + $0x174] sm:$0xf]
  %v133 = vld [vmem:[%s1 + $0x178] sm:$0xf]
  %v134 = vld [vmem:[%s1 + $0x17c] sm:$0xf]
  %v135 = vld [vmem:[%s1 + $0x180] sm:$0xf]
  %v136 = vld [vmem:[%s1 + $0x184] sm:$0xf]
  %v137 = vld [vmem:[%s1 + $0x188] sm:$0xf]
  %v138 = vld [vmem:[%s1 + $0x18c] sm:$0xf]
  %v139 = vld [vmem:[%s1 + $0x190] sm:$0xf]
  %v140 = vld [vmem:[%s1 + $0x194] sm:$0xf]
  %v141 = vld [vmem:[%s1 + $0x198] sm:$0xf]
  %v142 = vld [vmem:[%s1 + $0x19c] sm:$0xf]
  %v143 = vld [vmem:[%s1 + $0x1a0] sm:$0xf]
  %v144 = vld [vmem:[%s1 + $0x1a4] sm:$0xf]
  %v145 = vld [vmem:[%s1 + $0x1a8] sm:$0xf]
  %v146 = vld [vmem:[%s1 + $0x1ac] sm:$0xf]
  %v147 = vld [vmem:[%s1 + $0x1b0] sm:$0xf]
  %v148 = vld [vmem:[%s1 + $0x1b4] sm:$0xf]
  %v149 = vld [vmem:[%s1 + $0x1b8] sm:$0xf]
  %v150 = vld [vmem:[%s1 + $0x1bc] sm:$0xf]
  %v151 = vld [vmem:[%s1 + $0x1c0] sm:$0xf]
  %v152 = vld [vmem:[%s1 + $0x1c4] sm:$0xf]
  %v153 = vld [vmem:[%s1 + $0x1c8] sm:$0xf]
  %v154 = vld [vmem:[%s1 + $0x1cc] sm:$0xf]
  %v155 = vld [vmem:[%s1 + $0x1d0] sm:$0xf]
  %v156 = vld [vmem:[%s1 + $0x1d4] sm:$0xf]
  %v157 = vld [vmem:[%s1 + $0x1d8] sm:$0xf]
  %v158 = vld [vmem:[%s1 + $0x1dc] sm:$0xf]
  %v159 = vld [vmem:[%s1 + $0x1e0] sm:$0xf]
  %v160 = vld [vmem:[%s1 + $0x1e4] sm:$0xf]
  %v161 = vld [vmem:[%s1 + $0x1e8] sm:$0xf]
  %v162 = vld [vmem:[%s1 + $0x1ec] sm:$0xf]
  %v163 = vld [vmem:[%s1 + $0x1f0] sm:$0xf]
  %v164 = vld [vmem:[%s1 + $0x1f4] sm:$0xf]
  %v165 = vld [vmem:[%s1 + $0x1f8] sm:$0xf]
  %v166 = vld [vmem:[%s1 + $0x1fc] sm:$0xf]
  %v167 = vld [vmem:[%s1 + $0x200] sm:$0xf]
  %v168 = vld [vmem:[%s1 + $0x204] sm:$0xf]
  %v169 = vld [vmem:[%s1 + $0x208] sm:$0xf]
  %v170 = vld [vmem:[%s1 + $0x20c] sm:$0xf]
  %v171 = vld [vmem:[%s1 + $0x210] sm:$0xf]
  %v172 = vld [vmem:[%s1 + $0x214] sm:$0xf]
  %v173 = vld [vmem:[%s1 + $0x218] sm:$0xf]
  %v174 = vld [vmem:[%s1 + $0x21c] sm:$0xf]
  %v175 = vld [vmem:[%s1 + $0x220] sm:$0xf]
  %v176 = vld [vmem:[%s1 + $0x224] sm:$0xf]
  %v177 = vld [vmem:[%s1 + $0x228] sm:$0xf]
  %v178 = vld [vmem:[%s1 + $0x22c] sm:$0xf]
  %v179 = vld [vmem:[%s1 + $0x230] sm:$0xf]
  %v180 = vld [vmem:[%s1 + $0x234] sm:$0xf]
  %v181 = vld [vmem:[%s1 + $0x238] sm:$0xf]
  %v182 = vld [vmem:[%s1 + $0x23c] sm:$0xf]
  %v183 = vld [vmem:[%s1 + $0x240] sm:$0xf]
  %v184 = vld [vmem:[%s1 + $0x244] sm:$0xf]
  %v185 = vld [vmem:[%s1 + $0x248] sm:$0xf]
  %v186 = vld [vmem:[%s1 + $0x24c] sm:$0xf]
  %v187 = vld [vmem:[%s1 + $0x250] sm:$0xf]
  %v188 = vld [vmem:[%s1 + $0x254] sm:$0xf]
  %v189 = vld [vmem:[%s1 + $0x258] sm:$0xf]
  %v190 = vld [vmem:[%s1 + $0x25c] sm:$0xf]
  %v191 = vld [vmem:[%s1 + $0x260] sm:$0xf]
  %v192 = vld [vmem:[%s1 + $0x264] sm:$0xf]
  %v193 = vld [vmem:[%s1 + $0x268] sm:$0xf]
  %v194 = vld [vmem:[%s1 + $0x26c] sm:$0xf]
  %v195 = vld [vmem:[%s1 + $0x270] sm:$0xf]
  %v196 = vld [vmem:[%s1 + $0x274] sm:$0xf]
  %v197 = vld [vmem:[%s1 + $0x278] sm:$0xf]
  %v198 = vld [vmem:[%s1 + $0x27c] sm:$0xf]
  %v199 = vld [vmem:[%s1 + $0x280] sm:$0xf]
  %v200 = vld [vmem:[%s1 + $0x284] sm:$0xf]
  %v201 = vld [vmem:[%s1 + $0x288] sm:$0xf]
  %v202 = vld [vmem:[%s1 + $0x28c] sm:$0xf]
  %v203 = vld [vmem:[%s1 + $0x290] sm:$0xf]
  %v204 = vld [vmem:[%s1 + $0x294] sm:$0xf]
  %v205 = vld [vmem:[%s1 + $0x298] sm:$0xf]
  %v206 = vld [vmem:[%s1 + $0x29c] sm:$0xf]
  %v207 = vld [vmem:[%s1 + $0x2a0] sm:$0xf]
  %v208 = vld [vmem:[%s1 + $0x2a4] sm:$0xf]
  %v209 = vld [vmem:[%s1 + $0x2a8] sm:$0xf]
  %v210 = vld [vmem:[%s1 + $0x2ac] sm:$0xf]
  %v211 = vld [vmem:[%s1 + $0x2b0] sm:$0xf]
  %v212 = vld [vmem:[%s1 + $0x2b4] sm:$0xf]
  %v213 = vld [vmem:[%s1 + $0x2b8] sm:$0xf]
  %v214 = vld [vmem:[%s1 + $0x2bc] sm:$0xf]
  %v215 = vld [vmem:[%s1 + $0x2c0] sm:$0xf]
  %v216 = vld [vmem:[%s1 + $0x2c4] sm:$0xf]
  %v217 = vld [vmem:[%s1 + $0x2c8] sm:$0xf]
  %v218 = vld [vmem:[%s1 + $0x2cc] sm:$0xf]
  %v219 = vld [vmem:[%s1 + $0x2d0] sm:$0xf]
  %v220 = vld [vmem:[%s1 + $0x2d4] sm:$0xf]
  %v221 = vld [vmem:[%s1 + $0x2d8] sm:$0xf]
  %v222 = vld [vmem:[%s1 + $0x2dc] sm:$0xf]
  %v223 = vld [vmem:[%s1 + $0x2e0] sm:$0xf]
  %v224 = vld [vmem:[%s1 + $0x2e4] sm:$0xf]
  %v225 = vld [vmem:[%s1 + $0x2e8] sm:$0xf]
  %v226 = vld [vmem:[%s1 + $0x2ec] sm:$0xf]
  %v227 = vld [vmem:[%s1 + $0x2f0] sm:$0xf]
  %v228 = vld [vmem:[%s1 + $0x2f4] sm:$0xf]
  %v229 = vld [vmem:[%s1 + $0x2f8] sm:$0xf]
  %v230 = vld [vmem:[%s1 + $0x2fc] sm:$0xf]
  %v231 = vld [vmem:[%s1 + $0x300] sm:$0xf]
  %v232 = vld [vmem:[%s1 + $0x304] sm:$0xf]
  %v233 = vld [vmem:[%s1 + $0x308] sm:$0xf]
  %v234 = vld [vmem:[%s1 + $0x30c] sm:$0xf]
  %v235 = vld [vmem:[%s1 + $0x310] sm:$0xf]
  %v236 = vld [vmem:[%s1 + $0x314] sm:$0xf]
  %v237 = vld [vmem:[%s1 + $0x318] sm:$0xf]
  %v238 = vld [vmem:[%s1 + $0x31c] sm:$0xf]
  %v239 = vld [vmem:[%s1 + $0x320] sm:$0xf]
  %v240 = vld [vmem:[%s1 + $0x324] sm:$0xf]
  %v241 = vld [vmem:[%s1 + $0x328] sm:$0xf]
  %v242 = vld [vmem:[%s1 + $0x32c] sm:$0xf]
  %v243 = vld [vmem:[%s1 + $0x330] sm:$0xf]
  %v244 = vld [vmem:[%s1 + $0x334] sm:$0xf]
  %v245 = vld [vmem:[%s1 + $0x338] sm:$0xf]
  %v246 = vld [vmem:[%s1 + $0x33c] sm:$0xf]
  %v247 = vld [vmem:[%s1 + $0x340] sm:$0xf]
  %v248 = vld [vmem:[%s1 + $0x344] sm:$0xf]
  %v249 = vld [vmem:[%s1 + $0x348] sm:$0xf]
  %v250 = vld [vmem:[%s1 + $0x34c] sm:$0xf]
  %v251 = vld [vmem:[%s1 + $0x350] sm:$0xf]
  %v252 = vld [vmem:[%s1 + $0x354] sm:$0xf]
  %v253 = vld [vmem:[%s1 + $0x358] sm:$0xf]
  %v254 = vld [vmem:[%s1 + $0x35c] sm:$0xf]
  %v255 = vld [vmem:[%s1 + $0x360] sm:$0xf]
  %v256 = vld [vmem:[%s1 + $0x364] sm:$0xf]
  %v257 = vld [vmem:[%s1 + $0x368] sm:$0xf]
  %v258 = vld [vmem:[%s1 + $0x36c] sm:$0xf]
  %v259 = vld [vmem:[%s1 + $0x370] sm:$0xf]
  %v260 = vld [vmem:[%s1 + $0x374] sm:$0xf]
  %v261 = vld [vmem:[%s1 + $0x378] sm:$0xf]
  %v262 = vld [vmem:[%s1 + $0x37c] sm:$0xf]
  %v263 = vld [vmem:[%s1 + $0x380] sm:$0xf]
  %v264 = vld [vmem:[%s1 + $0x384] sm:$0xf]
  %v265 = vld [vmem:[%s1 + $0x388] sm:$0xf]
  %v266 = vld [vmem:[%s1 + $0x38c] sm:$0xf]
  %v267 = vld [vmem:[%s1 + $0x390] sm:$0xf]
  %v268 = vld [vmem:[%s1 + $0x394] sm:$0xf]
  %v269 = vld [vmem:[%s1 + $0x398] sm:$0xf]
  %v270 = vld [vmem:[%s1 + $0x39c] sm:$0xf]
  %v271 = vld [vmem:[%s1 + $0x3a0] sm:$0xf]
  %v272 = vld [vmem:[%s1 + $0x3a4] sm:$0xf]
  %v273 = vld [vmem:[%s1 + $0x3a8] sm:$0xf]
  %v274 = vld [vmem:[%s1 + $0x3ac] sm:$0xf]
  %v275 = vld [vmem:[%s1 + $0x3b0] sm:$0xf]
  %v276 = vld [vmem:[%s1 + $0x3b4] sm:$0xf]
  %v277 = vld [vmem:[%s1 + $0x3b8] sm:$0xf]
  %v278 = vld [vmem:[%s1 + $0x3bc] sm:$0xf]
  %v279 = vld [vmem:[%s1 + $0x3c0] sm:$0xf]
  %v280 = vld [vmem:[%s1 + $0x3c4] sm:$0xf]
  %v281 = vld [vmem:[%s1 + $0x3c8] sm:$0xf]
  %v282 = vld [vmem:[%s1 + $0x3cc] sm:$0xf]
  %v283 = vld [vmem:[%s1 + $0x3d0] sm:$0xf]
  %v284 = vld [vmem:[%s1 + $0x3d4] sm:$0xf]
  %v285 = vld [vmem:[%s1 + $0x3d8] sm:$0xf]
  %v286 = vld [vmem:[%s1 + $0x3dc] sm:$0xf]
  %v287 = vld [vmem:[%s1 + $0x3e0] sm:$0xf]
  %v288 = vld [vmem:[%s1 + $0x3e4] sm:$0xf]
  %v289 = vld [vmem:[%s1 + $0x3e8] sm:$0xf]
  %v290 = vld [vmem:[%s1 + $0x3ec] sm:$0xf]
  %v291 = vld [vmem:[%s1 + $0x3f0] sm:$0xf]
  %v292 = vld [vmem:[%s1 + $0x3f4] sm:$0xf]
  %v293 = vld [vmem:[%s1 + $0x3f8] sm:$0xf]
  %v294 = vld [vmem:[%s1 + $0x3fc] sm:$0xf]
  %v295 = vld [vmem:[%s2] sm:$0x1]
  %v297 = vlaneseq
  %v298 = vshrl.u32 %v297, 7
  %v299 = vsub.s32 0, %v298
  %v300 = vrot.slane %v295, %v299
  %v326 = vunpack.c.l.b16 %v15
  %v327 = vunpack.c.h.b16 %v15
  %v328 = vunpack.c.l.b16 %v16
  %v329 = vunpack.c.h.b16 %v16
  %v330 = vunpack.c.l.b16 %v17
  %v331 = vunpack.c.h.b16 %v17
  %v332 = vunpack.c.l.b16 %v18
  %v333 = vunpack.c.h.b16 %v18
  %v334 = vunpack.c.l.b16 %v19
  %v335 = vunpack.c.h.b16 %v19
  %v336 = vunpack.c.l.b16 %v20
  %v337 = vunpack.c.h.b16 %v20
  %v338 = vunpack.c.l.b16 %v21
  %v339 = vunpack.c.h.b16 %v21
  %v340 = vunpack.c.l.b16 %v22
  %v341 = vunpack.c.h.b16 %v22
  %v342 = vunpack.c.l.b16 %v23
  %v343 = vunpack.c.h.b16 %v23
  %v344 = vunpack.c.l.b16 %v24
  %v345 = vunpack.c.h.b16 %v24
  %v346 = vunpack.c.l.b16 %v25
  %v347 = vunpack.c.h.b16 %v25
  %v348 = vunpack.c.l.b16 %v26
  %v349 = vunpack.c.h.b16 %v26
  %v350 = vunpack.c.l.b16 %v27
  %v351 = vunpack.c.h.b16 %v27
  %v352 = vunpack.c.l.b16 %v28
  %v353 = vunpack.c.h.b16 %v28
  %v354 = vunpack.c.l.b16 %v29
  %v355 = vunpack.c.h.b16 %v29
  %v356 = vunpack.c.l.b16 %v30
  %v357 = vunpack.c.h.b16 %v30
  %v358 = vunpack.c.l.b16 %v31
  %v359 = vunpack.c.h.b16 %v31
  %v360 = vunpack.c.l.b16 %v32
  %v361 = vunpack.c.h.b16 %v32
  %v362 = vunpack.c.l.b16 %v33
  %v363 = vunpack.c.h.b16 %v33
  %v364 = vunpack.c.l.b16 %v34
  %v365 = vunpack.c.h.b16 %v34
  %v366 = vunpack.c.l.b16 %v35
  %v367 = vunpack.c.h.b16 %v35
  %v368 = vunpack.c.l.b16 %v36
  %v369 = vunpack.c.h.b16 %v36
  %v370 = vunpack.c.l.b16 %v37
  %v371 = vunpack.c.h.b16 %v37
  %v372 = vunpack.c.l.b16 %v38
  %v373 = vunpack.c.h.b16 %v38
  %v374 = vpack.c.b16 %v342, %v326
  %v375 = vpack.c.b16 %v343, %v327
  %v376 = vpack.c.b16 %v344, %v328
  %v377 = vpack.c.b16 %v345, %v329
  %v378 = vpack.c.b16 %v346, %v330
  %v379 = vpack.c.b16 %v347, %v331
  %v380 = vpack.c.b16 %v348, %v332
  %v381 = vpack.c.b16 %v349, %v333
  %v382 = vpack.c.b16 %v350, %v334
  %v383 = vpack.c.b16 %v351, %v335
  %v384 = vpack.c.b16 %v352, %v336
  %v385 = vpack.c.b16 %v353, %v337
  %v386 = vpack.c.b16 %v354, %v338
  %v387 = vpack.c.b16 %v355, %v339
  %v388 = vpack.c.b16 %v356, %v340
  %v389 = vpack.c.b16 %v357, %v341
  %v390 = vpack.c.b16 %v358, %v358
  %v391 = vpack.c.b16 %v359, %v359
  %v392 = vpack.c.b16 %v360, %v360
  %v393 = vpack.c.b16 %v361, %v361
  %v394 = vpack.c.b16 %v362, %v362
  %v395 = vpack.c.b16 %v363, %v363
  %v396 = vpack.c.b16 %v364, %v364
  %v397 = vpack.c.b16 %v365, %v365
  %v398 = vpack.c.b16 %v366, %v366
  %v399 = vpack.c.b16 %v367, %v367
  %v400 = vpack.c.b16 %v368, %v368
  %v401 = vpack.c.b16 %v369, %v369
  %v402 = vpack.c.b16 %v370, %v370
  %v403 = vpack.c.b16 %v371, %v371
  %v404 = vpack.c.b16 %v372, %v372
  %v405 = vpack.c.b16 %v373, %v373
  %v694 = vunpack.c.l.b16 %v39
  %v695 = vunpack.c.l.b16 %v40
  %v696 = vunpack.c.l.b16 %v41
  %v697 = vunpack.c.l.b16 %v42
  %v698 = vunpack.c.l.b16 %v43
  %v699 = vunpack.c.l.b16 %v44
  %v700 = vunpack.c.l.b16 %v45
  %v701 = vunpack.c.l.b16 %v46
  %v702 = vunpack.c.l.b16 %v47
  %v703 = vunpack.c.l.b16 %v48
  %v704 = vunpack.c.l.b16 %v49
  %v705 = vunpack.c.l.b16 %v50
  %v706 = vunpack.c.l.b16 %v51
  %v707 = vunpack.c.l.b16 %v52
  %v708 = vunpack.c.l.b16 %v53
  %v709 = vunpack.c.l.b16 %v54
  %v710 = vunpack.c.l.b16 %v55
  %v711 = vunpack.c.l.b16 %v56
  %v712 = vunpack.c.l.b16 %v57
  %v713 = vunpack.c.l.b16 %v58
  %v714 = vunpack.c.l.b16 %v59
  %v715 = vunpack.c.l.b16 %v60
  %v716 = vunpack.c.l.b16 %v61
  %v717 = vunpack.c.l.b16 %v62
  %v718 = vunpack.c.l.b16 %v63
  %v719 = vunpack.c.l.b16 %v64
  %v720 = vunpack.c.l.b16 %v65
  %v721 = vunpack.c.l.b16 %v66
  %v722 = vunpack.c.l.b16 %v67
  %v723 = vunpack.c.l.b16 %v68
  %v724 = vunpack.c.l.b16 %v69
  %v725 = vunpack.c.l.b16 %v70
  %v726 = vunpack.c.l.b16 %v71
  %v727 = vunpack.c.l.b16 %v72
  %v728 = vunpack.c.l.b16 %v73
  %v729 = vunpack.c.l.b16 %v74
  %v730 = vunpack.c.l.b16 %v75
  %v731 = vunpack.c.l.b16 %v76
  %v732 = vunpack.c.l.b16 %v77
  %v733 = vunpack.c.l.b16 %v78
  %v734 = vunpack.c.l.b16 %v79
  %v735 = vunpack.c.l.b16 %v80
  %v736 = vunpack.c.l.b16 %v81
  %v737 = vunpack.c.l.b16 %v82
  %v738 = vunpack.c.l.b16 %v83
  %v739 = vunpack.c.l.b16 %v84
  %v740 = vunpack.c.l.b16 %v85
  %v741 = vunpack.c.l.b16 %v86
  %v742 = vunpack.c.l.b16 %v87
  %v743 = vunpack.c.l.b16 %v88
  %v744 = vunpack.c.l.b16 %v89
  %v745 = vunpack.c.l.b16 %v90
  %v746 = vunpack.c.l.b16 %v91
  %v747 = vunpack.c.l.b16 %v92
  %v748 = vunpack.c.l.b16 %v93
  %v749 = vunpack.c.l.b16 %v94
  %v750 = vunpack.c.l.b16 %v95
  %v751 = vunpack.c.l.b16 %v96
  %v752 = vunpack.c.l.b16 %v97
  %v753 = vunpack.c.l.b16 %v98
  %v754 = vunpack.c.l.b16 %v99
  %v755 = vunpack.c.l.b16 %v100
  %v756 = vunpack.c.l.b16 %v101
  %v757 = vunpack.c.l.b16 %v102
  %v758 = vunpack.c.l.b16 %v103
  %v759 = vunpack.c.l.b16 %v104
  %v760 = vunpack.c.l.b16 %v105
  %v761 = vunpack.c.l.b16 %v106
  %v762 = vunpack.c.l.b16 %v107
  %v763 = vunpack.c.l.b16 %v108
  %v764 = vunpack.c.l.b16 %v109
  %v765 = vunpack.c.l.b16 %v110
  %v766 = vunpack.c.l.b16 %v111
  %v767 = vunpack.c.l.b16 %v112
  %v768 = vunpack.c.l.b16 %v113
  %v769 = vunpack.c.l.b16 %v114
  %v770 = vunpack.c.l.b16 %v115
  %v771 = vunpack.c.l.b16 %v116
  %v772 = vunpack.c.l.b16 %v117
  %v773 = vunpack.c.l.b16 %v118
  %v774 = vunpack.c.l.b16 %v119
  %v775 = vunpack.c.l.b16 %v120
  %v776 = vunpack.c.l.b16 %v121
  %v777 = vunpack.c.l.b16 %v122
  %v778 = vunpack.c.l.b16 %v123
  %v779 = vunpack.c.l.b16 %v124
  %v780 = vunpack.c.l.b16 %v125
  %v781 = vunpack.c.l.b16 %v126
  %v782 = vunpack.c.l.b16 %v127
  %v783 = vunpack.c.l.b16 %v128
  %v784 = vunpack.c.l.b16 %v129
  %v785 = vunpack.c.l.b16 %v130
  %v786 = vunpack.c.l.b16 %v131
  %v787 = vunpack.c.l.b16 %v132
  %v788 = vunpack.c.l.b16 %v133
  %v789 = vunpack.c.l.b16 %v134
  %v790 = vunpack.c.l.b16 %v135
  %v791 = vunpack.c.l.b16 %v136
  %v792 = vunpack.c.l.b16 %v137
  %v793 = vunpack.c.l.b16 %v138
  %v794 = vunpack.c.l.b16 %v139
  %v795 = vunpack.c.l.b16 %v140
  %v796 = vunpack.c.l.b16 %v141
  %v797 = vunpack.c.l.b16 %v142
  %v798 = vunpack.c.l.b16 %v143
  %v799 = vunpack.c.l.b16 %v144
  %v800 = vunpack.c.l.b16 %v145
  %v801 = vunpack.c.l.b16 %v146
  %v802 = vunpack.c.l.b16 %v147
  %v803 = vunpack.c.l.b16 %v148
  %v804 = vunpack.c.l.b16 %v149
  %v805 = vunpack.c.l.b16 %v150
  %v806 = vunpack.c.l.b16 %v151
  %v807 = vunpack.c.l.b16 %v152
  %v808 = vunpack.c.l.b16 %v153
  %v809 = vunpack.c.l.b16 %v154
  %v810 = vunpack.c.l.b16 %v155
  %v811 = vunpack.c.l.b16 %v156
  %v812 = vunpack.c.l.b16 %v157
  %v813 = vunpack.c.l.b16 %v158
  %v814 = vunpack.c.l.b16 %v159
  %v815 = vunpack.c.l.b16 %v160
  %v816 = vunpack.c.l.b16 %v161
  %v817 = vunpack.c.l.b16 %v162
  %v818 = vunpack.c.l.b16 %v163
  %v819 = vunpack.c.l.b16 %v164
  %v820 = vunpack.c.l.b16 %v165
  %v821 = vunpack.c.l.b16 %v166
  %v822 = vunpack.c.l.b16 %v167
  %v823 = vunpack.c.l.b16 %v168
  %v824 = vunpack.c.l.b16 %v169
  %v825 = vunpack.c.l.b16 %v170
  %v826 = vunpack.c.l.b16 %v171
  %v827 = vunpack.c.l.b16 %v172
  %v828 = vunpack.c.l.b16 %v173
  %v829 = vunpack.c.l.b16 %v174
  %v830 = vunpack.c.l.b16 %v175
  %v831 = vunpack.c.l.b16 %v176
  %v832 = vunpack.c.l.b16 %v177
  %v833 = vunpack.c.l.b16 %v178
  %v834 = vunpack.c.l.b16 %v179
  %v835 = vunpack.c.l.b16 %v180
  %v836 = vunpack.c.l.b16 %v181
  %v837 = vunpack.c.l.b16 %v182
  %v838 = vunpack.c.l.b16 %v183
  %v839 = vunpack.c.l.b16 %v184
  %v840 = vunpack.c.l.b16 %v185
  %v841 = vunpack.c.l.b16 %v186
  %v842 = vunpack.c.l.b16 %v187
  %v843 = vunpack.c.l.b16 %v188
  %v844 = vunpack.c.l.b16 %v189
  %v845 = vunpack.c.l.b16 %v190
  %v846 = vunpack.c.l.b16 %v191
  %v847 = vunpack.c.l.b16 %v192
  %v848 = vunpack.c.l.b16 %v193
  %v849 = vunpack.c.l.b16 %v194
  %v850 = vunpack.c.l.b16 %v195
  %v851 = vunpack.c.l.b16 %v196
  %v852 = vunpack.c.l.b16 %v197
  %v853 = vunpack.c.l.b16 %v198
  %v854 = vunpack.c.l.b16 %v199
  %v855 = vunpack.c.l.b16 %v200
  %v856 = vunpack.c.l.b16 %v201
  %v857 = vunpack.c.l.b16 %v202
  %v858 = vunpack.c.l.b16 %v203
  %v859 = vunpack.c.l.b16 %v204
  %v860 = vunpack.c.l.b16 %v205
  %v861 = vunpack.c.l.b16 %v206
  %v862 = vunpack.c.l.b16 %v207
  %v863 = vunpack.c.l.b16 %v208
  %v864 = vunpack.c.l.b16 %v209
  %v865 = vunpack.c.l.b16 %v210
  %v866 = vunpack.c.l.b16 %v211
  %v867 = vunpack.c.l.b16 %v212
  %v868 = vunpack.c.l.b16 %v213
  %v869 = vunpack.c.l.b16 %v214
  %v870 = vunpack.c.l.b16 %v215
  %v871 = vunpack.c.l.b16 %v216
  %v872 = vunpack.c.l.b16 %v217
  %v873 = vunpack.c.l.b16 %v218
  %v874 = vunpack.c.l.b16 %v219
  %v875 = vunpack.c.l.b16 %v220
  %v876 = vunpack.c.l.b16 %v221
  %v877 = vunpack.c.l.b16 %v222
  %v878 = vunpack.c.l.b16 %v223
  %v879 = vunpack.c.l.b16 %v224
  %v880 = vunpack.c.l.b16 %v225
  %v881 = vunpack.c.l.b16 %v226
  %v882 = vunpack.c.l.b16 %v227
  %v883 = vunpack.c.l.b16 %v228
  %v884 = vunpack.c.l.b16 %v229
  %v885 = vunpack.c.l.b16 %v230
  %v886 = vunpack.c.l.b16 %v231
  %v887 = vunpack.c.l.b16 %v232
  %v888 = vunpack.c.l.b16 %v233
  %v889 = vunpack.c.l.b16 %v234
  %v890 = vunpack.c.l.b16 %v235
  %v891 = vunpack.c.l.b16 %v236
  %v892 = vunpack.c.l.b16 %v237
  %v893 = vunpack.c.l.b16 %v238
  %v894 = vunpack.c.l.b16 %v239
  %v895 = vunpack.c.l.b16 %v240
  %v896 = vunpack.c.l.b16 %v241
  %v897 = vunpack.c.l.b16 %v242
  %v898 = vunpack.c.l.b16 %v243
  %v899 = vunpack.c.l.b16 %v244
  %v900 = vunpack.c.l.b16 %v245
  %v901 = vunpack.c.l.b16 %v246
  %v902 = vunpack.c.l.b16 %v247
  %v903 = vunpack.c.l.b16 %v248
  %v904 = vunpack.c.l.b16 %v249
  %v905 = vunpack.c.l.b16 %v250
  %v906 = vunpack.c.l.b16 %v251
  %v907 = vunpack.c.l.b16 %v252
  %v908 = vunpack.c.l.b16 %v253
  %v909 = vunpack.c.l.b16 %v254
  %v910 = vunpack.c.l.b16 %v255
  %v911 = vunpack.c.l.b16 %v256
  %v912 = vunpack.c.l.b16 %v257
  %v913 = vunpack.c.l.b16 %v258
  %v914 = vunpack.c.l.b16 %v259
  %v915 = vunpack.c.l.b16 %v260
  %v916 = vunpack.c.l.b16 %v261
  %v917 = vunpack.c.l.b16 %v262
  %v918 = vunpack.c.l.b16 %v263
  %v919 = vunpack.c.l.b16 %v264
  %v920 = vunpack.c.l.b16 %v265
  %v921 = vunpack.c.l.b16 %v266
  %v922 = vunpack.c.l.b16 %v267
  %v923 = vunpack.c.l.b16 %v268
  %v924 = vunpack.c.l.b16 %v269
  %v925 = vunpack.c.l.b16 %v270
  %v926 = vunpack.c.l.b16 %v271
  %v927 = vunpack.c.l.b16 %v272
  %v928 = vunpack.c.l.b16 %v273
  %v929 = vunpack.c.l.b16 %v274
  %v930 = vunpack.c.l.b16 %v275
  %v931 = vunpack.c.l.b16 %v276
  %v932 = vunpack.c.l.b16 %v277
  %v933 = vunpack.c.l.b16 %v278
  %v934 = vunpack.c.l.b16 %v279
  %v935 = vunpack.c.l.b16 %v280
  %v936 = vunpack.c.l.b16 %v281
  %v937 = vunpack.c.l.b16 %v282
  %v938 = vunpack.c.l.b16 %v283
  %v939 = vunpack.c.l.b16 %v284
  %v940 = vunpack.c.l.b16 %v285
  %v941 = vunpack.c.l.b16 %v286
  %v942 = vunpack.c.l.b16 %v287
  %v943 = vunpack.c.l.b16 %v288
  %v944 = vunpack.c.l.b16 %v289
  %v945 = vunpack.c.l.b16 %v290
  %v946 = vunpack.c.l.b16 %v291
  %v947 = vunpack.c.l.b16 %v292
  %v948 = vunpack.c.l.b16 %v293
  %v949 = vunpack.c.l.b16 %v294
  %v950 = vpack.c.b16 %v695, %v694
  %v951 = vpack.c.b16 %v697, %v696
  %v952 = vpack.c.b16 %v699, %v698
  %v953 = vpack.c.b16 %v701, %v700
  %v954 = vpack.c.b16 %v703, %v702
  %v955 = vpack.c.b16 %v705, %v704
  %v956 = vpack.c.b16 %v707, %v706
  %v957 = vpack.c.b16 %v709, %v708
  %v958 = vpack.c.b16 %v711, %v710
  %v959 = vpack.c.b16 %v713, %v712
  %v960 = vpack.c.b16 %v715, %v714
  %v961 = vpack.c.b16 %v717, %v716
  %v962 = vpack.c.b16 %v719, %v718
  %v963 = vpack.c.b16 %v721, %v720
  %v964 = vpack.c.b16 %v723, %v722
  %v965 = vpack.c.b16 %v725, %v724
  %v966 = vpack.c.b16 %v727, %v726
  %v967 = vpack.c.b16 %v729, %v728
  %v968 = vpack.c.b16 %v731, %v730
  %v969 = vpack.c.b16 %v733, %v732
  %v970 = vpack.c.b16 %v735, %v734
  %v971 = vpack.c.b16 %v737, %v736
  %v972 = vpack.c.b16 %v739, %v738
  %v973 = vpack.c.b16 %v741, %v740
  %v974 = vpack.c.b16 %v743, %v742
  %v975 = vpack.c.b16 %v745, %v744
  %v976 = vpack.c.b16 %v747, %v746
  %v977 = vpack.c.b16 %v749, %v748
  %v978 = vpack.c.b16 %v751, %v750
  %v979 = vpack.c.b16 %v753, %v752
  %v980 = vpack.c.b16 %v755, %v754
  %v981 = vpack.c.b16 %v757, %v756
  %v982 = vpack.c.b16 %v759, %v758
  %v983 = vpack.c.b16 %v761, %v760
  %v984 = vpack.c.b16 %v763, %v762
  %v985 = vpack.c.b16 %v765, %v764
  %v986 = vpack.c.b16 %v767, %v766
  %v987 = vpack.c.b16 %v769, %v768
  %v988 = vpack.c.b16 %v771, %v770
  %v989 = vpack.c.b16 %v773, %v772
  %v990 = vpack.c.b16 %v775, %v774
  %v991 = vpack.c.b16 %v777, %v776
  %v992 = vpack.c.b16 %v779, %v778
  %v993 = vpack.c.b16 %v781, %v780
  %v994 = vpack.c.b16 %v783, %v782
  %v995 = vpack.c.b16 %v785, %v784
  %v996 = vpack.c.b16 %v787, %v786
  %v997 = vpack.c.b16 %v789, %v788
  %v998 = vpack.c.b16 %v791, %v790
  %v999 = vpack.c.b16 %v793, %v792
  %v1000 = vpack.c.b16 %v795, %v794
  %v1001 = vpack.c.b16 %v797, %v796
  %v1002 = vpack.c.b16 %v799, %v798
  %v1003 = vpack.c.b16 %v801, %v800
  %v1004 = vpack.c.b16 %v803, %v802
  %v1005 = vpack.c.b16 %v805, %v804
  %v1006 = vpack.c.b16 %v807, %v806
  %v1007 = vpack.c.b16 %v809, %v808
  %v1008 = vpack.c.b16 %v811, %v810
  %v1009 = vpack.c.b16 %v813, %v812
  %v1010 = vpack.c.b16 %v815, %v814
  %v1011 = vpack.c.b16 %v817, %v816
  %v1012 = vpack.c.b16 %v819, %v818
  %v1013 = vpack.c.b16 %v821, %v820
  %v1014 = vpack.c.b16 %v823, %v822
  %v1015 = vpack.c.b16 %v825, %v824
  %v1016 = vpack.c.b16 %v827, %v826
  %v1017 = vpack.c.b16 %v829, %v828
  %v1018 = vpack.c.b16 %v831, %v830
  %v1019 = vpack.c.b16 %v833, %v832
  %v1020 = vpack.c.b16 %v835, %v834
  %v1021 = vpack.c.b16 %v837, %v836
  %v1022 = vpack.c.b16 %v839, %v838
  %v1023 = vpack.c.b16 %v841, %v840
  %v1024 = vpack.c.b16 %v843, %v842
  %v1025 = vpack.c.b16 %v845, %v844
  %v1026 = vpack.c.b16 %v847, %v846
  %v1027 = vpack.c.b16 %v849, %v848
  %v1028 = vpack.c.b16 %v851, %v850
  %v1029 = vpack.c.b16 %v853, %v852
  %v1030 = vpack.c.b16 %v855, %v854
  %v1031 = vpack.c.b16 %v857, %v856
  %v1032 = vpack.c.b16 %v859, %v858
  %v1033 = vpack.c.b16 %v861, %v860
  %v1034 = vpack.c.b16 %v863, %v862
  %v1035 = vpack.c.b16 %v865, %v864
  %v1036 = vpack.c.b16 %v867, %v866
  %v1037 = vpack.c.b16 %v869, %v868
  %v1038 = vpack.c.b16 %v871, %v870
  %v1039 = vpack.c.b16 %v873, %v872
  %v1040 = vpack.c.b16 %v875, %v874
  %v1041 = vpack.c.b16 %v877, %v876
  %v1042 = vpack.c.b16 %v879, %v878
  %v1043 = vpack.c.b16 %v881, %v880
  %v1044 = vpack.c.b16 %v883, %v882
  %v1045 = vpack.c.b16 %v885, %v884
  %v1046 = vpack.c.b16 %v887, %v886
  %v1047 = vpack.c.b16 %v889, %v888
  %v1048 = vpack.c.b16 %v891, %v890
  %v1049 = vpack.c.b16 %v893, %v892
  %v1050 = vpack.c.b16 %v895, %v894
  %v1051 = vpack.c.b16 %v897, %v896
  %v1052 = vpack.c.b16 %v899, %v898
  %v1053 = vpack.c.b16 %v901, %v900
  %v1054 = vpack.c.b16 %v903, %v902
  %v1055 = vpack.c.b16 %v905, %v904
  %v1056 = vpack.c.b16 %v907, %v906
  %v1057 = vpack.c.b16 %v909, %v908
  %v1058 = vpack.c.b16 %v911, %v910
  %v1059 = vpack.c.b16 %v913, %v912
  %v1060 = vpack.c.b16 %v915, %v914
  %v1061 = vpack.c.b16 %v917, %v916
  %v1062 = vpack.c.b16 %v919, %v918
  %v1063 = vpack.c.b16 %v921, %v920
  %v1064 = vpack.c.b16 %v923, %v922
  %v1065 = vpack.c.b16 %v925, %v924
  %v1066 = vpack.c.b16 %v927, %v926
  %v1067 = vpack.c.b16 %v929, %v928
  %v1068 = vpack.c.b16 %v931, %v930
  %v1069 = vpack.c.b16 %v933, %v932
  %v1070 = vpack.c.b16 %v935, %v934
  %v1071 = vpack.c.b16 %v937, %v936
  %v1072 = vpack.c.b16 %v939, %v938
  %v1073 = vpack.c.b16 %v941, %v940
  %v1074 = vpack.c.b16 %v943, %v942
  %v1075 = vpack.c.b16 %v945, %v944
  %v1076 = vpack.c.b16 %v947, %v946
  %v1077 = vpack.c.b16 %v949, %v948
  %1206 = vmatprep.subr.bf16.mxu0 0
  %1207 = vmatpush1.bf16.msra.mxu0 %v950
  %1208 = vmatprep.subr.bf16.mxu0 0
  %1209 = vmatpush1.bf16.msra.mxu0 %v951
  %1210 = vmatprep.subr.bf16.mxu0 0
  %1211 = vmatpush1.bf16.msra.mxu0 %v952
  %1212 = vmatprep.subr.bf16.mxu0 0
  %1213 = vmatpush1.bf16.msra.mxu0 %v953
  %1214 = vmatprep.subr.bf16.mxu0 0
  %1215 = vmatpush1.bf16.msra.mxu0 %v954
  %1216 = vmatprep.subr.bf16.mxu0 0
  %1217 = vmatpush1.bf16.msra.mxu0 %v955
  %1218 = vmatprep.subr.bf16.mxu0 0
  %1219 = vmatpush1.bf16.msra.mxu0 %v956
  %1220 = vmatprep.subr.bf16.mxu0 0
  %1221 = vmatpush1.bf16.msra.mxu0 %v957
  %1222 = vmatprep.subr.bf16.mxu0 0
  %1223 = vmatpush1.bf16.msra.mxu0 %v958
  %1224 = vmatprep.subr.bf16.mxu0 0
  %1225 = vmatpush1.bf16.msra.mxu0 %v959
  %1226 = vmatprep.subr.bf16.mxu0 0
  %1227 = vmatpush1.bf16.msra.mxu0 %v960
  %1228 = vmatprep.subr.bf16.mxu0 0
  %1229 = vmatpush1.bf16.msra.mxu0 %v961
  %1230 = vmatprep.subr.bf16.mxu0 0
  %1231 = vmatpush1.bf16.msra.mxu0 %v962
  %1232 = vmatprep.subr.bf16.mxu0 0
  %1233 = vmatpush1.bf16.msra.mxu0 %v963
  %1234 = vmatprep.subr.bf16.mxu0 0
  %1235 = vmatpush1.bf16.msra.mxu0 %v964
  %1236 = vmatprep.subr.bf16.mxu0 0
  %1237 = vmatpush1.bf16.msra.mxu0 %v965
  %1238 = vmatprep.mubr.bf16.mxu0 %v375
  %1239 = vmatmul.mubr.bf16.gmra.mrb[0].mxu0 %v374
  %v1240 = vpop.f32.mrb[0].mxu0
  %v1241 = vadd.f32 %v300, %v1240
  %v1242 = vpop.f32.mrb[0].mxu0
  %v1243 = vpop.f32.mrb[0].mxu0
  %v1244 = vadd.f32 %v300, %v1243
  %v1245 = vpop.f32.mrb[0].mxu0
  %1246 = vmatprep.mubr.bf16.mxu0 %v391
  %1247 = vmatmul.mubr.bf16.gmra.mrb[0].mxu0 %v390
  %v1248 = vpop.f32.mrb[0].mxu0
  %v1249 = vadd.f32 %v300, %v1248
  %v1250 = vpop.f32.mrb[0].mxu0
  %v1251 = vpop.f32.mrb[0].mxu0
  %v1252 = vpop.f32.mrb[0].mxu0
  %1253 = vdwg.mxu0
  %1254 = vmatprep.subr.bf16.mxu0 0
  %1255 = vmatpush1.bf16.msra.mxu0 %v966
  %1256 = vmatprep.subr.bf16.mxu0 0
  %1257 = vmatpush1.bf16.msra.mxu0 %v967
  %1258 = vmatprep.subr.bf16.mxu0 0
  %1259 = vmatpush1.bf16.msra.mxu0 %v968
  %1260 = vmatprep.subr.bf16.mxu0 0
  %1261 = vmatpush1.bf16.msra.mxu0 %v969
  %1262 = vmatprep.subr.bf16.mxu0 0
  %1263 = vmatpush1.bf16.msra.mxu0 %v970
  %1264 = vmatprep.subr.bf16.mxu0 0
  %1265 = vmatpush1.bf16.msra.mxu0 %v971
  %1266 = vmatprep.subr.bf16.mxu0 0
  %1267 = vmatpush1.bf16.msra.mxu0 %v972
  %1268 = vmatprep.subr.bf16.mxu0 0
  %1269 = vmatpush1.bf16.msra.mxu0 %v973
  %1270 = vmatprep.subr.bf16.mxu0 0
  %1271 = vmatpush1.bf16.msra.mxu0 %v974
  %1272 = vmatprep.subr.bf16.mxu0 0
  %1273 = vmatpush1.bf16.msra.mxu0 %v975
  %1274 = vmatprep.subr.bf16.mxu0 0
  %1275 = vmatpush1.bf16.msra.mxu0 %v976
  %1276 = vmatprep.subr.bf16.mxu0 0
  %1277 = vmatpush1.bf16.msra.mxu0 %v977
  %1278 = vmatprep.subr.bf16.mxu0 0
  %1279 = vmatpush1.bf16.msra.mxu0 %v978
  %1280 = vmatprep.subr.bf16.mxu0 0
  %1281 = vmatpush1.bf16.msra.mxu0 %v979
  %1282 = vmatprep.subr.bf16.mxu0 0
  %1283 = vmatpush1.bf16.msra.mxu0 %v980
  %1284 = vmatprep.subr.bf16.mxu0 0
  %1285 = vmatpush1.bf16.msra.mxu0 %v981
  %1286 = vmatprep.mubr.bf16.mxu0 %v377
  %1287 = vmatmul.mubr.bf16.gmra.mrb[0].mxu0 %v376
  %v1288 = vpop.f32.mrb[0].mxu0
  %v1289 = vadd.f32 %v1241, %v1288
  %v1290 = vpop.f32.mrb[0].mxu0
  %v1291 = vpop.f32.mrb[0].mxu0
  %v1292 = vadd.f32 %v1244, %v1291
  %v1293 = vpop.f32.mrb[0].mxu0
  %1294 = vmatprep.mubr.bf16.mxu0 %v393
  %1295 = vmatmul.mubr.bf16.gmra.mrb[0].mxu0 %v392
  %v1296 = vpop.f32.mrb[0].mxu0
  %v1297 = vadd.f32 %v1249, %v1296
  %v1298 = vpop.f32.mrb[0].mxu0
  %v1299 = vpop.f32.mrb[0].mxu0
  %v1300 = vpop.f32.mrb[0].mxu0
  %1301 = vdwg.mxu0
  %1302 = vmatprep.subr.bf16.mxu0 0
  %1303 = vmatpush1.bf16.msra.mxu0 %v982
  %1304 = vmatprep.subr.bf16.mxu0 0
  %1305 = vmatpush1.bf16.msra.mxu0 %v983
  %1306 = vmatprep.subr.bf16.mxu0 0
  %1307 = vmatpush1.bf16.msra.mxu0 %v984
  %1308 = vmatprep.subr.bf16.mxu0 0
  %1309 = vmatpush1.bf16.msra.mxu0 %v985
  %1310 = vmatprep.subr.bf16.mxu0 0
  %1311 = vmatpush1.bf16.msra.mxu0 %v986
  %1312 = vmatprep.subr.bf16.mxu0 0
  %1313 = vmatpush1.bf16.msra.mxu0 %v987
  %1314 = vmatprep.subr.bf16.mxu0 0
  %1315 = vmatpush1.bf16.msra.mxu0 %v988
  %1316 = vmatprep.subr.bf16.mxu0 0
  %1317 = vmatpush1.bf16.msra.mxu0 %v989
  %1318 = vmatprep.subr.bf16.mxu0 0
  %1319 = vmatpush1.bf16.msra.mxu0 %v990
  %1320 = vmatprep.subr.bf16.mxu0 0
  %1321 = vmatpush1.bf16.msra.mxu0 %v991
  %1322 = vmatprep.subr.bf16.mxu0 0
  %1323 = vmatpush1.bf16.msra.mxu0 %v992
  %1324 = vmatprep.subr.bf16.mxu0 0
  %1325 = vmatpush1.bf16.msra.mxu0 %v993
  %1326 = vmatprep.subr.bf16.mxu0 0
  %1327 = vmatpush1.bf16.msra.mxu0 %v994
  %1328 = vmatprep.subr.bf16.mxu0 0
  %1329 = vmatpush1.bf16.msra.mxu0 %v995
  %1330 = vmatprep.subr.bf16.mxu0 0
  %1331 = vmatpush1.bf16.msra.mxu0 %v996
  %1332 = vmatprep.subr.bf16.mxu0 0
  %1333 = vmatpush1.bf16.msra.mxu0 %v997
  %1334 = vmatprep.mubr.bf16.mxu0 %v379
  %1335 = vmatmul.mubr.bf16.gmra.mrb[0].mxu0 %v378
  %v1336 = vpop.f32.mrb[0].mxu0
  %v1337 = vadd.f32 %v1289, %v1336
  %v1338 = vpop.f32.mrb[0].mxu0
  %v1339 = vpop.f32.mrb[0].mxu0
  %v1340 = vadd.f32 %v1292, %v1339
  %v1341 = vpop.f32.mrb[0].mxu0
  %1342 = vmatprep.mubr.bf16.mxu0 %v395
  %1343 = vmatmul.mubr.bf16.gmra.mrb[0].mxu0 %v394
  %v1344 = vpop.f32.mrb[0].mxu0
  %v1345 = vadd.f32 %v1297, %v1344
  %v1346 = vpop.f32.mrb[0].mxu0
  %v1347 = vpop.f32.mrb[0].mxu0
  %v1348 = vpop.f32.mrb[0].mxu0
  %1349 = vdwg.mxu0
  %1350 = vmatprep.subr.bf16.mxu0 0
  %1351 = vmatpush1.bf16.msra.mxu0 %v998
  %1352 = vmatprep.subr.bf16.mxu0 0
  %1353 = vmatpush1.bf16.msra.mxu0 %v999
  %1354 = vmatprep.subr.bf16.mxu0 0
  %1355 = vmatpush1.bf16.msra.mxu0 %v1000
  %1356 = vmatprep.subr.bf16.mxu0 0
  %1357 = vmatpush1.bf16.msra.mxu0 %v1001
  %1358 = vmatprep.subr.bf16.mxu0 0
  %1359 = vmatpush1.bf16.msra.mxu0 %v1002
  %1360 = vmatprep.subr.bf16.mxu0 0
  %1361 = vmatpush1.bf16.msra.mxu0 %v1003
  %1362 = vmatprep.subr.bf16.mxu0 0
  %1363 = vmatpush1.bf16.msra.mxu0 %v1004
  %1364 = vmatprep.subr.bf16.mxu0 0
  %1365 = vmatpush1.bf16.msra.mxu0 %v1005
  %1366 = vmatprep.subr.bf16.mxu0 0
  %1367 = vmatpush1.bf16.msra.mxu0 %v1006
  %1368 = vmatprep.subr.bf16.mxu0 0
  %1369 = vmatpush1.bf16.msra.mxu0 %v1007
  %1370 = vmatprep.subr.bf16.mxu0 0
  %1371 = vmatpush1.bf16.msra.mxu0 %v1008
  %1372 = vmatprep.subr.bf16.mxu0 0
  %1373 = vmatpush1.bf16.msra.mxu0 %v1009
  %1374 = vmatprep.subr.bf16.mxu0 0
  %1375 = vmatpush1.bf16.msra.mxu0 %v1010
  %1376 = vmatprep.subr.bf16.mxu0 0
  %1377 = vmatpush1.bf16.msra.mxu0 %v1011
  %1378 = vmatprep.subr.bf16.mxu0 0
  %1379 = vmatpush1.bf16.msra.mxu0 %v1012
  %1380 = vmatprep.subr.bf16.mxu0 0
  %1381 = vmatpush1.bf16.msra.mxu0 %v1013
  %1382 = vmatprep.mubr.bf16.mxu0 %v381
  %1383 = vmatmul.mubr.bf16.gmra.mrb[0].mxu0 %v380
  %v1384 = vpop.f32.mrb[0].mxu0
  %v1385 = vadd.f32 %v1337, %v1384
  %v1386 = vpop.f32.mrb[0].mxu0
  %v1387 = vpop.f32.mrb[0].mxu0
  %v1388 = vadd.f32 %v1340, %v1387
  %v1389 = vpop.f32.mrb[0].mxu0
  %1390 = vmatprep.mubr.bf16.mxu0 %v397
  %1391 = vmatmul.mubr.bf16.gmra.mrb[0].mxu0 %v396
  %v1392 = vpop.f32.mrb[0].mxu0
  %v1393 = vadd.f32 %v1345, %v1392
  %v1394 = vpop.f32.mrb[0].mxu0
  %v1395 = vpop.f32.mrb[0].mxu0
  %v1396 = vpop.f32.mrb[0].mxu0
  %1397 = vdwg.mxu0
  %1398 = vmatprep.subr.bf16.mxu0 0
  %1399 = vmatpush1.bf16.msra.mxu0 %v1014
  %1400 = vmatprep.subr.bf16.mxu0 0
  %1401 = vmatpush1.bf16.msra.mxu0 %v1015
  %1402 = vmatprep.subr.bf16.mxu0 0
  %1403 = vmatpush1.bf16.msra.mxu0 %v1016
  %1404 = vmatprep.subr.bf16.mxu0 0
  %1405 = vmatpush1.bf16.msra.mxu0 %v1017
  %1406 = vmatprep.subr.bf16.mxu0 0
  %1407 = vmatpush1.bf16.msra.mxu0 %v1018
  %1408 = vmatprep.subr.bf16.mxu0 0
  %1409 = vmatpush1.bf16.msra.mxu0 %v1019
  %1410 = vmatprep.subr.bf16.mxu0 0
  %1411 = vmatpush1.bf16.msra.mxu0 %v1020
  %1412 = vmatprep.subr.bf16.mxu0 0
  %1413 = vmatpush1.bf16.msra.mxu0 %v1021
  %1414 = vmatprep.subr.bf16.mxu0 0
  %1415 = vmatpush1.bf16.msra.mxu0 %v1022
  %1416 = vmatprep.subr.bf16.mxu0 0
  %1417 = vmatpush1.bf16.msra.mxu0 %v1023
  %1418 = vmatprep.subr.bf16.mxu0 0
  %1419 = vmatpush1.bf16.msra.mxu0 %v1024
  %1420 = vmatprep.subr.bf16.mxu0 0
  %1421 = vmatpush1.bf16.msra.mxu0 %v1025
  %1422 = vmatprep.subr.bf16.mxu0 0
  %1423 = vmatpush1.bf16.msra.mxu0 %v1026
  %1424 = vmatprep.subr.bf16.mxu0 0
  %1425 = vmatpush1.bf16.msra.mxu0 %v1027
  %1426 = vmatprep.subr.bf16.mxu0 0
  %1427 = vmatpush1.bf16.msra.mxu0 %v1028
  %1428 = vmatprep.subr.bf16.mxu0 0
  %1429 = vmatpush1.bf16.msra.mxu0 %v1029
  %1430 = vmatprep.mubr.bf16.mxu0 %v383
  %1431 = vmatmul.mubr.bf16.gmra.mrb[0].mxu0 %v382
  %v1432 = vpop.f32.mrb[0].mxu0
  %v1433 = vadd.f32 %v1385, %v1432
  %v1434 = vpop.f32.mrb[0].mxu0
  %v1435 = vpop.f32.mrb[0].mxu0
  %v1436 = vadd.f32 %v1388, %v1435
  %v1437 = vpop.f32.mrb[0].mxu0
  %1438 = vmatprep.mubr.bf16.mxu0 %v399
  %1439 = vmatmul.mubr.bf16.gmra.mrb[0].mxu0 %v398
  %v1440 = vpop.f32.mrb[0].mxu0
  %v1441 = vadd.f32 %v1393, %v1440
  %v1442 = vpop.f32.mrb[0].mxu0
  %v1443 = vpop.f32.mrb[0].mxu0
  %v1444 = vpop.f32.mrb[0].mxu0
  %1445 = vdwg.mxu0
  %1446 = vmatprep.subr.bf16.mxu0 0
  %1447 = vmatpush1.bf16.msra.mxu0 %v1030
  %1448 = vmatprep.subr.bf16.mxu0 0
  %1449 = vmatpush1.bf16.msra.mxu0 %v1031
  %1450 = vmatprep.subr.bf16.mxu0 0
  %1451 = vmatpush1.bf16.msra.mxu0 %v1032
  %1452 = vmatprep.subr.bf16.mxu0 0
  %1453 = vmatpush1.bf16.msra.mxu0 %v1033
  %1454 = vmatprep.subr.bf16.mxu0 0
  %1455 = vmatpush1.bf16.msra.mxu0 %v1034
  %1456 = vmatprep.subr.bf16.mxu0 0
  %1457 = vmatpush1.bf16.msra.mxu0 %v1035
  %1458 = vmatprep.subr.bf16.mxu0 0
  %1459 = vmatpush1.bf16.msra.mxu0 %v1036
  %1460 = vmatprep.subr.bf16.mxu0 0
  %1461 = vmatpush1.bf16.msra.mxu0 %v1037
  %1462 = vmatprep.subr.bf16.mxu0 0
  %1463 = vmatpush1.bf16.msra.mxu0 %v1038
  %1464 = vmatprep.subr.bf16.mxu0 0
  %1465 = vmatpush1.bf16.msra.mxu0 %v1039
  %1466 = vmatprep.subr.bf16.mxu0 0
  %1467 = vmatpush1.bf16.msra.mxu0 %v1040
  %1468 = vmatprep.subr.bf16.mxu0 0
  %1469 = vmatpush1.bf16.msra.mxu0 %v1041
  %1470 = vmatprep.subr.bf16.mxu0 0
  %1471 = vmatpush1.bf16.msra.mxu0 %v1042
  %1472 = vmatprep.subr.bf16.mxu0 0
  %1473 = vmatpush1.bf16.msra.mxu0 %v1043
  %1474 = vmatprep.subr.bf16.mxu0 0
  %1475 = vmatpush1.bf16.msra.mxu0 %v1044
  %1476 = vmatprep.subr.bf16.mxu0 0
  %1477 = vmatpush1.bf16.msra.mxu0 %v1045
  %1478 = vmatprep.mubr.bf16.mxu0 %v385
  %1479 = vmatmul.mubr.bf16.gmra.mrb[0].mxu0 %v384
  %v1480 = vpop.f32.mrb[0].mxu0
  %v1481 = vadd.f32 %v1433, %v1480
  %v1482 = vpop.f32.mrb[0].mxu0
  %v1483 = vpop.f32.mrb[0].mxu0
  %v1484 = vadd.f32 %v1436, %v1483
  %v1485 = vpop.f32.mrb[0].mxu0
  %1486 = vmatprep.mubr.bf16.mxu0 %v401
  %1487 = vmatmul.mubr.bf16.gmra.mrb[0].mxu0 %v400
  %v1488 = vpop.f32.mrb[0].mxu0
  %v1489 = vadd.f32 %v1441, %v1488
  %v1490 = vpop.f32.mrb[0].mxu0
  %v1491 = vpop.f32.mrb[0].mxu0
  %v1492 = vpop.f32.mrb[0].mxu0
  %1493 = vdwg.mxu0
  %1494 = vmatprep.subr.bf16.mxu0 0
  %1495 = vmatpush1.bf16.msra.mxu0 %v1046
  %1496 = vmatprep.subr.bf16.mxu0 0
  %1497 = vmatpush1.bf16.msra.mxu0 %v1047
  %1498 = vmatprep.subr.bf16.mxu0 0
  %1499 = vmatpush1.bf16.msra.mxu0 %v1048
  %1500 = vmatprep.subr.bf16.mxu0 0
  %1501 = vmatpush1.bf16.msra.mxu0 %v1049
  %1502 = vmatprep.subr.bf16.mxu0 0
  %1503 = vmatpush1.bf16.msra.mxu0 %v1050
  %1504 = vmatprep.subr.bf16.mxu0 0
  %1505 = vmatpush1.bf16.msra.mxu0 %v1051
  %1506 = vmatprep.subr.bf16.mxu0 0
  %1507 = vmatpush1.bf16.msra.mxu0 %v1052
  %1508 = vmatprep.subr.bf16.mxu0 0
  %1509 = vmatpush1.bf16.msra.mxu0 %v1053
  %1510 = vmatprep.subr.bf16.mxu0 0
  %1511 = vmatpush1.bf16.msra.mxu0 %v1054
  %1512 = vmatprep.subr.bf16.mxu0 0
  %1513 = vmatpush1.bf16.msra.mxu0 %v1055
  %1514 = vmatprep.subr.bf16.mxu0 0
  %1515 = vmatpush1.bf16.msra.mxu0 %v1056
  %1516 = vmatprep.subr.bf16.mxu0 0
  %1517 = vmatpush1.bf16.msra.mxu0 %v1057
  %1518 = vmatprep.subr.bf16.mxu0 0
  %1519 = vmatpush1.bf16.msra.mxu0 %v1058
  %1520 = vmatprep.subr.bf16.mxu0 0
  %1521 = vmatpush1.bf16.msra.mxu0 %v1059
  %1522 = vmatprep.subr.bf16.mxu0 0
  %1523 = vmatpush1.bf16.msra.mxu0 %v1060
  %1524 = vmatprep.subr.bf16.mxu0 0
  %1525 = vmatpush1.bf16.msra.mxu0 %v1061
  %1526 = vmatprep.mubr.bf16.mxu0 %v387
  %1527 = vmatmul.mubr.bf16.gmra.mrb[0].mxu0 %v386
  %v1528 = vpop.f32.mrb[0].mxu0
  %v1529 = vadd.f32 %v1481, %v1528
  %v1530 = vpop.f32.mrb[0].mxu0
  %v1531 = vpop.f32.mrb[0].mxu0
  %v1532 = vadd.f32 %v1484, %v1531
  %v1533 = vpop.f32.mrb[0].mxu0
  %1534 = vmatprep.mubr.bf16.mxu0 %v403
  %1535 = vmatmul.mubr.bf16.gmra.mrb[0].mxu0 %v402
  %v1536 = vpop.f32.mrb[0].mxu0
  %v1537 = vadd.f32 %v1489, %v1536
  %v1538 = vpop.f32.mrb[0].mxu0
  %v1539 = vpop.f32.mrb[0].mxu0
  %v1540 = vpop.f32.mrb[0].mxu0
  %1541 = vdwg.mxu0
  %1542 = vmatprep.subr.bf16.mxu0 0
  %1543 = vmatpush1.bf16.msra.mxu0 %v1062
  %1544 = vmatprep.subr.bf16.mxu0 0
  %1545 = vmatpush1.bf16.msra.mxu0 %v1063
  %1546 = vmatprep.subr.bf16.mxu0 0
  %1547 = vmatpush1.bf16.msra.mxu0 %v1064
  %1548 = vmatprep.subr.bf16.mxu0 0
  %1549 = vmatpush1.bf16.msra.mxu0 %v1065
  %1550 = vmatprep.subr.bf16.mxu0 0
  %1551 = vmatpush1.bf16.msra.mxu0 %v1066
  %1552 = vmatprep.subr.bf16.mxu0 0
  %1553 = vmatpush1.bf16.msra.mxu0 %v1067
  %1554 = vmatprep.subr.bf16.mxu0 0
  %1555 = vmatpush1.bf16.msra.mxu0 %v1068
  %1556 = vmatprep.subr.bf16.mxu0 0
  %1557 = vmatpush1.bf16.msra.mxu0 %v1069
  %1558 = vmatprep.subr.bf16.mxu0 0
  %1559 = vmatpush1.bf16.msra.mxu0 %v1070
  %1560 = vmatprep.subr.bf16.mxu0 0
  %1561 = vmatpush1.bf16.msra.mxu0 %v1071
  %1562 = vmatprep.subr.bf16.mxu0 0
  %1563 = vmatpush1.bf16.msra.mxu0 %v1072
  %1564 = vmatprep.subr.bf16.mxu0 0
  %1565 = vmatpush1.bf16.msra.mxu0 %v1073
  %1566 = vmatprep.subr.bf16.mxu0 0
  %1567 = vmatpush1.bf16.msra.mxu0 %v1074
  %1568 = vmatprep.subr.bf16.mxu0 0
  %1569 = vmatpush1.bf16.msra.mxu0 %v1075
  %1570 = vmatprep.subr.bf16.mxu0 0
  %1571 = vmatpush1.bf16.msra.mxu0 %v1076
  %1572 = vmatprep.subr.bf16.mxu0 0
  %1573 = vmatpush1.bf16.msra.mxu0 %v1077
  %1574 = vmatprep.mubr.bf16.mxu0 %v389
  %1575 = vmatmul.mubr.bf16.gmra.mrb[0].mxu0 %v388
  %v1576 = vpop.f32.mrb[0].mxu0
  %v1577 = vadd.f32 %v1529, %v1576
  %v1578 = vpop.f32.mrb[0].mxu0
  %v1579 = vpop.f32.mrb[0].mxu0
  %v1580 = vadd.f32 %v1532, %v1579
  %v1581 = vpop.f32.mrb[0].mxu0
  %1582 = vmatprep.mubr.bf16.mxu0 %v405
  %1583 = vmatmul.mubr.bf16.gmra.mrb[0].mxu0 %v404
  %v1584 = vpop.f32.mrb[0].mxu0
  %v1585 = vadd.f32 %v1537, %v1584
  %v1586 = vpop.f32.mrb[0].mxu0
  %v1587 = vpop.f32.mrb[0].mxu0
  %v1588 = vpop.f32.mrb[0].mxu0
  %1589 = vdwg.mxu0
  %v1590 = vmax.f32 %v1577, 0.0
  %v1591 = vmax.f32 %v1580, 0.0
  %v1592 = vmax.f32 %v1585, 0.0
  %v1593 = vpack.c.bf16 %v1591, %v1590
  %v1594 = vpack.c.bf16 %v1592, %v1592
  %v1597 = vunpack.c.l.b16 %v1593
  %v1598 = vunpack.c.h.b16 %v1593
  %v1599 = vunpack.c.l.b16 %v1594
  %v1600 = vpack.c.b16 %v1597, %v1597
  %v1601 = vpack.c.b16 %v1598, %v1598
  %v1602 = vpack.c.b16 %v1599, %v1599
  %1606 = vst [vmem:[%s3] sm:$0xf] %v1600
  %1607 = vst [vmem:[%s3 + $0x4] sm:$0xf] %v1601
  %1608 = vst [vmem:[%s3 + $0x8] sm:$0x1] %v1602
  // Predicated region
  $region14: #{qnetwork_forward.5} parent=0 // pred_check
    _
  $region15: #{qnetwork_forward.5} parent=0 // pred_check_branch
    %1610 = sbr.rel (0) target = $region17
  $region16: #{qnetwork_forward.5} parent=0 // pred_region
    _
  $region17: #{qnetwork_forward.5} parent=0 // pred_fallthru
    _
  // Predicated region
  $region18: #{qnetwork_forward.5} parent=0 // pred_check
    _
  $region19: #{qnetwork_forward.5} parent=0 // pred_check_branch
    %1612 = sbr.rel (0) target = $region21
  $region20: #{qnetwork_forward.5} parent=0 // pred_region
    _
  $region21: #{qnetwork_forward.5} parent=0 // pred_fallthru
    _

// kernel: qnetwork_forward.6
$region0: #{qnetwork_forward.6}
  #allocation0 [shape = 'u32[]', space=smem, size = 0x4, offset = 0x4, fixed_abs, tag = 'smem constant byte address 0x4 - core index']
  #allocation1 [shape = 'u32[144,128]{1,0:T(1,128)}', space=vmem, size = 0x12000, scoped, tag = 'internal scratch']
  %s0 = inlined_call_operand.vmem [shape: bf16[2,1152], index: 0, kind: input, shape index: {}]
  %s1 = inlined_call_operand.vmem [shape: bf16[1152,128], index: 1, kind: input, shape index: {}]
  %s2 = inlined_call_operand.vmem [shape: f32[1,128], index: 2, kind: input, shape index: {}]
  %s3 = inlined_call_operand.vmem [shape: bf16[2,128], index: 3, kind: output, shape index: {}]
  %s4 = sld [smem:[#allocation0]]
  $region22: #{qnetwork_forward.6} parent=0
    _
  %s6 = ssub.s32 1, %s4
  %s7 = scalar_select 0, %s6, %s4
  // Predicated region
  $region2: #{qnetwork_forward.6} parent=0 // pred_check
    _
  $region3: #{qnetwork_forward.6} parent=0 // pred_check_branch
    %9 = sbr.rel (0) target = $region5
  $region4: #{qnetwork_forward.6} parent=0 // pred_region
    _
  $region5: #{qnetwork_forward.6} parent=0 // pred_fallthru
    _
  // Predicated region
  $region6: #{qnetwork_forward.6} parent=0 // pred_check
    _
  $region7: #{qnetwork_forward.6} parent=0 // pred_check_branch
    %11 = sbr.rel (0) target = $region9
  $region8: #{qnetwork_forward.6} parent=0 // pred_region
    _
  $region9: #{qnetwork_forward.6} parent=0 // pred_fallthru
    _
  // Predicated region
  $region10: #{qnetwork_forward.6} parent=0 // pred_check
    _
  $region11: #{qnetwork_forward.6} parent=0 // pred_check_branch
    %13 = sbr.rel (0) target = $region13
  $region12: #{qnetwork_forward.6} parent=0 // pred_region
    _
  $region13: #{qnetwork_forward.6} parent=0 // pred_fallthru
    _
  %v15 = vld [vmem:[%s0] sm:$0xff]
  %v16 = vld [vmem:[%s0 + $0x8] sm:$0x1]
  %v17 = vld [vmem:[%s1] sm:$0xf]
  %v18 = vld [vmem:[%s1 + $0x4] sm:$0xf]
  %v19 = vld [vmem:[%s1 + $0x8] sm:$0xf]
  %v20 = vld [vmem:[%s1 + $0xc] sm:$0xf]
  %v21 = vld [vmem:[%s1 + $0x10] sm:$0xf]
  %v22 = vld [vmem:[%s1 + $0x14] sm:$0xf]
  %v23 = vld [vmem:[%s1 + $0x18] sm:$0xf]
  %v24 = vld [vmem:[%s1 + $0x1c] sm:$0xf]
  %v25 = vld [vmem:[%s1 + $0x20] sm:$0xf]
  %v26 = vld [vmem:[%s1 + $0x24] sm:$0xf]
  %v27 = vld [vmem:[%s1 + $0x28] sm:$0xf]
  %v28 = vld [vmem:[%s1 + $0x2c] sm:$0xf]
  %v29 = vld [vmem:[%s1 + $0x30] sm:$0xf]
  %v30 = vld [vmem:[%s1 + $0x34] sm:$0xf]
  %v31 = vld [vmem:[%s1 + $0x38] sm:$0xf]
  %v32 = vld [vmem:[%s1 + $0x3c] sm:$0xf]
  %v33 = vld [vmem:[%s1 + $0x40] sm:$0xf]
  %v34 = vld [vmem:[%s1 + $0x44] sm:$0xf]
  %v35 = vld [vmem:[%s1 + $0x48] sm:$0xf]
  %v36 = vld [vmem:[%s1 + $0x4c] sm:$0xf]
  %v37 = vld [vmem:[%s1 + $0x50] sm:$0xf]
  %v38 = vld [vmem:[%s1 + $0x54] sm:$0xf]
  %v39 = vld [vmem:[%s1 + $0x58] sm:$0xf]
  %v40 = vld [vmem:[%s1 + $0x5c] sm:$0xf]
  %v41 = vld [vmem:[%s1 + $0x60] sm:$0xf]
  %v42 = vld [vmem:[%s1 + $0x64] sm:$0xf]
  %v43 = vld [vmem:[%s1 + $0x68] sm:$0xf]
  %v44 = vld [vmem:[%s1 + $0x6c] sm:$0xf]
  %v45 = vld [vmem:[%s1 + $0x70] sm:$0xf]
  %v46 = vld [vmem:[%s1 + $0x74] sm:$0xf]
  %v47 = vld [vmem:[%s1 + $0x78] sm:$0xf]
  %v48 = vld [vmem:[%s1 + $0x7c] sm:$0xf]
  %v49 = vld [vmem:[%s1 + $0x80] sm:$0xf]
  %v50 = vld [vmem:[%s1 + $0x84] sm:$0xf]
  %v51 = vld [vmem:[%s1 + $0x88] sm:$0xf]
  %v52 = vld [vmem:[%s1 + $0x8c] sm:$0xf]
  %v53 = vld [vmem:[%s1 + $0x90] sm:$0xf]
  %v54 = vld [vmem:[%s1 + $0x94] sm:$0xf]
  %v55 = vld [vmem:[%s1 + $0x98] sm:$0xf]
  %v56 = vld [vmem:[%s1 + $0x9c] sm:$0xf]
  %v57 = vld [vmem:[%s1 + $0xa0] sm:$0xf]
  %v58 = vld [vmem:[%s1 + $0xa4] sm:$0xf]
  %v59 = vld [vmem:[%s1 + $0xa8] sm:$0xf]
  %v60 = vld [vmem:[%s1 + $0xac] sm:$0xf]
  %v61 = vld [vmem:[%s1 + $0xb0] sm:$0xf]
  %v62 = vld [vmem:[%s1 + $0xb4] sm:$0xf]
  %v63 = vld [vmem:[%s1 + $0xb8] sm:$0xf]
  %v64 = vld [vmem:[%s1 + $0xbc] sm:$0xf]
  %v65 = vld [vmem:[%s1 + $0xc0] sm:$0xf]
  %v66 = vld [vmem:[%s1 + $0xc4] sm:$0xf]
  %v67 = vld [vmem:[%s1 + $0xc8] sm:$0xf]
  %v68 = vld [vmem:[%s1 + $0xcc] sm:$0xf]
  %v69 = vld [vmem:[%s1 + $0xd0] sm:$0xf]
  %v70 = vld [vmem:[%s1 + $0xd4] sm:$0xf]
  %v71 = vld [vmem:[%s1 + $0xd8] sm:$0xf]
  %v72 = vld [vmem:[%s1 + $0xdc] sm:$0xf]
  %v73 = vld [vmem:[%s1 + $0xe0] sm:$0xf]
  %v74 = vld [vmem:[%s1 + $0xe4] sm:$0xf]
  %v75 = vld [vmem:[%s1 + $0xe8] sm:$0xf]
  %v76 = vld [vmem:[%s1 + $0xec] sm:$0xf]
  %v77 = vld [vmem:[%s1 + $0xf0] sm:$0xf]
  %v78 = vld [vmem:[%s1 + $0xf4] sm:$0xf]
  %v79 = vld [vmem:[%s1 + $0xf8] sm:$0xf]
  %v80 = vld [vmem:[%s1 + $0xfc] sm:$0xf]
  %v81 = vld [vmem:[%s1 + $0x100] sm:$0xf]
  %v82 = vld [vmem:[%s1 + $0x104] sm:$0xf]
  %v83 = vld [vmem:[%s1 + $0x108] sm:$0xf]
  %v84 = vld [vmem:[%s1 + $0x10c] sm:$0xf]
  %v85 = vld [vmem:[%s1 + $0x110] sm:$0xf]
  %v86 = vld [vmem:[%s1 + $0x114] sm:$0xf]
  %v87 = vld [vmem:[%s1 + $0x118] sm:$0xf]
  %v88 = vld [vmem:[%s1 + $0x11c] sm:$0xf]
  %v89 = vld [vmem:[%s1 + $0x120] sm:$0xf]
  %v90 = vld [vmem:[%s1 + $0x124] sm:$0xf]
  %v91 = vld [vmem:[%s1 + $0x128] sm:$0xf]
  %v92 = vld [vmem:[%s1 + $0x12c] sm:$0xf]
  %v93 = vld [vmem:[%s1 + $0x130] sm:$0xf]
  %v94 = vld [vmem:[%s1 + $0x134] sm:$0xf]
  %v95 = vld [vmem:[%s1 + $0x138] sm:$0xf]
  %v96 = vld [vmem:[%s1 + $0x13c] sm:$0xf]
  %v97 = vld [vmem:[%s1 + $0x140] sm:$0xf]
  %v98 = vld [vmem:[%s1 + $0x144] sm:$0xf]
  %v99 = vld [vmem:[%s1 + $0x148] sm:$0xf]
  %v100 = vld [vmem:[%s1 + $0x14c] sm:$0xf]
  %v101 = vld [vmem:[%s1 + $0x150] sm:$0xf]
  %v102 = vld [vmem:[%s1 + $0x154] sm:$0xf]
  %v103 = vld [vmem:[%s1 + $0x158] sm:$0xf]
  %v104 = vld [vmem:[%s1 + $0x15c] sm:$0xf]
  %v105 = vld [vmem:[%s1 + $0x160] sm:$0xf]
  %v106 = vld [vmem:[%s1 + $0x164] sm:$0xf]
  %v107 = vld [vmem:[%s1 + $0x168] sm:$0xf]
  %v108 = vld [vmem:[%s1 + $0x16c] sm:$0xf]
  %v109 = vld [vmem:[%s1 + $0x170] sm:$0xf]
  %v110 = vld [vmem:[%s1 + $0x174] sm:$0xf]
  %v111 = vld [vmem:[%s1 + $0x178] sm:$0xf]
  %v112 = vld [vmem:[%s1 + $0x17c] sm:$0xf]
  %v113 = vld [vmem:[%s1 + $0x180] sm:$0xf]
  %v114 = vld [vmem:[%s1 + $0x184] sm:$0xf]
  %v115 = vld [vmem:[%s1 + $0x188] sm:$0xf]
  %v116 = vld [vmem:[%s1 + $0x18c] sm:$0xf]
  %v117 = vld [vmem:[%s1 + $0x190] sm:$0xf]
  %v118 = vld [vmem:[%s1 + $0x194] sm:$0xf]
  %v119 = vld [vmem:[%s1 + $0x198] sm:$0xf]
  %v120 = vld [vmem:[%s1 + $0x19c] sm:$0xf]
  %v121 = vld [vmem:[%s1 + $0x1a0] sm:$0xf]
  %v122 = vld [vmem:[%s1 + $0x1a4] sm:$0xf]
  %v123 = vld [vmem:[%s1 + $0x1a8] sm:$0xf]
  %v124 = vld [vmem:[%s1 + $0x1ac] sm:$0xf]
  %v125 = vld [vmem:[%s1 + $0x1b0] sm:$0xf]
  %v126 = vld [vmem:[%s1 + $0x1b4] sm:$0xf]
  %v127 = vld [vmem:[%s1 + $0x1b8] sm:$0xf]
  %v128 = vld [vmem:[%s1 + $0x1bc] sm:$0xf]
  %v129 = vld [vmem:[%s1 + $0x1c0] sm:$0xf]
  %v130 = vld [vmem:[%s1 + $0x1c4] sm:$0xf]
  %v131 = vld [vmem:[%s1 + $0x1c8] sm:$0xf]
  %v132 = vld [vmem:[%s1 + $0x1cc] sm:$0xf]
  %v133 = vld [vmem:[%s1 + $0x1d0] sm:$0xf]
  %v134 = vld [vmem:[%s1 + $0x1d4] sm:$0xf]
  %v135 = vld [vmem:[%s1 + $0x1d8] sm:$0xf]
  %v136 = vld [vmem:[%s1 + $0x1dc] sm:$0xf]
  %v137 = vld [vmem:[%s1 + $0x1e0] sm:$0xf]
  %v138 = vld [vmem:[%s1 + $0x1e4] sm:$0xf]
  %v139 = vld [vmem:[%s1 + $0x1e8] sm:$0xf]
  %v140 = vld [vmem:[%s1 + $0x1ec] sm:$0xf]
  %v141 = vld [vmem:[%s1 + $0x1f0] sm:$0xf]
  %v142 = vld [vmem:[%s1 + $0x1f4] sm:$0xf]
  %v143 = vld [vmem:[%s1 + $0x1f8] sm:$0xf]
  %v144 = vld [vmem:[%s1 + $0x1fc] sm:$0xf]
  %v145 = vld [vmem:[%s1 + $0x200] sm:$0xf]
  %v146 = vld [vmem:[%s1 + $0x204] sm:$0xf]
  %v147 = vld [vmem:[%s1 + $0x208] sm:$0xf]
  %v148 = vld [vmem:[%s1 + $0x20c] sm:$0xf]
  %v149 = vld [vmem:[%s1 + $0x210] sm:$0xf]
  %v150 = vld [vmem:[%s1 + $0x214] sm:$0xf]
  %v151 = vld [vmem:[%s1 + $0x218] sm:$0xf]
  %v152 = vld [vmem:[%s1 + $0x21c] sm:$0xf]
  %v153 = vld [vmem:[%s1 + $0x220] sm:$0xf]
  %v154 = vld [vmem:[%s1 + $0x224] sm:$0xf]
  %v155 = vld [vmem:[%s1 + $0x228] sm:$0xf]
  %v156 = vld [vmem:[%s1 + $0x22c] sm:$0xf]
  %v157 = vld [vmem:[%s1 + $0x230] sm:$0xf]
  %v158 = vld [vmem:[%s1 + $0x234] sm:$0xf]
  %v159 = vld [vmem:[%s1 + $0x238] sm:$0xf]
  %v160 = vld [vmem:[%s1 + $0x23c] sm:$0xf]
  %v161 = vld [vmem:[%s2] sm:$0x1]
  %v163 = vlaneseq
  %v164 = vshrl.u32 %v163, 7
  %v165 = vsub.s32 0, %v164
  %v166 = vrot.slane %v161, %v165
  %v170 = vcombine.high %v15, %v15
  %v172 = vunpack.c.l.s4 1966171168
  %v173 = vunpack.c.0.s8 %v172
  %v174 = vlaneseq
  %v175 = vshrl.u32 %v174, 7
  %v176 = vsub.s32 %v173, %v175
  %v177 = vrot.slane %v15, %v176
  %v179 = vunpack.c.l.s4 1966171168
  %v180 = vunpack.c.0.s8 %v179
  %v181 = vlaneseq
  %v182 = vshrl.u32 %v181, 7
  %v183 = vsub.s32 %v180, %v182
  %v184 = vrot.slane %v170, %v183
  %v185 = vcombine.high %v177, %v177
  %v186 = vcombine.high %v184, %v184
  %v188 = vunpack.c.l.s4 1966171168
  %v189 = vunpack.c.0.s8 %v188
  %v190 = vlaneseq
  %v191 = vshrl.u32 %v190, 7
  %v192 = vsub.s32 %v189, %v191
  %v193 = vrot.slane %v177, %v192
  %v195 = vunpack.c.l.s4 1966171168
  %v196 = vunpack.c.0.s8 %v195
  %v197 = vlaneseq
  %v198 = vshrl.u32 %v197, 7
  %v199 = vsub.s32 %v196, %v198
  %v200 = vrot.slane %v184, %v199
  %v202 = vunpack.c.l.s4 1966171168
  %v203 = vunpack.c.0.s8 %v202
  %v204 = vlaneseq
  %v205 = vshrl.u32 %v204, 7
  %v206 = vsub.s32 %v203, %v205
  %v207 = vrot.slane %v185, %v206
  %v209 = vunpack.c.l.s4 1966171168
  %v210 = vunpack.c.0.s8 %v209
  %v211 = vlaneseq
  %v212 = vshrl.u32 %v211, 7
  %v213 = vsub.s32 %v210, %v212
  %v214 = vrot.slane %v186, %v213
  %v215 = vcombine.high %v193, %v193
  %v216 = vcombine.high %v200, %v200
  %v217 = vcombine.high %v207, %v207
  %v218 = vcombine.high %v214, %v214
  %v220 = vunpack.c.l.s4 1966171168
  %v221 = vunpack.c.0.s8 %v220
  %v222 = vlaneseq
  %v223 = vshrl.u32 %v222, 7
  %v224 = vsub.s32 %v221, %v223
  %v225 = vrot.slane %v16, %v224
  %v227 = vunpack.c.l.s4 1966171168
  %v228 = vunpack.c.0.s8 %v227
  %v229 = vlaneseq
  %v230 = vshrl.u32 %v229, 7
  %v231 = vsub.s32 %v228, %v230
  %v232 = vrot.slane %v225, %v231
  %v386 = vunpack.c.l.b16 %v17
  %v387 = vunpack.c.l.b16 %v18
  %v388 = vunpack.c.l.b16 %v19
  %v389 = vunpack.c.l.b16 %v20
  %v390 = vunpack.c.l.b16 %v21
  %v391 = vunpack.c.l.b16 %v22
  %v392 = vunpack.c.l.b16 %v23
  %v393 = vunpack.c.l.b16 %v24
  %v394 = vunpack.c.l.b16 %v25
  %v395 = vunpack.c.l.b16 %v26
  %v396 = vunpack.c.l.b16 %v27
  %v397 = vunpack.c.l.b16 %v28
  %v398 = vunpack.c.l.b16 %v29
  %v399 = vunpack.c.l.b16 %v30
  %v400 = vunpack.c.l.b16 %v31
  %v401 = vunpack.c.l.b16 %v32
  %v402 = vunpack.c.l.b16 %v33
  %v403 = vunpack.c.l.b16 %v34
  %v404 = vunpack.c.l.b16 %v35
  %v405 = vunpack.c.l.b16 %v36
  %v406 = vunpack.c.l.b16 %v37
  %v407 = vunpack.c.l.b16 %v38
  %v408 = vunpack.c.l.b16 %v39
  %v409 = vunpack.c.l.b16 %v40
  %v410 = vunpack.c.l.b16 %v41
  %v411 = vunpack.c.l.b16 %v42
  %v412 = vunpack.c.l.b16 %v43
  %v413 = vunpack.c.l.b16 %v44
  %v414 = vunpack.c.l.b16 %v45
  %v415 = vunpack.c.l.b16 %v46
  %v416 = vunpack.c.l.b16 %v47
  %v417 = vunpack.c.l.b16 %v48
  %v418 = vunpack.c.l.b16 %v49
  %v419 = vunpack.c.l.b16 %v50
  %v420 = vunpack.c.l.b16 %v51
  %v421 = vunpack.c.l.b16 %v52
  %v422 = vunpack.c.l.b16 %v53
  %v423 = vunpack.c.l.b16 %v54
  %v424 = vunpack.c.l.b16 %v55
  %v425 = vunpack.c.l.b16 %v56
  %v426 = vunpack.c.l.b16 %v57
  %v427 = vunpack.c.l.b16 %v58
  %v428 = vunpack.c.l.b16 %v59
  %v429 = vunpack.c.l.b16 %v60
  %v430 = vunpack.c.l.b16 %v61
  %v431 = vunpack.c.l.b16 %v62
  %v432 = vunpack.c.l.b16 %v63
  %v433 = vunpack.c.l.b16 %v64
  %v434 = vunpack.c.l.b16 %v65
  %v435 = vunpack.c.l.b16 %v66
  %v436 = vunpack.c.l.b16 %v67
  %v437 = vunpack.c.l.b16 %v68
  %v438 = vunpack.c.l.b16 %v69
  %v439 = vunpack.c.l.b16 %v70
  %v440 = vunpack.c.l.b16 %v71
  %v441 = vunpack.c.l.b16 %v72
  %v442 = vunpack.c.l.b16 %v73
  %v443 = vunpack.c.l.b16 %v74
  %v444 = vunpack.c.l.b16 %v75
  %v445 = vunpack.c.l.b16 %v76
  %v446 = vunpack.c.l.b16 %v77
  %v447 = vunpack.c.l.b16 %v78
  %v448 = vunpack.c.l.b16 %v79
  %v449 = vunpack.c.l.b16 %v80
  %v450 = vunpack.c.l.b16 %v81
  %v451 = vunpack.c.l.b16 %v82
  %v452 = vunpack.c.l.b16 %v83
  %v453 = vunpack.c.l.b16 %v84
  %v454 = vunpack.c.l.b16 %v85
  %v455 = vunpack.c.l.b16 %v86
  %v456 = vunpack.c.l.b16 %v87
  %v457 = vunpack.c.l.b16 %v88
  %v458 = vunpack.c.l.b16 %v89
  %v459 = vunpack.c.l.b16 %v90
  %v460 = vunpack.c.l.b16 %v91
  %v461 = vunpack.c.l.b16 %v92
  %v462 = vunpack.c.l.b16 %v93
  %v463 = vunpack.c.l.b16 %v94
  %v464 = vunpack.c.l.b16 %v95
  %v465 = vunpack.c.l.b16 %v96
  %v466 = vunpack.c.l.b16 %v97
  %v467 = vunpack.c.l.b16 %v98
  %v468 = vunpack.c.l.b16 %v99
  %v469 = vunpack.c.l.b16 %v100
  %v470 = vunpack.c.l.b16 %v101
  %v471 = vunpack.c.l.b16 %v102
  %v472 = vunpack.c.l.b16 %v103
  %v473 = vunpack.c.l.b16 %v104
  %v474 = vunpack.c.l.b16 %v105
  %v475 = vunpack.c.l.b16 %v106
  %v476 = vunpack.c.l.b16 %v107
  %v477 = vunpack.c.l.b16 %v108
  %v478 = vunpack.c.l.b16 %v109
  %v479 = vunpack.c.l.b16 %v110
  %v480 = vunpack.c.l.b16 %v111
  %v481 = vunpack.c.l.b16 %v112
  %v482 = vunpack.c.l.b16 %v113
  %v483 = vunpack.c.l.b16 %v114
  %v484 = vunpack.c.l.b16 %v115
  %v485 = vunpack.c.l.b16 %v116
  %v486 = vunpack.c.l.b16 %v117
  %v487 = vunpack.c.l.b16 %v118
  %v488 = vunpack.c.l.b16 %v119
  %v489 = vunpack.c.l.b16 %v120
  %v490 = vunpack.c.l.b16 %v121
  %v491 = vunpack.c.l.b16 %v122
  %v492 = vunpack.c.l.b16 %v123
  %v493 = vunpack.c.l.b16 %v124
  %v494 = vunpack.c.l.b16 %v125
  %v495 = vunpack.c.l.b16 %v126
  %v496 = vunpack.c.l.b16 %v127
  %v497 = vunpack.c.l.b16 %v128
  %v498 = vunpack.c.l.b16 %v129
  %v499 = vunpack.c.l.b16 %v130
  %v500 = vunpack.c.l.b16 %v131
  %v501 = vunpack.c.l.b16 %v132
  %v502 = vunpack.c.l.b16 %v133
  %v503 = vunpack.c.l.b16 %v134
  %v504 = vunpack.c.l.b16 %v135
  %v505 = vunpack.c.l.b16 %v136
  %v506 = vunpack.c.l.b16 %v137
  %v507 = vunpack.c.l.b16 %v138
  %v508 = vunpack.c.l.b16 %v139
  %v509 = vunpack.c.l.b16 %v140
  %v510 = vunpack.c.l.b16 %v141
  %v511 = vunpack.c.l.b16 %v142
  %v512 = vunpack.c.l.b16 %v143
  %v513 = vunpack.c.l.b16 %v144
  %v514 = vunpack.c.l.b16 %v145
  %v515 = vunpack.c.l.b16 %v146
  %v516 = vunpack.c.l.b16 %v147
  %v517 = vunpack.c.l.b16 %v148
  %v518 = vunpack.c.l.b16 %v149
  %v519 = vunpack.c.l.b16 %v150
  %v520 = vunpack.c.l.b16 %v151
  %v521 = vunpack.c.l.b16 %v152
  %v522 = vunpack.c.l.b16 %v153
  %v523 = vunpack.c.l.b16 %v154
  %v524 = vunpack.c.l.b16 %v155
  %v525 = vunpack.c.l.b16 %v156
  %v526 = vunpack.c.l.b16 %v157
  %v527 = vunpack.c.l.b16 %v158
  %v528 = vunpack.c.l.b16 %v159
  %v529 = vunpack.c.l.b16 %v160
  %v530 = vpack.c.b16 %v387, %v386
  %v531 = vpack.c.b16 %v389, %v388
  %v532 = vpack.c.b16 %v391, %v390
  %v533 = vpack.c.b16 %v393, %v392
  %v534 = vpack.c.b16 %v395, %v394
  %v535 = vpack.c.b16 %v397, %v396
  %v536 = vpack.c.b16 %v399, %v398
  %v537 = vpack.c.b16 %v401, %v400
  %v538 = vpack.c.b16 %v403, %v402
  %v539 = vpack.c.b16 %v405, %v404
  %v540 = vpack.c.b16 %v407, %v406
  %v541 = vpack.c.b16 %v409, %v408
  %v542 = vpack.c.b16 %v411, %v410
  %v543 = vpack.c.b16 %v413, %v412
  %v544 = vpack.c.b16 %v415, %v414
  %v545 = vpack.c.b16 %v417, %v416
  %v546 = vpack.c.b16 %v419, %v418
  %v547 = vpack.c.b16 %v421, %v420
  %v548 = vpack.c.b16 %v423, %v422
  %v549 = vpack.c.b16 %v425, %v424
  %v550 = vpack.c.b16 %v427, %v426
  %v551 = vpack.c.b16 %v429, %v428
  %v552 = vpack.c.b16 %v431, %v430
  %v553 = vpack.c.b16 %v433, %v432
  %v554 = vpack.c.b16 %v435, %v434
  %v555 = vpack.c.b16 %v437, %v436
  %v556 = vpack.c.b16 %v439, %v438
  %v557 = vpack.c.b16 %v441, %v440
  %v558 = vpack.c.b16 %v443, %v442
  %v559 = vpack.c.b16 %v445, %v444
  %v560 = vpack.c.b16 %v447, %v446
  %v561 = vpack.c.b16 %v449, %v448
  %v562 = vpack.c.b16 %v451, %v450
  %v563 = vpack.c.b16 %v453, %v452
  %v564 = vpack.c.b16 %v455, %v454
  %v565 = vpack.c.b16 %v457, %v456
  %v566 = vpack.c.b16 %v459, %v458
  %v567 = vpack.c.b16 %v461, %v460
  %v568 = vpack.c.b16 %v463, %v462
  %v569 = vpack.c.b16 %v465, %v464
  %v570 = vpack.c.b16 %v467, %v466
  %v571 = vpack.c.b16 %v469, %v468
  %v572 = vpack.c.b16 %v471, %v470
  %v573 = vpack.c.b16 %v473, %v472
  %v574 = vpack.c.b16 %v475, %v474
  %v575 = vpack.c.b16 %v477, %v476
  %v576 = vpack.c.b16 %v479, %v478
  %v577 = vpack.c.b16 %v481, %v480
  %v578 = vpack.c.b16 %v483, %v482
  %v579 = vpack.c.b16 %v485, %v484
  %v580 = vpack.c.b16 %v487, %v486
  %v581 = vpack.c.b16 %v489, %v488
  %v582 = vpack.c.b16 %v491, %v490
  %v583 = vpack.c.b16 %v493, %v492
  %v584 = vpack.c.b16 %v495, %v494
  %v585 = vpack.c.b16 %v497, %v496
  %v586 = vpack.c.b16 %v499, %v498
  %v587 = vpack.c.b16 %v501, %v500
  %v588 = vpack.c.b16 %v503, %v502
  %v589 = vpack.c.b16 %v505, %v504
  %v590 = vpack.c.b16 %v507, %v506
  %v591 = vpack.c.b16 %v509, %v508
  %v592 = vpack.c.b16 %v511, %v510
  %v593 = vpack.c.b16 %v513, %v512
  %v594 = vpack.c.b16 %v515, %v514
  %v595 = vpack.c.b16 %v517, %v516
  %v596 = vpack.c.b16 %v519, %v518
  %v597 = vpack.c.b16 %v521, %v520
  %v598 = vpack.c.b16 %v523, %v522
  %v599 = vpack.c.b16 %v525, %v524
  %v600 = vpack.c.b16 %v527, %v526
  %v601 = vpack.c.b16 %v529, %v528
  %674 = vmatprep.subr.bf16.mxu0 0
  %675 = vmatpush1.bf16.msra.mxu0 %v530
  %676 = vmatprep.subr.bf16.mxu0 0
  %677 = vmatpush1.bf16.msra.mxu0 %v531
  %678 = vmatprep.subr.bf16.mxu0 0
  %679 = vmatpush1.bf16.msra.mxu0 %v532
  %680 = vmatprep.subr.bf16.mxu0 0
  %681 = vmatpush1.bf16.msra.mxu0 %v533
  %682 = vmatprep.subr.bf16.mxu0 0
  %683 = vmatpush1.bf16.msra.mxu0 %v534
  %684 = vmatprep.subr.bf16.mxu0 0
  %685 = vmatpush1.bf16.msra.mxu0 %v535
  %686 = vmatprep.subr.bf16.mxu0 0
  %687 = vmatpush1.bf16.msra.mxu0 %v536
  %688 = vmatprep.subr.bf16.mxu0 0
  %689 = vmatpush1.bf16.msra.mxu0 %v537
  %690 = vmatprep.subr.bf16.mxu0 0
  %691 = vmatpush1.bf16.msra.mxu0 %v538
  %692 = vmatprep.subr.bf16.mxu0 0
  %693 = vmatpush1.bf16.msra.mxu0 %v539
  %694 = vmatprep.subr.bf16.mxu0 0
  %695 = vmatpush1.bf16.msra.mxu0 %v540
  %696 = vmatprep.subr.bf16.mxu0 0
  %697 = vmatpush1.bf16.msra.mxu0 %v541
  %698 = vmatprep.subr.bf16.mxu0 0
  %699 = vmatpush1.bf16.msra.mxu0 %v542
  %700 = vmatprep.subr.bf16.mxu0 0
  %701 = vmatpush1.bf16.msra.mxu0 %v543
  %702 = vmatprep.subr.bf16.mxu0 0
  %703 = vmatpush1.bf16.msra.mxu0 %v544
  %704 = vmatprep.subr.bf16.mxu0 0
  %705 = vmatpush1.bf16.msra.mxu0 %v545
  %706 = vmatprep.mubr.bf16.mxu0 %v207
  %707 = vmatmul.mubr.bf16.gmra.mrb[0].mxu0 %v193
  %v708 = vpop.f32.mrb[0].mxu0
  %v709 = vadd.f32 %v166, %v708
  %v710 = vpop.f32.mrb[0].mxu0
  %v711 = vpop.f32.mrb[0].mxu0
  %v712 = vpop.f32.mrb[0].mxu0
  %713 = vdwg.mxu0
  %714 = vmatprep.subr.bf16.mxu0 0
  %715 = vmatpush1.bf16.msra.mxu0 %v546
  %716 = vmatprep.subr.bf16.mxu0 0
  %717 = vmatpush1.bf16.msra.mxu0 %v547
  %718 = vmatprep.subr.bf16.mxu0 0
  %719 = vmatpush1.bf16.msra.mxu0 %v548
  %720 = vmatprep.subr.bf16.mxu0 0
  %721 = vmatpush1.bf16.msra.mxu0 %v549
  %722 = vmatprep.subr.bf16.mxu0 0
  %723 = vmatpush1.bf16.msra.mxu0 %v550
  %724 = vmatprep.subr.bf16.mxu0 0
  %725 = vmatpush1.bf16.msra.mxu0 %v551
  %726 = vmatprep.subr.bf16.mxu0 0
  %727 = vmatpush1.bf16.msra.mxu0 %v552
  %728 = vmatprep.subr.bf16.mxu0 0
  %729 = vmatpush1.bf16.msra.mxu0 %v553
  %730 = vmatprep.subr.bf16.mxu0 0
  %731 = vmatpush1.bf16.msra.mxu0 %v554
  %732 = vmatprep.subr.bf16.mxu0 0
  %733 = vmatpush1.bf16.msra.mxu0 %v555
  %734 = vmatprep.subr.bf16.mxu0 0
  %735 = vmatpush1.bf16.msra.mxu0 %v556
  %736 = vmatprep.subr.bf16.mxu0 0
  %737 = vmatpush1.bf16.msra.mxu0 %v557
  %738 = vmatprep.subr.bf16.mxu0 0
  %739 = vmatpush1.bf16.msra.mxu0 %v558
  %740 = vmatprep.subr.bf16.mxu0 0
  %741 = vmatpush1.bf16.msra.mxu0 %v559
  %742 = vmatprep.subr.bf16.mxu0 0
  %743 = vmatpush1.bf16.msra.mxu0 %v560
  %744 = vmatprep.subr.bf16.mxu0 0
  %745 = vmatpush1.bf16.msra.mxu0 %v561
  %746 = vmatprep.mubr.bf16.mxu0 %v217
  %747 = vmatmul.mubr.bf16.gmra.mrb[0].mxu0 %v215
  %v748 = vpop.f32.mrb[0].mxu0
  %v749 = vadd.f32 %v709, %v748
  %v750 = vpop.f32.mrb[0].mxu0
  %v751 = vpop.f32.mrb[0].mxu0
  %v752 = vpop.f32.mrb[0].mxu0
  %753 = vdwg.mxu0
  %754 = vmatprep.subr.bf16.mxu0 0
  %755 = vmatpush1.bf16.msra.mxu0 %v562
  %756 = vmatprep.subr.bf16.mxu0 0
  %757 = vmatpush1.bf16.msra.mxu0 %v563
  %758 = vmatprep.subr.bf16.mxu0 0
  %759 = vmatpush1.bf16.msra.mxu0 %v564
  %760 = vmatprep.subr.bf16.mxu0 0
  %761 = vmatpush1.bf16.msra.mxu0 %v565
  %762 = vmatprep.subr.bf16.mxu0 0
  %763 = vmatpush1.bf16.msra.mxu0 %v566
  %764 = vmatprep.subr.bf16.mxu0 0
  %765 = vmatpush1.bf16.msra.mxu0 %v567
  %766 = vmatprep.subr.bf16.mxu0 0
  %767 = vmatpush1.bf16.msra.mxu0 %v568
  %768 = vmatprep.subr.bf16.mxu0 0
  %769 = vmatpush1.bf16.msra.mxu0 %v569
  %770 = vmatprep.subr.bf16.mxu0 0
  %771 = vmatpush1.bf16.msra.mxu0 %v570
  %772 = vmatprep.subr.bf16.mxu0 0
  %773 = vmatpush1.bf16.msra.mxu0 %v571
  %774 = vmatprep.subr.bf16.mxu0 0
  %775 = vmatpush1.bf16.msra.mxu0 %v572
  %776 = vmatprep.subr.bf16.mxu0 0
  %777 = vmatpush1.bf16.msra.mxu0 %v573
  %778 = vmatprep.subr.bf16.mxu0 0
  %779 = vmatpush1.bf16.msra.mxu0 %v574
  %780 = vmatprep.subr.bf16.mxu0 0
  %781 = vmatpush1.bf16.msra.mxu0 %v575
  %782 = vmatprep.subr.bf16.mxu0 0
  %783 = vmatpush1.bf16.msra.mxu0 %v576
  %784 = vmatprep.subr.bf16.mxu0 0
  %785 = vmatpush1.bf16.msra.mxu0 %v577
  %786 = vmatprep.mubr.bf16.mxu0 %v214
  %787 = vmatmul.mubr.bf16.gmra.mrb[0].mxu0 %v200
  %v788 = vpop.f32.mrb[0].mxu0
  %v789 = vadd.f32 %v749, %v788
  %v790 = vpop.f32.mrb[0].mxu0
  %v791 = vpop.f32.mrb[0].mxu0
  %v792 = vpop.f32.mrb[0].mxu0
  %793 = vdwg.mxu0
  %794 = vmatprep.subr.bf16.mxu0 0
  %795 = vmatpush1.bf16.msra.mxu0 %v578
  %796 = vmatprep.subr.bf16.mxu0 0
  %797 = vmatpush1.bf16.msra.mxu0 %v579
  %798 = vmatprep.subr.bf16.mxu0 0
  %799 = vmatpush1.bf16.msra.mxu0 %v580
  %800 = vmatprep.subr.bf16.mxu0 0
  %801 = vmatpush1.bf16.msra.mxu0 %v581
  %802 = vmatprep.subr.bf16.mxu0 0
  %803 = vmatpush1.bf16.msra.mxu0 %v582
  %804 = vmatprep.subr.bf16.mxu0 0
  %805 = vmatpush1.bf16.msra.mxu0 %v583
  %806 = vmatprep.subr.bf16.mxu0 0
  %807 = vmatpush1.bf16.msra.mxu0 %v584
  %808 = vmatprep.subr.bf16.mxu0 0
  %809 = vmatpush1.bf16.msra.mxu0 %v585
  %810 = vmatprep.subr.bf16.mxu0 0
  %811 = vmatpush1.bf16.msra.mxu0 %v586
  %812 = vmatprep.subr.bf16.mxu0 0
  %813 = vmatpush1.bf16.msra.mxu0 %v587
  %814 = vmatprep.subr.bf16.mxu0 0
  %815 = vmatpush1.bf16.msra.mxu0 %v588
  %816 = vmatprep.subr.bf16.mxu0 0
  %817 = vmatpush1.bf16.msra.mxu0 %v589
  %818 = vmatprep.subr.bf16.mxu0 0
  %819 = vmatpush1.bf16.msra.mxu0 %v590
  %820 = vmatprep.subr.bf16.mxu0 0
  %821 = vmatpush1.bf16.msra.mxu0 %v591
  %822 = vmatprep.subr.bf16.mxu0 0
  %823 = vmatpush1.bf16.msra.mxu0 %v592
  %824 = vmatprep.subr.bf16.mxu0 0
  %825 = vmatpush1.bf16.msra.mxu0 %v593
  %826 = vmatprep.mubr.bf16.mxu0 %v218
  %827 = vmatmul.mubr.bf16.gmra.mrb[0].mxu0 %v216
  %v828 = vpop.f32.mrb[0].mxu0
  %v829 = vadd.f32 %v789, %v828
  %v830 = vpop.f32.mrb[0].mxu0
  %v831 = vpop.f32.mrb[0].mxu0
  %v832 = vpop.f32.mrb[0].mxu0
  %833 = vdwg.mxu0
  %834 = vmatprep.subr.bf16.mxu0 0
  %835 = vmatpush1.bf16.msra.mxu0 %v594
  %836 = vmatprep.subr.bf16.mxu0 0
  %837 = vmatpush1.bf16.msra.mxu0 %v595
  %838 = vmatprep.subr.bf16.mxu0 0
  %839 = vmatpush1.bf16.msra.mxu0 %v596
  %840 = vmatprep.subr.bf16.mxu0 0
  %841 = vmatpush1.bf16.msra.mxu0 %v597
  %842 = vmatprep.subr.bf16.mxu0 0
  %843 = vmatpush1.bf16.msra.mxu0 %v598
  %844 = vmatprep.subr.bf16.mxu0 0
  %845 = vmatpush1.bf16.msra.mxu0 %v599
  %846 = vmatprep.subr.bf16.mxu0 0
  %847 = vmatpush1.bf16.msra.mxu0 %v600
  %848 = vmatprep.subr.bf16.mxu0 0
  %849 = vmatpush1.bf16.msra.mxu0 %v601
  %850 = vmatprep.subr.bf16.mxu0 0
  %851 = vmatpush1.bf16.msra.mxu0 0
  %852 = vmatprep.subr.bf16.mxu0 0
  %853 = vmatpush1.bf16.msra.mxu0 0
  %854 = vmatprep.subr.bf16.mxu0 0
  %855 = vmatpush1.bf16.msra.mxu0 0
  %856 = vmatprep.subr.bf16.mxu0 0
  %857 = vmatpush1.bf16.msra.mxu0 0
  %858 = vmatprep.subr.bf16.mxu0 0
  %859 = vmatpush1.bf16.msra.mxu0 0
  %860 = vmatprep.subr.bf16.mxu0 0
  %861 = vmatpush1.bf16.msra.mxu0 0
  %862 = vmatprep.subr.bf16.mxu0 0
  %863 = vmatpush1.bf16.msra.mxu0 0
  %864 = vmatprep.subr.bf16.mxu0 0
  %865 = vmatpush1.bf16.msra.mxu0 0
  %866 = vmatprep.mubr.bf16.mxu0 0
  %867 = vmatmul.mubr.bf16.gmra.mrb[0].mxu0 %v232
  %v868 = vpop.f32.mrb[0].mxu0
  %v869 = vadd.f32 %v829, %v868
  %v870 = vpop.f32.mrb[0].mxu0
  %v871 = vpop.f32.mrb[0].mxu0
  %v872 = vpop.f32.mrb[0].mxu0
  %873 = vdwg.mxu0
  %v874 = vmax.f32 %v869, 0.0
  %v875 = vpack.c.bf16 %v874, %v874
  %876 = vst [vmem:[%s3] sm:$0x1] %v875
  // Predicated region
  $region14: #{qnetwork_forward.6} parent=0 // pred_check
    _
  $region15: #{qnetwork_forward.6} parent=0 // pred_check_branch
    %878 = sbr.rel (0) target = $region17
  $region16: #{qnetwork_forward.6} parent=0 // pred_region
    _
  $region17: #{qnetwork_forward.6} parent=0 // pred_fallthru
    _
  // Predicated region
  $region18: #{qnetwork_forward.6} parent=0 // pred_check
    _
  $region19: #{qnetwork_forward.6} parent=0 // pred_check_branch
    %880 = sbr.rel (0) target = $region21
  $region20: #{qnetwork_forward.6} parent=0 // pred_region
    _
  $region21: #{qnetwork_forward.6} parent=0 // pred_fallthru
    _

</llo_original>
